<compile_context>
chip_gen: v7x
topology: tpu7x:2x2x1
jax: 0.10.0
libtpu: 0.0.40
codegen_flags: <defaults>
</compile_context>

<pallas_src>
import math
import numpy as np
import jax
import jax.numpy as jnp
from jax.experimental import pallas as pl
from jax.experimental.pallas import tpu as pltpu

BATCH = 2
SEQ_LEN = 16
D_MODEL = 32
N_HEADS = 4
D_FF = 64
MOVING_AVG = 5          # series_decomp kernel size (odd, like the default 25)
N_LAYERS = 2
LN_EPS = 1e-5
HEAD_DIM = D_MODEL // N_HEADS


# --------------------------- constant decomp operator ---------------------------

def build_decomp_matrix(L=SEQ_LEN, k=MOVING_AVG):
    """(L, L) matrix M with  M @ x == series_decomp(x).res  for one batch element.

    moving_avg replicate-pads (k-1)//2 timesteps on each end and applies
    AvgPool1d(k, stride=1); that is a linear operator A over the sequence,
    so res = x - A x = (I - A) x.  Batch-shared (applied per grid step).
    """
    pad = (k - 1) // 2
    A = np.zeros((L, L), np.float32)
    idx = np.arange(L)
    for j in range(k):
        src = np.clip(idx + j - pad, 0, L - 1)
        A[idx, src] += 1.0 / k
    return jnp.asarray(np.eye(L, dtype=np.float32) - A)


# ----------------------------------- kernel -------------------------------------

def encoder_kernel(x_ref, dmat_ref,
                   wq_ref, bq_ref, wk_ref, bk_ref, wv_ref, bv_ref,
                   wo_ref, bo_ref, w1_ref, w2_ref, gamma_ref, beta_ref,
                   o_ref):
    """One batch element per grid step: N_LAYERS EncoderLayers + my_Layernorm.

    x_ref:  (1, L, D)                     activations for this batch element
    dmat:   (L, L)  f32                   (I - moving_avg) decomp operator
    wq/wk/wv: (N_LAYERS, H, D, HEAD_DIM)  bf16, per-head projections
                                          (1/sqrt(HEAD_DIM) folded into wq)
    bq/bk/bv: (N_LAYERS, H, 1, HEAD_DIM)  f32 (scale folded into bq)
    wo:     (N_LAYERS, H, HEAD_DIM, D)    bf16, per-head rows of out projection
    bo:     (N_LAYERS, 1, D)              f32
    w1:     (N_LAYERS, D, D_FF)           bf16  Conv1d(k=1, bias=False) as matmul
    w2:     (N_LAYERS, D_FF, D)           bf16
    gamma/beta: (1, D)                    my_Layernorm's inner nn.LayerNorm params
    """
    bf = jnp.bfloat16
    f32 = jnp.float32
    x = x_ref[0].astype(f32)                       # (L, D)
    dmat = dmat_ref[...]                           # (L, L) f32

    for l in range(N_LAYERS):                      # static unroll over layers
        xb = x.astype(bf)

        # ---- AttentionLayer(FullAttention): per-head, weights pre-split on host,
        #      so no lane slices / concats of activations (pure MXU pushes). ----
        attn = jnp.zeros((SEQ_LEN, D_MODEL), f32)
        for h in range(N_HEADS):                   # static unroll over heads
            q = jnp.dot(xb, wq_ref[l, h], preferred_element_type=f32) + bq_ref[l, h]
            k = jnp.dot(xb, wk_ref[l, h], preferred_element_type=f32) + bk_ref[l, h]
            v = jnp.dot(xb, wv_ref[l, h], preferred_element_type=f32) + bv_ref[l, h]

            # scores = (scale * q) @ k^T   (scale already folded into q weights)
            s = jnp.einsum('qd,kd->qk', q.astype(bf), k.astype(bf),
                           preferred_element_type=f32)           # (L, L)
            s = s - jnp.max(s, axis=-1, keepdims=True)
            p = jnp.exp(s)
            p = p / jnp.sum(p, axis=-1, keepdims=True)           # exact softmax
            ctx = jnp.dot(p.astype(bf), v.astype(bf),
                          preferred_element_type=f32)            # (L, HEAD_DIM)
            # fold the head's slice of the out projection here -> no concat
            attn = attn + jnp.dot(ctx.astype(bf), wo_ref[l, h],
                                  preferred_element_type=f32)
        new_x = attn + bo_ref[l]                                 # (L, D)

        # x = x + dropout(new_x); (x, _) = decomp1(x)   [dropout = identity]
        x1 = jnp.dot(dmat, x + new_x, preferred_element_type=f32)

        # FFN: Conv1d(k=1, bias=False) -> relu -> Conv1d(k=1, bias=False)
        y = jnp.maximum(jnp.dot(x1.astype(bf), w1_ref[l],
                                preferred_element_type=f32), 0.0)
        y = jnp.dot(y.astype(bf), w2_ref[l], preferred_element_type=f32)

        # (res, _) = decomp2(x + y)
        x = jnp.dot(dmat, x1 + y, preferred_element_type=f32)

    # ---- my_Layernorm: LayerNorm over D, then subtract the seq-mean ----
    mu = jnp.mean(x, axis=-1, keepdims=True)
    var = jnp.mean((x - mu) ** 2, axis=-1, keepdims=True)
    x_hat = (x - mu) * jax.lax.rsqrt(var + LN_EPS)
    x_hat = x_hat * gamma_ref[...] + beta_ref[...]
    out = x_hat - jnp.mean(x_hat, axis=0, keepdims=True)        # mean over seq
    o_ref[0] = out.astype(o_ref.dtype)


# ----------------------------------- wrapper ------------------------------------

def encoder_forward(x, params):
    """Encoder.forward with conv_layers=None and norm=my_Layernorm."""
    B, L, D = x.shape
    assert params["dmat"].shape == (L, L), "decomp operator built for different L"

    args = (x, params["dmat"], params["wq"], params["bq"], params["wk"],
            params["bk"], params["wv"], params["bv"], params["wo"],
            params["bo"], params["w1"], params["w2"], params["gamma"],
            params["beta"])

    def _const_spec(arr):                  # full array resident every grid step
        ndim = arr.ndim
        return pl.BlockSpec(arr.shape, lambda b: (0,) * ndim)

    in_specs = ([pl.BlockSpec((1, L, D), lambda b: (b, 0, 0))] +
                [_const_spec(a) for a in args[1:]])

    out = pl.pallas_call(
        encoder_kernel,
        out_shape=jax.ShapeDtypeStruct((B, L, D), x.dtype),
        grid=(B,),
        in_specs=in_specs,
        out_specs=pl.BlockSpec((1, L, D), lambda b: (b, 0, 0)),
        compiler_params=pltpu.CompilerParams(
            dimension_semantics=("parallel",)),
    )(*args)

    attns = [None] * N_LAYERS   # FullAttention(output_attention=False) -> None
    return out, attns


# -------------------------------- parameter init --------------------------------

def init_params(key):
    s = 0.05
    scale = 1.0 / math.sqrt(HEAD_DIM)
    bf = jnp.bfloat16

    def rnd(k, shape):
        return s * jax.random.normal(k, shape, jnp.float32)

    ks = jax.random.split(key, 10)
    params = dict(
        # per-head layouts; 1/sqrt(HEAD_DIM) folded into Q weights AND bias
        wq=(rnd(ks[0], (N_LAYERS, N_HEADS, D_MODEL, HEAD_DIM)) * scale).astype(bf),
        bq=rnd(ks[1], (N_LAYERS, N_HEADS, 1, HEAD_DIM)) * scale,
        wk=rnd(ks[2], (N_LAYERS, N_HEADS, D_MODEL, HEAD_DIM)).astype(bf),
        bk=rnd(ks[3], (N_LAYERS, N_HEADS, 1, HEAD_DIM)),
        wv=rnd(ks[4], (N_LAYERS, N_HEADS, D_MODEL, HEAD_DIM)).astype(bf),
        bv=rnd(ks[5], (N_LAYERS, N_HEADS, 1, HEAD_DIM)),
        wo=rnd(ks[6], (N_LAYERS, N_HEADS, HEAD_DIM, D_MODEL)).astype(bf),
        bo=rnd(ks[7], (N_LAYERS, 1, D_MODEL)),
        w1=rnd(ks[8], (N_LAYERS, D_MODEL, D_FF)).astype(bf),
        w2=rnd(ks[9], (N_LAYERS, D_FF, D_MODEL)).astype(bf),
        # nn.LayerNorm default init: weight=1, bias=0
        gamma=jnp.ones((1, D_MODEL), jnp.float32),
        beta=jnp.zeros((1, D_MODEL), jnp.float32),
        dmat=build_decomp_matrix(),
    )
    return params


# ------------------------------ pure-JAX reference -------------------------------
# Mirrors the kernel's mixed-precision policy (bf16 matmul operands, f32 accum)
# so the comparison isolates kernel correctness from the bf16 quantisation.

def _ref_decomp_res(x):                          # x: (B, L, D), exact pad+avgpool
    k, pad = MOVING_AVG, (MOVING_AVG - 1) // 2
    front = jnp.repeat(x[:, :1, :], pad, axis=1)
    end = jnp.repeat(x[:, -1:, :], pad, axis=1)
    xp = jnp.concatenate([front, x, end], axis=1)
    ma = jnp.stack([xp[:, j:j + x.shape[1], :] for j in range(k)], 0).mean(0)
    return x - ma


def _ref_encoder(x, p):
    bf, f32 = jnp.bfloat16, jnp.float32
    xc = x.astype(f32)
    for l in range(N_LAYERS):
        xb = xc.astype(bf)
        attn = jnp.zeros_like(xc)
        for h in range(N_HEADS):
            q = jnp.einsum('bld,de->ble', xb, p["wq"][l, h],
                           preferred_element_type=f32) + p["bq"][l, h]
            k = jnp.einsum('bld,de->ble', xb, p["wk"][l, h],
                           preferred_element_type=f32) + p["bk"][l, h]
            v = jnp.einsum('bld,de->ble', xb, p["wv"][l, h],
                           preferred_element_type=f32) + p["bv"][l, h]
            s = jnp.einsum('bqe,bke->bqk', q.astype(bf), k.astype(bf),
                           preferred_element_type=f32)
            a = jax.nn.softmax(s, axis=-1)
            ctx = jnp.einsum('bqk,bke->bqe', a.astype(bf), v.astype(bf),
                             preferred_element_type=f32)
            attn = attn + jnp.einsum('bqe,ed->bqd', ctx.astype(bf), p["wo"][l, h],
                                     preferred_element_type=f32)
        new_x = attn + p["bo"][l]
        x1 = _ref_decomp_res(xc + new_x)
        y = jnp.maximum(jnp.einsum('bld,df->blf', x1.astype(bf), p["w1"][l],
                                   preferred_element_type=f32), 0.0)
        y = jnp.einsum('blf,fd->bld', y.astype(bf), p["w2"][l],
                       preferred_element_type=f32)
        xc = _ref_decomp_res(x1 + y)
    mu = xc.mean(-1, keepdims=True)
    var = ((xc - mu) ** 2).mean(-1, keepdims=True)
    xh = (xc - mu) * jax.lax.rsqrt(var + LN_EPS) * p["gamma"] + p["beta"]
    return xh - xh.mean(axis=1, keepdims=True)


# ------------------------------------- main --------------------------------------

if __name__ == "__main__":
    key = jax.random.PRNGKey(0)
    k_x, k_p = jax.random.split(key)
    x = jax.random.normal(k_x, (BATCH, SEQ_LEN, D_MODEL), jnp.float32)
    params = init_params(k_p)

    out, attns = encoder_forward(x, params)
    out = jax.block_until_ready(out)

    assert out.shape == (BATCH, SEQ_LEN, D_MODEL)
    assert len(attns) == N_LAYERS and all(a is None for a in attns)
    assert bool(jnp.all(jnp.isfinite(out)))

    ref = jax.block_until_ready(_ref_encoder(x, params))
    max_err = float(jnp.max(jnp.abs(out - ref)))
    assert max_err < 2e-2, max_err

    print("KERNEL_OK")
</pallas_src>

<mosaic_0001>
module attributes {stable_mosaic.version = 11 : i64} {
  func.func @encoder_kernel(%arg0: i32, %arg1: memref<1x16x32xf32, #tpu.memory_space<vmem>>, %arg2: memref<16x16xf32, #tpu.memory_space<vmem>>, %arg3: memref<2x4x32x8xbf16, #tpu.memory_space<vmem>>, %arg4: memref<2x4x1x8xf32, #tpu.memory_space<vmem>>, %arg5: memref<2x4x32x8xbf16, #tpu.memory_space<vmem>>, %arg6: memref<2x4x1x8xf32, #tpu.memory_space<vmem>>, %arg7: memref<2x4x32x8xbf16, #tpu.memory_space<vmem>>, %arg8: memref<2x4x1x8xf32, #tpu.memory_space<vmem>>, %arg9: memref<2x4x8x32xbf16, #tpu.memory_space<vmem>>, %arg10: memref<2x1x32xf32, #tpu.memory_space<vmem>>, %arg11: memref<2x32x64xbf16, #tpu.memory_space<vmem>>, %arg12: memref<2x64x32xbf16, #tpu.memory_space<vmem>>, %arg13: memref<1x32xf32, #tpu.memory_space<vmem>>, %arg14: memref<1x32xf32, #tpu.memory_space<vmem>>, %arg15: memref<1x16x32xf32, #tpu.memory_space<vmem>>) attributes {dimension_semantics = [#tpu.dimension_semantics<parallel>], iteration_bounds = array<i64: 2>, scalar_prefetch = 0 : i64, scratch_operands = 0 : i64, tpu.core_type = #tpu.core_type<tc>, window_params = [{transform_indices = @transform_0, window_bounds = array<i64: 1, 16, 32>}, {pipeline_mode = #tpu.pipeline_mode<synchronous>, transform_indices = @transform_1, window_bounds = array<i64: 16, 16>}, {pipeline_mode = #tpu.pipeline_mode<synchronous>, transform_indices = @transform_2, window_bounds = array<i64: 2, 4, 32, 8>}, {pipeline_mode = #tpu.pipeline_mode<synchronous>, transform_indices = @transform_3, window_bounds = array<i64: 2, 4, 1, 8>}, {pipeline_mode = #tpu.pipeline_mode<synchronous>, transform_indices = @transform_4, window_bounds = array<i64: 2, 4, 32, 8>}, {pipeline_mode = #tpu.pipeline_mode<synchronous>, transform_indices = @transform_5, window_bounds = array<i64: 2, 4, 1, 8>}, {pipeline_mode = #tpu.pipeline_mode<synchronous>, transform_indices = @transform_6, window_bounds = array<i64: 2, 4, 32, 8>}, {pipeline_mode = #tpu.pipeline_mode<synchronous>, transform_indices = @transform_7, window_bounds = array<i64: 2, 4, 1, 8>}, {pipeline_mode = #tpu.pipeline_mode<synchronous>, transform_indices = @transform_8, window_bounds = array<i64: 2, 4, 8, 32>}, {pipeline_mode = #tpu.pipeline_mode<synchronous>, transform_indices = @transform_9, window_bounds = array<i64: 2, 1, 32>}, {pipeline_mode = #tpu.pipeline_mode<synchronous>, transform_indices = @transform_10, window_bounds = array<i64: 2, 32, 64>}, {pipeline_mode = #tpu.pipeline_mode<synchronous>, transform_indices = @transform_11, window_bounds = array<i64: 2, 64, 32>}, {pipeline_mode = #tpu.pipeline_mode<synchronous>, transform_indices = @transform_12, window_bounds = array<i64: 1, 32>}, {pipeline_mode = #tpu.pipeline_mode<synchronous>, transform_indices = @transform_13, window_bounds = array<i64: 1, 32>}, {transform_indices = @transform_14, window_bounds = array<i64: 1, 16, 32>}]} {
    %c0 = arith.constant 0 : index
    %c0_0 = arith.constant 0 : index
    %c0_1 = arith.constant 0 : index
    %0 = vector.load %arg1[%c0, %c0_0, %c0_1] : memref<1x16x32xf32, #tpu.memory_space<vmem>>, vector<1x16x32xf32>
    %1 = vector.shape_cast %0 : vector<1x16x32xf32> to vector<16x32xf32>
    %c0_2 = arith.constant 0 : index
    %c0_3 = arith.constant 0 : index
    %2 = vector.load %arg2[%c0_2, %c0_3] : memref<16x16xf32, #tpu.memory_space<vmem>>, vector<16x16xf32>
    %3 = arith.truncf %1 : vector<16x32xf32> to vector<16x32xbf16>
    %cst = arith.constant 0.000000e+00 : f32
    %4 = vector.broadcast %cst : f32 to vector<16x32xf32>
    %c0_4 = arith.constant 0 : index
    %c0_5 = arith.constant 0 : index
    %c0_6 = arith.constant 0 : index
    %c0_7 = arith.constant 0 : index
    %5 = vector.load %arg3[%c0_4, %c0_5, %c0_6, %c0_7] : memref<2x4x32x8xbf16, #tpu.memory_space<vmem>>, vector<1x1x32x8xbf16>
    %6 = vector.shape_cast %5 : vector<1x1x32x8xbf16> to vector<32x8xbf16>
    %cst_8 = arith.constant dense<0.000000e+00> : vector<16x8xf32>
    %7 = tpu.matmul %3, %6, %cst_8 {dimension_numbers = #tpu.dot_dimension_numbers<[1], [0], [0], [1], [0, 0, 1, 1], [], []>} : vector<16x32xbf16>, vector<32x8xbf16>, vector<16x8xf32> -> vector<16x8xf32>
    %c0_9 = arith.constant 0 : index
    %c0_10 = arith.constant 0 : index
    %c0_11 = arith.constant 0 : index
    %c0_12 = arith.constant 0 : index
    %8 = vector.load %arg4[%c0_9, %c0_10, %c0_11, %c0_12] : memref<2x4x1x8xf32, #tpu.memory_space<vmem>>, vector<1x1x1x8xf32>
    %9 = vector.shape_cast %8 : vector<1x1x1x8xf32> to vector<1x8xf32>
    %10 = vector.broadcast %9 : vector<1x8xf32> to vector<16x8xf32>
    %11 = arith.addf %7, %10 : vector<16x8xf32>
    %c0_13 = arith.constant 0 : index
    %c0_14 = arith.constant 0 : index
    %c0_15 = arith.constant 0 : index
    %c0_16 = arith.constant 0 : index
    %12 = vector.load %arg5[%c0_13, %c0_14, %c0_15, %c0_16] : memref<2x4x32x8xbf16, #tpu.memory_space<vmem>>, vector<1x1x32x8xbf16>
    %13 = vector.shape_cast %12 : vector<1x1x32x8xbf16> to vector<32x8xbf16>
    %cst_17 = arith.constant dense<0.000000e+00> : vector<16x8xf32>
    %14 = tpu.matmul %3, %13, %cst_17 {dimension_numbers = #tpu.dot_dimension_numbers<[1], [0], [0], [1], [0, 0, 1, 1], [], []>} : vector<16x32xbf16>, vector<32x8xbf16>, vector<16x8xf32> -> vector<16x8xf32>
    %c0_18 = arith.constant 0 : index
    %c0_19 = arith.constant 0 : index
    %c0_20 = arith.constant 0 : index
    %c0_21 = arith.constant 0 : index
    %15 = vector.load %arg6[%c0_18, %c0_19, %c0_20, %c0_21] : memref<2x4x1x8xf32, #tpu.memory_space<vmem>>, vector<1x1x1x8xf32>
    %16 = vector.shape_cast %15 : vector<1x1x1x8xf32> to vector<1x8xf32>
    %17 = vector.broadcast %16 : vector<1x8xf32> to vector<16x8xf32>
    %18 = arith.addf %14, %17 : vector<16x8xf32>
    %c0_22 = arith.constant 0 : index
    %c0_23 = arith.constant 0 : index
    %c0_24 = arith.constant 0 : index
    %c0_25 = arith.constant 0 : index
    %19 = vector.load %arg7[%c0_22, %c0_23, %c0_24, %c0_25] : memref<2x4x32x8xbf16, #tpu.memory_space<vmem>>, vector<1x1x32x8xbf16>
    %20 = vector.shape_cast %19 : vector<1x1x32x8xbf16> to vector<32x8xbf16>
    %cst_26 = arith.constant dense<0.000000e+00> : vector<16x8xf32>
    %21 = tpu.matmul %3, %20, %cst_26 {dimension_numbers = #tpu.dot_dimension_numbers<[1], [0], [0], [1], [0, 0, 1, 1], [], []>} : vector<16x32xbf16>, vector<32x8xbf16>, vector<16x8xf32> -> vector<16x8xf32>
    %c0_27 = arith.constant 0 : index
    %c0_28 = arith.constant 0 : index
    %c0_29 = arith.constant 0 : index
    %c0_30 = arith.constant 0 : index
    %22 = vector.load %arg8[%c0_27, %c0_28, %c0_29, %c0_30] : memref<2x4x1x8xf32, #tpu.memory_space<vmem>>, vector<1x1x1x8xf32>
    %23 = vector.shape_cast %22 : vector<1x1x1x8xf32> to vector<1x8xf32>
    %24 = vector.broadcast %23 : vector<1x8xf32> to vector<16x8xf32>
    %25 = arith.addf %21, %24 : vector<16x8xf32>
    %26 = arith.truncf %11 : vector<16x8xf32> to vector<16x8xbf16>
    %27 = arith.truncf %18 : vector<16x8xf32> to vector<16x8xbf16>
    "tpu.trace_start"() <{level = 10 : i32, message = "qd,kd->qk"}> : () -> ()
    %cst_31 = arith.constant dense<0.000000e+00> : vector<16x16xf32>
    %28 = tpu.matmul %26, %27, %cst_31 {dimension_numbers = #tpu.dot_dimension_numbers<[1], [1], [0], [0], [0, 0, 1, 0], [], []>} : vector<16x8xbf16>, vector<16x8xbf16>, vector<16x16xf32> -> vector<16x16xf32>
    "tpu.trace_stop"() : () -> ()
    %cst_32 = arith.constant dense<0xFF800000> : vector<16xf32>
    %29 = vector.multi_reduction <maximumf>, %28, %cst_32 [1] : vector<16x16xf32> to vector<16xf32>
    %30 = vector.shape_cast %29 : vector<16xf32> to vector<16x1xf32>
    %31 = vector.broadcast %30 : vector<16x1xf32> to vector<16x16xf32>
    %32 = arith.subf %28, %31 : vector<16x16xf32>
    %33 = math.exp %32 : vector<16x16xf32>
    %cst_33 = arith.constant dense<0.000000e+00> : vector<16xf32>
    %34 = vector.multi_reduction <add>, %33, %cst_33 [1] : vector<16x16xf32> to vector<16xf32>
    %35 = vector.shape_cast %34 : vector<16xf32> to vector<16x1xf32>
    %36 = vector.broadcast %35 : vector<16x1xf32> to vector<16x16xf32>
    %37 = arith.divf %33, %36 : vector<16x16xf32>
    %38 = arith.truncf %37 : vector<16x16xf32> to vector<16x16xbf16>
    %39 = arith.truncf %25 : vector<16x8xf32> to vector<16x8xbf16>
    %cst_34 = arith.constant dense<0.000000e+00> : vector<16x8xf32>
    %40 = tpu.matmul %38, %39, %cst_34 {dimension_numbers = #tpu.dot_dimension_numbers<[1], [0], [0], [1], [0, 0, 1, 1], [], []>} : vector<16x16xbf16>, vector<16x8xbf16>, vector<16x8xf32> -> vector<16x8xf32>
    %41 = arith.truncf %40 : vector<16x8xf32> to vector<16x8xbf16>
    %c0_35 = arith.constant 0 : index
    %c0_36 = arith.constant 0 : index
    %c0_37 = arith.constant 0 : index
    %c0_38 = arith.constant 0 : index
    %42 = vector.load %arg9[%c0_35, %c0_36, %c0_37, %c0_38] : memref<2x4x8x32xbf16, #tpu.memory_space<vmem>>, vector<1x1x8x32xbf16>
    %43 = vector.shape_cast %42 : vector<1x1x8x32xbf16> to vector<8x32xbf16>
    %cst_39 = arith.constant dense<0.000000e+00> : vector<16x32xf32>
    %44 = tpu.matmul %41, %43, %cst_39 {dimension_numbers = #tpu.dot_dimension_numbers<[1], [0], [0], [1], [0, 0, 1, 1], [], []>} : vector<16x8xbf16>, vector<8x32xbf16>, vector<16x32xf32> -> vector<16x32xf32>
    %45 = arith.addf %4, %44 : vector<16x32xf32>
    %c0_40 = arith.constant 0 : index
    %c1 = arith.constant 1 : index
    %c0_41 = arith.constant 0 : index
    %c0_42 = arith.constant 0 : index
    %46 = vector.load %arg3[%c0_40, %c1, %c0_41, %c0_42] : memref<2x4x32x8xbf16, #tpu.memory_space<vmem>>, vector<1x1x32x8xbf16>
    %47 = vector.shape_cast %46 : vector<1x1x32x8xbf16> to vector<32x8xbf16>
    %cst_43 = arith.constant dense<0.000000e+00> : vector<16x8xf32>
    %48 = tpu.matmul %3, %47, %cst_43 {dimension_numbers = #tpu.dot_dimension_numbers<[1], [0], [0], [1], [0, 0, 1, 1], [], []>} : vector<16x32xbf16>, vector<32x8xbf16>, vector<16x8xf32> -> vector<16x8xf32>
    %c0_44 = arith.constant 0 : index
    %c1_45 = arith.constant 1 : index
    %c0_46 = arith.constant 0 : index
    %c0_47 = arith.constant 0 : index
    %49 = vector.load %arg4[%c0_44, %c1_45, %c0_46, %c0_47] : memref<2x4x1x8xf32, #tpu.memory_space<vmem>>, vector<1x1x1x8xf32>
    %50 = vector.shape_cast %49 : vector<1x1x1x8xf32> to vector<1x8xf32>
    %51 = vector.broadcast %50 : vector<1x8xf32> to vector<16x8xf32>
    %52 = arith.addf %48, %51 : vector<16x8xf32>
    %c0_48 = arith.constant 0 : index
    %c1_49 = arith.constant 1 : index
    %c0_50 = arith.constant 0 : index
    %c0_51 = arith.constant 0 : index
    %53 = vector.load %arg5[%c0_48, %c1_49, %c0_50, %c0_51] : memref<2x4x32x8xbf16, #tpu.memory_space<vmem>>, vector<1x1x32x8xbf16>
    %54 = vector.shape_cast %53 : vector<1x1x32x8xbf16> to vector<32x8xbf16>
    %cst_52 = arith.constant dense<0.000000e+00> : vector<16x8xf32>
    %55 = tpu.matmul %3, %54, %cst_52 {dimension_numbers = #tpu.dot_dimension_numbers<[1], [0], [0], [1], [0, 0, 1, 1], [], []>} : vector<16x32xbf16>, vector<32x8xbf16>, vector<16x8xf32> -> vector<16x8xf32>
    %c0_53 = arith.constant 0 : index
    %c1_54 = arith.constant 1 : index
    %c0_55 = arith.constant 0 : index
    %c0_56 = arith.constant 0 : index
    %56 = vector.load %arg6[%c0_53, %c1_54, %c0_55, %c0_56] : memref<2x4x1x8xf32, #tpu.memory_space<vmem>>, vector<1x1x1x8xf32>
    %57 = vector.shape_cast %56 : vector<1x1x1x8xf32> to vector<1x8xf32>
    %58 = vector.broadcast %57 : vector<1x8xf32> to vector<16x8xf32>
    %59 = arith.addf %55, %58 : vector<16x8xf32>
    %c0_57 = arith.constant 0 : index
    %c1_58 = arith.constant 1 : index
    %c0_59 = arith.constant 0 : index
    %c0_60 = arith.constant 0 : index
    %60 = vector.load %arg7[%c0_57, %c1_58, %c0_59, %c0_60] : memref<2x4x32x8xbf16, #tpu.memory_space<vmem>>, vector<1x1x32x8xbf16>
    %61 = vector.shape_cast %60 : vector<1x1x32x8xbf16> to vector<32x8xbf16>
    %cst_61 = arith.constant dense<0.000000e+00> : vector<16x8xf32>
    %62 = tpu.matmul %3, %61, %cst_61 {dimension_numbers = #tpu.dot_dimension_numbers<[1], [0], [0], [1], [0, 0, 1, 1], [], []>} : vector<16x32xbf16>, vector<32x8xbf16>, vector<16x8xf32> -> vector<16x8xf32>
    %c0_62 = arith.constant 0 : index
    %c1_63 = arith.constant 1 : index
    %c0_64 = arith.constant 0 : index
    %c0_65 = arith.constant 0 : index
    %63 = vector.load %arg8[%c0_62, %c1_63, %c0_64, %c0_65] : memref<2x4x1x8xf32, #tpu.memory_space<vmem>>, vector<1x1x1x8xf32>
    %64 = vector.shape_cast %63 : vector<1x1x1x8xf32> to vector<1x8xf32>
    %65 = vector.broadcast %64 : vector<1x8xf32> to vector<16x8xf32>
    %66 = arith.addf %62, %65 : vector<16x8xf32>
    %67 = arith.truncf %52 : vector<16x8xf32> to vector<16x8xbf16>
    %68 = arith.truncf %59 : vector<16x8xf32> to vector<16x8xbf16>
    "tpu.trace_start"() <{level = 10 : i32, message = "qd,kd->qk"}> : () -> ()
    %cst_66 = arith.constant dense<0.000000e+00> : vector<16x16xf32>
    %69 = tpu.matmul %67, %68, %cst_66 {dimension_numbers = #tpu.dot_dimension_numbers<[1], [1], [0], [0], [0, 0, 1, 0], [], []>} : vector<16x8xbf16>, vector<16x8xbf16>, vector<16x16xf32> -> vector<16x16xf32>
    "tpu.trace_stop"() : () -> ()
    %cst_67 = arith.constant dense<0xFF800000> : vector<16xf32>
    %70 = vector.multi_reduction <maximumf>, %69, %cst_67 [1] : vector<16x16xf32> to vector<16xf32>
    %71 = vector.shape_cast %70 : vector<16xf32> to vector<16x1xf32>
    %72 = vector.broadcast %71 : vector<16x1xf32> to vector<16x16xf32>
    %73 = arith.subf %69, %72 : vector<16x16xf32>
    %74 = math.exp %73 : vector<16x16xf32>
    %cst_68 = arith.constant dense<0.000000e+00> : vector<16xf32>
    %75 = vector.multi_reduction <add>, %74, %cst_68 [1] : vector<16x16xf32> to vector<16xf32>
    %76 = vector.shape_cast %75 : vector<16xf32> to vector<16x1xf32>
    %77 = vector.broadcast %76 : vector<16x1xf32> to vector<16x16xf32>
    %78 = arith.divf %74, %77 : vector<16x16xf32>
    %79 = arith.truncf %78 : vector<16x16xf32> to vector<16x16xbf16>
    %80 = arith.truncf %66 : vector<16x8xf32> to vector<16x8xbf16>
    %cst_69 = arith.constant dense<0.000000e+00> : vector<16x8xf32>
    %81 = tpu.matmul %79, %80, %cst_69 {dimension_numbers = #tpu.dot_dimension_numbers<[1], [0], [0], [1], [0, 0, 1, 1], [], []>} : vector<16x16xbf16>, vector<16x8xbf16>, vector<16x8xf32> -> vector<16x8xf32>
    %82 = arith.truncf %81 : vector<16x8xf32> to vector<16x8xbf16>
    %c0_70 = arith.constant 0 : index
    %c1_71 = arith.constant 1 : index
    %c0_72 = arith.constant 0 : index
    %c0_73 = arith.constant 0 : index
    %83 = vector.load %arg9[%c0_70, %c1_71, %c0_72, %c0_73] : memref<2x4x8x32xbf16, #tpu.memory_space<vmem>>, vector<1x1x8x32xbf16>
    %84 = vector.shape_cast %83 : vector<1x1x8x32xbf16> to vector<8x32xbf16>
    %cst_74 = arith.constant dense<0.000000e+00> : vector<16x32xf32>
    %85 = tpu.matmul %82, %84, %cst_74 {dimension_numbers = #tpu.dot_dimension_numbers<[1], [0], [0], [1], [0, 0, 1, 1], [], []>} : vector<16x8xbf16>, vector<8x32xbf16>, vector<16x32xf32> -> vector<16x32xf32>
    %86 = arith.addf %45, %85 : vector<16x32xf32>
    %c0_75 = arith.constant 0 : index
    %c2 = arith.constant 2 : index
    %c0_76 = arith.constant 0 : index
    %c0_77 = arith.constant 0 : index
    %87 = vector.load %arg3[%c0_75, %c2, %c0_76, %c0_77] : memref<2x4x32x8xbf16, #tpu.memory_space<vmem>>, vector<1x1x32x8xbf16>
    %88 = vector.shape_cast %87 : vector<1x1x32x8xbf16> to vector<32x8xbf16>
    %cst_78 = arith.constant dense<0.000000e+00> : vector<16x8xf32>
    %89 = tpu.matmul %3, %88, %cst_78 {dimension_numbers = #tpu.dot_dimension_numbers<[1], [0], [0], [1], [0, 0, 1, 1], [], []>} : vector<16x32xbf16>, vector<32x8xbf16>, vector<16x8xf32> -> vector<16x8xf32>
    %c0_79 = arith.constant 0 : index
    %c2_80 = arith.constant 2 : index
    %c0_81 = arith.constant 0 : index
    %c0_82 = arith.constant 0 : index
    %90 = vector.load %arg4[%c0_79, %c2_80, %c0_81, %c0_82] : memref<2x4x1x8xf32, #tpu.memory_space<vmem>>, vector<1x1x1x8xf32>
    %91 = vector.shape_cast %90 : vector<1x1x1x8xf32> to vector<1x8xf32>
    %92 = vector.broadcast %91 : vector<1x8xf32> to vector<16x8xf32>
    %93 = arith.addf %89, %92 : vector<16x8xf32>
    %c0_83 = arith.constant 0 : index
    %c2_84 = arith.constant 2 : index
    %c0_85 = arith.constant 0 : index
    %c0_86 = arith.constant 0 : index
    %94 = vector.load %arg5[%c0_83, %c2_84, %c0_85, %c0_86] : memref<2x4x32x8xbf16, #tpu.memory_space<vmem>>, vector<1x1x32x8xbf16>
    %95 = vector.shape_cast %94 : vector<1x1x32x8xbf16> to vector<32x8xbf16>
    %cst_87 = arith.constant dense<0.000000e+00> : vector<16x8xf32>
    %96 = tpu.matmul %3, %95, %cst_87 {dimension_numbers = #tpu.dot_dimension_numbers<[1], [0], [0], [1], [0, 0, 1, 1], [], []>} : vector<16x32xbf16>, vector<32x8xbf16>, vector<16x8xf32> -> vector<16x8xf32>
    %c0_88 = arith.constant 0 : index
    %c2_89 = arith.constant 2 : index
    %c0_90 = arith.constant 0 : index
    %c0_91 = arith.constant 0 : index
    %97 = vector.load %arg6[%c0_88, %c2_89, %c0_90, %c0_91] : memref<2x4x1x8xf32, #tpu.memory_space<vmem>>, vector<1x1x1x8xf32>
    %98 = vector.shape_cast %97 : vector<1x1x1x8xf32> to vector<1x8xf32>
    %99 = vector.broadcast %98 : vector<1x8xf32> to vector<16x8xf32>
    %100 = arith.addf %96, %99 : vector<16x8xf32>
    %c0_92 = arith.constant 0 : index
    %c2_93 = arith.constant 2 : index
    %c0_94 = arith.constant 0 : index
    %c0_95 = arith.constant 0 : index
    %101 = vector.load %arg7[%c0_92, %c2_93, %c0_94, %c0_95] : memref<2x4x32x8xbf16, #tpu.memory_space<vmem>>, vector<1x1x32x8xbf16>
    %102 = vector.shape_cast %101 : vector<1x1x32x8xbf16> to vector<32x8xbf16>
    %cst_96 = arith.constant dense<0.000000e+00> : vector<16x8xf32>
    %103 = tpu.matmul %3, %102, %cst_96 {dimension_numbers = #tpu.dot_dimension_numbers<[1], [0], [0], [1], [0, 0, 1, 1], [], []>} : vector<16x32xbf16>, vector<32x8xbf16>, vector<16x8xf32> -> vector<16x8xf32>
    %c0_97 = arith.constant 0 : index
    %c2_98 = arith.constant 2 : index
    %c0_99 = arith.constant 0 : index
    %c0_100 = arith.constant 0 : index
    %104 = vector.load %arg8[%c0_97, %c2_98, %c0_99, %c0_100] : memref<2x4x1x8xf32, #tpu.memory_space<vmem>>, vector<1x1x1x8xf32>
    %105 = vector.shape_cast %104 : vector<1x1x1x8xf32> to vector<1x8xf32>
    %106 = vector.broadcast %105 : vector<1x8xf32> to vector<16x8xf32>
    %107 = arith.addf %103, %106 : vector<16x8xf32>
    %108 = arith.truncf %93 : vector<16x8xf32> to vector<16x8xbf16>
    %109 = arith.truncf %100 : vector<16x8xf32> to vector<16x8xbf16>
    "tpu.trace_start"() <{level = 10 : i32, message = "qd,kd->qk"}> : () -> ()
    %cst_101 = arith.constant dense<0.000000e+00> : vector<16x16xf32>
    %110 = tpu.matmul %108, %109, %cst_101 {dimension_numbers = #tpu.dot_dimension_numbers<[1], [1], [0], [0], [0, 0, 1, 0], [], []>} : vector<16x8xbf16>, vector<16x8xbf16>, vector<16x16xf32> -> vector<16x16xf32>
    "tpu.trace_stop"() : () -> ()
    %cst_102 = arith.constant dense<0xFF800000> : vector<16xf32>
    %111 = vector.multi_reduction <maximumf>, %110, %cst_102 [1] : vector<16x16xf32> to vector<16xf32>
    %112 = vector.shape_cast %111 : vector<16xf32> to vector<16x1xf32>
    %113 = vector.broadcast %112 : vector<16x1xf32> to vector<16x16xf32>
    %114 = arith.subf %110, %113 : vector<16x16xf32>
    %115 = math.exp %114 : vector<16x16xf32>
    %cst_103 = arith.constant dense<0.000000e+00> : vector<16xf32>
    %116 = vector.multi_reduction <add>, %115, %cst_103 [1] : vector<16x16xf32> to vector<16xf32>
    %117 = vector.shape_cast %116 : vector<16xf32> to vector<16x1xf32>
    %118 = vector.broadcast %117 : vector<16x1xf32> to vector<16x16xf32>
    %119 = arith.divf %115, %118 : vector<16x16xf32>
    %120 = arith.truncf %119 : vector<16x16xf32> to vector<16x16xbf16>
    %121 = arith.truncf %107 : vector<16x8xf32> to vector<16x8xbf16>
    %cst_104 = arith.constant dense<0.000000e+00> : vector<16x8xf32>
    %122 = tpu.matmul %120, %121, %cst_104 {dimension_numbers = #tpu.dot_dimension_numbers<[1], [0], [0], [1], [0, 0, 1, 1], [], []>} : vector<16x16xbf16>, vector<16x8xbf16>, vector<16x8xf32> -> vector<16x8xf32>
    %123 = arith.truncf %122 : vector<16x8xf32> to vector<16x8xbf16>
    %c0_105 = arith.constant 0 : index
    %c2_106 = arith.constant 2 : index
    %c0_107 = arith.constant 0 : index
    %c0_108 = arith.constant 0 : index
    %124 = vector.load %arg9[%c0_105, %c2_106, %c0_107, %c0_108] : memref<2x4x8x32xbf16, #tpu.memory_space<vmem>>, vector<1x1x8x32xbf16>
    %125 = vector.shape_cast %124 : vector<1x1x8x32xbf16> to vector<8x32xbf16>
    %cst_109 = arith.constant dense<0.000000e+00> : vector<16x32xf32>
    %126 = tpu.matmul %123, %125, %cst_109 {dimension_numbers = #tpu.dot_dimension_numbers<[1], [0], [0], [1], [0, 0, 1, 1], [], []>} : vector<16x8xbf16>, vector<8x32xbf16>, vector<16x32xf32> -> vector<16x32xf32>
    %127 = arith.addf %86, %126 : vector<16x32xf32>
    %c0_110 = arith.constant 0 : index
    %c3 = arith.constant 3 : index
    %c0_111 = arith.constant 0 : index
    %c0_112 = arith.constant 0 : index
    %128 = vector.load %arg3[%c0_110, %c3, %c0_111, %c0_112] : memref<2x4x32x8xbf16, #tpu.memory_space<vmem>>, vector<1x1x32x8xbf16>
    %129 = vector.shape_cast %128 : vector<1x1x32x8xbf16> to vector<32x8xbf16>
    %cst_113 = arith.constant dense<0.000000e+00> : vector<16x8xf32>
    %130 = tpu.matmul %3, %129, %cst_113 {dimension_numbers = #tpu.dot_dimension_numbers<[1], [0], [0], [1], [0, 0, 1, 1], [], []>} : vector<16x32xbf16>, vector<32x8xbf16>, vector<16x8xf32> -> vector<16x8xf32>
    %c0_114 = arith.constant 0 : index
    %c3_115 = arith.constant 3 : index
    %c0_116 = arith.constant 0 : index
    %c0_117 = arith.constant 0 : index
    %131 = vector.load %arg4[%c0_114, %c3_115, %c0_116, %c0_117] : memref<2x4x1x8xf32, #tpu.memory_space<vmem>>, vector<1x1x1x8xf32>
    %132 = vector.shape_cast %131 : vector<1x1x1x8xf32> to vector<1x8xf32>
    %133 = vector.broadcast %132 : vector<1x8xf32> to vector<16x8xf32>
    %134 = arith.addf %130, %133 : vector<16x8xf32>
    %c0_118 = arith.constant 0 : index
    %c3_119 = arith.constant 3 : index
    %c0_120 = arith.constant 0 : index
    %c0_121 = arith.constant 0 : index
    %135 = vector.load %arg5[%c0_118, %c3_119, %c0_120, %c0_121] : memref<2x4x32x8xbf16, #tpu.memory_space<vmem>>, vector<1x1x32x8xbf16>
    %136 = vector.shape_cast %135 : vector<1x1x32x8xbf16> to vector<32x8xbf16>
    %cst_122 = arith.constant dense<0.000000e+00> : vector<16x8xf32>
    %137 = tpu.matmul %3, %136, %cst_122 {dimension_numbers = #tpu.dot_dimension_numbers<[1], [0], [0], [1], [0, 0, 1, 1], [], []>} : vector<16x32xbf16>, vector<32x8xbf16>, vector<16x8xf32> -> vector<16x8xf32>
    %c0_123 = arith.constant 0 : index
    %c3_124 = arith.constant 3 : index
    %c0_125 = arith.constant 0 : index
    %c0_126 = arith.constant 0 : index
    %138 = vector.load %arg6[%c0_123, %c3_124, %c0_125, %c0_126] : memref<2x4x1x8xf32, #tpu.memory_space<vmem>>, vector<1x1x1x8xf32>
    %139 = vector.shape_cast %138 : vector<1x1x1x8xf32> to vector<1x8xf32>
    %140 = vector.broadcast %139 : vector<1x8xf32> to vector<16x8xf32>
    %141 = arith.addf %137, %140 : vector<16x8xf32>
    %c0_127 = arith.constant 0 : index
    %c3_128 = arith.constant 3 : index
    %c0_129 = arith.constant 0 : index
    %c0_130 = arith.constant 0 : index
    %142 = vector.load %arg7[%c0_127, %c3_128, %c0_129, %c0_130] : memref<2x4x32x8xbf16, #tpu.memory_space<vmem>>, vector<1x1x32x8xbf16>
    %143 = vector.shape_cast %142 : vector<1x1x32x8xbf16> to vector<32x8xbf16>
    %cst_131 = arith.constant dense<0.000000e+00> : vector<16x8xf32>
    %144 = tpu.matmul %3, %143, %cst_131 {dimension_numbers = #tpu.dot_dimension_numbers<[1], [0], [0], [1], [0, 0, 1, 1], [], []>} : vector<16x32xbf16>, vector<32x8xbf16>, vector<16x8xf32> -> vector<16x8xf32>
    %c0_132 = arith.constant 0 : index
    %c3_133 = arith.constant 3 : index
    %c0_134 = arith.constant 0 : index
    %c0_135 = arith.constant 0 : index
    %145 = vector.load %arg8[%c0_132, %c3_133, %c0_134, %c0_135] : memref<2x4x1x8xf32, #tpu.memory_space<vmem>>, vector<1x1x1x8xf32>
    %146 = vector.shape_cast %145 : vector<1x1x1x8xf32> to vector<1x8xf32>
    %147 = vector.broadcast %146 : vector<1x8xf32> to vector<16x8xf32>
    %148 = arith.addf %144, %147 : vector<16x8xf32>
    %149 = arith.truncf %134 : vector<16x8xf32> to vector<16x8xbf16>
    %150 = arith.truncf %141 : vector<16x8xf32> to vector<16x8xbf16>
    "tpu.trace_start"() <{level = 10 : i32, message = "qd,kd->qk"}> : () -> ()
    %cst_136 = arith.constant dense<0.000000e+00> : vector<16x16xf32>
    %151 = tpu.matmul %149, %150, %cst_136 {dimension_numbers = #tpu.dot_dimension_numbers<[1], [1], [0], [0], [0, 0, 1, 0], [], []>} : vector<16x8xbf16>, vector<16x8xbf16>, vector<16x16xf32> -> vector<16x16xf32>
    "tpu.trace_stop"() : () -> ()
    %cst_137 = arith.constant dense<0xFF800000> : vector<16xf32>
    %152 = vector.multi_reduction <maximumf>, %151, %cst_137 [1] : vector<16x16xf32> to vector<16xf32>
    %153 = vector.shape_cast %152 : vector<16xf32> to vector<16x1xf32>
    %154 = vector.broadcast %153 : vector<16x1xf32> to vector<16x16xf32>
    %155 = arith.subf %151, %154 : vector<16x16xf32>
    %156 = math.exp %155 : vector<16x16xf32>
    %cst_138 = arith.constant dense<0.000000e+00> : vector<16xf32>
    %157 = vector.multi_reduction <add>, %156, %cst_138 [1] : vector<16x16xf32> to vector<16xf32>
    %158 = vector.shape_cast %157 : vector<16xf32> to vector<16x1xf32>
    %159 = vector.broadcast %158 : vector<16x1xf32> to vector<16x16xf32>
    %160 = arith.divf %156, %159 : vector<16x16xf32>
    %161 = arith.truncf %160 : vector<16x16xf32> to vector<16x16xbf16>
    %162 = arith.truncf %148 : vector<16x8xf32> to vector<16x8xbf16>
    %cst_139 = arith.constant dense<0.000000e+00> : vector<16x8xf32>
    %163 = tpu.matmul %161, %162, %cst_139 {dimension_numbers = #tpu.dot_dimension_numbers<[1], [0], [0], [1], [0, 0, 1, 1], [], []>} : vector<16x16xbf16>, vector<16x8xbf16>, vector<16x8xf32> -> vector<16x8xf32>
    %164 = arith.truncf %163 : vector<16x8xf32> to vector<16x8xbf16>
    %c0_140 = arith.constant 0 : index
    %c3_141 = arith.constant 3 : index
    %c0_142 = arith.constant 0 : index
    %c0_143 = arith.constant 0 : index
    %165 = vector.load %arg9[%c0_140, %c3_141, %c0_142, %c0_143] : memref<2x4x8x32xbf16, #tpu.memory_space<vmem>>, vector<1x1x8x32xbf16>
    %166 = vector.shape_cast %165 : vector<1x1x8x32xbf16> to vector<8x32xbf16>
    %cst_144 = arith.constant dense<0.000000e+00> : vector<16x32xf32>
    %167 = tpu.matmul %164, %166, %cst_144 {dimension_numbers = #tpu.dot_dimension_numbers<[1], [0], [0], [1], [0, 0, 1, 1], [], []>} : vector<16x8xbf16>, vector<8x32xbf16>, vector<16x32xf32> -> vector<16x32xf32>
    %168 = arith.addf %127, %167 : vector<16x32xf32>
    %c0_145 = arith.constant 0 : index
    %c0_146 = arith.constant 0 : index
    %c0_147 = arith.constant 0 : index
    %169 = vector.load %arg10[%c0_145, %c0_146, %c0_147] : memref<2x1x32xf32, #tpu.memory_space<vmem>>, vector<1x1x32xf32>
    %170 = vector.shape_cast %169 : vector<1x1x32xf32> to vector<1x32xf32>
    %171 = vector.broadcast %170 : vector<1x32xf32> to vector<16x32xf32>
    %172 = arith.addf %168, %171 : vector<16x32xf32>
    %173 = arith.addf %1, %172 : vector<16x32xf32>
    %cst_148 = arith.constant dense<0.000000e+00> : vector<16x32xf32>
    %174 = tpu.matmul %2, %173, %cst_148 {dimension_numbers = #tpu.dot_dimension_numbers<[1], [0], [0], [1], [0, 0, 1, 1], [], []>} : vector<16x16xf32>, vector<16x32xf32>, vector<16x32xf32> -> vector<16x32xf32>
    %175 = arith.truncf %174 : vector<16x32xf32> to vector<16x32xbf16>
    %c0_149 = arith.constant 0 : index
    %c0_150 = arith.constant 0 : index
    %c0_151 = arith.constant 0 : index
    %176 = vector.load %arg11[%c0_149, %c0_150, %c0_151] : memref<2x32x64xbf16, #tpu.memory_space<vmem>>, vector<1x32x64xbf16>
    %177 = vector.shape_cast %176 : vector<1x32x64xbf16> to vector<32x64xbf16>
    %cst_152 = arith.constant dense<0.000000e+00> : vector<16x64xf32>
    %178 = tpu.matmul %175, %177, %cst_152 {dimension_numbers = #tpu.dot_dimension_numbers<[1], [0], [0], [1], [0, 0, 1, 1], [], []>} : vector<16x32xbf16>, vector<32x64xbf16>, vector<16x64xf32> -> vector<16x64xf32>
    %cst_153 = arith.constant 0.000000e+00 : f32
    %179 = vector.broadcast %cst_153 : f32 to vector<16x64xf32>
    %180 = arith.maximumf %178, %179 : vector<16x64xf32>
    %181 = arith.truncf %180 : vector<16x64xf32> to vector<16x64xbf16>
    %c0_154 = arith.constant 0 : index
    %c0_155 = arith.constant 0 : index
    %c0_156 = arith.constant 0 : index
    %182 = vector.load %arg12[%c0_154, %c0_155, %c0_156] : memref<2x64x32xbf16, #tpu.memory_space<vmem>>, vector<1x64x32xbf16>
    %183 = vector.shape_cast %182 : vector<1x64x32xbf16> to vector<64x32xbf16>
    %cst_157 = arith.constant dense<0.000000e+00> : vector<16x32xf32>
    %184 = tpu.matmul %181, %183, %cst_157 {dimension_numbers = #tpu.dot_dimension_numbers<[1], [0], [0], [1], [0, 0, 1, 1], [], []>} : vector<16x64xbf16>, vector<64x32xbf16>, vector<16x32xf32> -> vector<16x32xf32>
    %185 = arith.addf %174, %184 : vector<16x32xf32>
    %cst_158 = arith.constant dense<0.000000e+00> : vector<16x32xf32>
    %186 = tpu.matmul %2, %185, %cst_158 {dimension_numbers = #tpu.dot_dimension_numbers<[1], [0], [0], [1], [0, 0, 1, 1], [], []>} : vector<16x16xf32>, vector<16x32xf32>, vector<16x32xf32> -> vector<16x32xf32>
    %187 = arith.truncf %186 : vector<16x32xf32> to vector<16x32xbf16>
    %cst_159 = arith.constant 0.000000e+00 : f32
    %188 = vector.broadcast %cst_159 : f32 to vector<16x32xf32>
    %c1_160 = arith.constant 1 : index
    %c0_161 = arith.constant 0 : index
    %c0_162 = arith.constant 0 : index
    %c0_163 = arith.constant 0 : index
    %189 = vector.load %arg3[%c1_160, %c0_161, %c0_162, %c0_163] : memref<2x4x32x8xbf16, #tpu.memory_space<vmem>>, vector<1x1x32x8xbf16>
    %190 = vector.shape_cast %189 : vector<1x1x32x8xbf16> to vector<32x8xbf16>
    %cst_164 = arith.constant dense<0.000000e+00> : vector<16x8xf32>
    %191 = tpu.matmul %187, %190, %cst_164 {dimension_numbers = #tpu.dot_dimension_numbers<[1], [0], [0], [1], [0, 0, 1, 1], [], []>} : vector<16x32xbf16>, vector<32x8xbf16>, vector<16x8xf32> -> vector<16x8xf32>
    %c1_165 = arith.constant 1 : index
    %c0_166 = arith.constant 0 : index
    %c0_167 = arith.constant 0 : index
    %c0_168 = arith.constant 0 : index
    %192 = vector.load %arg4[%c1_165, %c0_166, %c0_167, %c0_168] : memref<2x4x1x8xf32, #tpu.memory_space<vmem>>, vector<1x1x1x8xf32>
    %193 = vector.shape_cast %192 : vector<1x1x1x8xf32> to vector<1x8xf32>
    %194 = vector.broadcast %193 : vector<1x8xf32> to vector<16x8xf32>
    %195 = arith.addf %191, %194 : vector<16x8xf32>
    %c1_169 = arith.constant 1 : index
    %c0_170 = arith.constant 0 : index
    %c0_171 = arith.constant 0 : index
    %c0_172 = arith.constant 0 : index
    %196 = vector.load %arg5[%c1_169, %c0_170, %c0_171, %c0_172] : memref<2x4x32x8xbf16, #tpu.memory_space<vmem>>, vector<1x1x32x8xbf16>
    %197 = vector.shape_cast %196 : vector<1x1x32x8xbf16> to vector<32x8xbf16>
    %cst_173 = arith.constant dense<0.000000e+00> : vector<16x8xf32>
    %198 = tpu.matmul %187, %197, %cst_173 {dimension_numbers = #tpu.dot_dimension_numbers<[1], [0], [0], [1], [0, 0, 1, 1], [], []>} : vector<16x32xbf16>, vector<32x8xbf16>, vector<16x8xf32> -> vector<16x8xf32>
    %c1_174 = arith.constant 1 : index
    %c0_175 = arith.constant 0 : index
    %c0_176 = arith.constant 0 : index
    %c0_177 = arith.constant 0 : index
    %199 = vector.load %arg6[%c1_174, %c0_175, %c0_176, %c0_177] : memref<2x4x1x8xf32, #tpu.memory_space<vmem>>, vector<1x1x1x8xf32>
    %200 = vector.shape_cast %199 : vector<1x1x1x8xf32> to vector<1x8xf32>
    %201 = vector.broadcast %200 : vector<1x8xf32> to vector<16x8xf32>
    %202 = arith.addf %198, %201 : vector<16x8xf32>
    %c1_178 = arith.constant 1 : index
    %c0_179 = arith.constant 0 : index
    %c0_180 = arith.constant 0 : index
    %c0_181 = arith.constant 0 : index
    %203 = vector.load %arg7[%c1_178, %c0_179, %c0_180, %c0_181] : memref<2x4x32x8xbf16, #tpu.memory_space<vmem>>, vector<1x1x32x8xbf16>
    %204 = vector.shape_cast %203 : vector<1x1x32x8xbf16> to vector<32x8xbf16>
    %cst_182 = arith.constant dense<0.000000e+00> : vector<16x8xf32>
    %205 = tpu.matmul %187, %204, %cst_182 {dimension_numbers = #tpu.dot_dimension_numbers<[1], [0], [0], [1], [0, 0, 1, 1], [], []>} : vector<16x32xbf16>, vector<32x8xbf16>, vector<16x8xf32> -> vector<16x8xf32>
    %c1_183 = arith.constant 1 : index
    %c0_184 = arith.constant 0 : index
    %c0_185 = arith.constant 0 : index
    %c0_186 = arith.constant 0 : index
    %206 = vector.load %arg8[%c1_183, %c0_184, %c0_185, %c0_186] : memref<2x4x1x8xf32, #tpu.memory_space<vmem>>, vector<1x1x1x8xf32>
    %207 = vector.shape_cast %206 : vector<1x1x1x8xf32> to vector<1x8xf32>
    %208 = vector.broadcast %207 : vector<1x8xf32> to vector<16x8xf32>
    %209 = arith.addf %205, %208 : vector<16x8xf32>
    %210 = arith.truncf %195 : vector<16x8xf32> to vector<16x8xbf16>
    %211 = arith.truncf %202 : vector<16x8xf32> to vector<16x8xbf16>
    "tpu.trace_start"() <{level = 10 : i32, message = "qd,kd->qk"}> : () -> ()
    %cst_187 = arith.constant dense<0.000000e+00> : vector<16x16xf32>
    %212 = tpu.matmul %210, %211, %cst_187 {dimension_numbers = #tpu.dot_dimension_numbers<[1], [1], [0], [0], [0, 0, 1, 0], [], []>} : vector<16x8xbf16>, vector<16x8xbf16>, vector<16x16xf32> -> vector<16x16xf32>
    "tpu.trace_stop"() : () -> ()
    %cst_188 = arith.constant dense<0xFF800000> : vector<16xf32>
    %213 = vector.multi_reduction <maximumf>, %212, %cst_188 [1] : vector<16x16xf32> to vector<16xf32>
    %214 = vector.shape_cast %213 : vector<16xf32> to vector<16x1xf32>
    %215 = vector.broadcast %214 : vector<16x1xf32> to vector<16x16xf32>
    %216 = arith.subf %212, %215 : vector<16x16xf32>
    %217 = math.exp %216 : vector<16x16xf32>
    %cst_189 = arith.constant dense<0.000000e+00> : vector<16xf32>
    %218 = vector.multi_reduction <add>, %217, %cst_189 [1] : vector<16x16xf32> to vector<16xf32>
    %219 = vector.shape_cast %218 : vector<16xf32> to vector<16x1xf32>
    %220 = vector.broadcast %219 : vector<16x1xf32> to vector<16x16xf32>
    %221 = arith.divf %217, %220 : vector<16x16xf32>
    %222 = arith.truncf %221 : vector<16x16xf32> to vector<16x16xbf16>
    %223 = arith.truncf %209 : vector<16x8xf32> to vector<16x8xbf16>
    %cst_190 = arith.constant dense<0.000000e+00> : vector<16x8xf32>
    %224 = tpu.matmul %222, %223, %cst_190 {dimension_numbers = #tpu.dot_dimension_numbers<[1], [0], [0], [1], [0, 0, 1, 1], [], []>} : vector<16x16xbf16>, vector<16x8xbf16>, vector<16x8xf32> -> vector<16x8xf32>
    %225 = arith.truncf %224 : vector<16x8xf32> to vector<16x8xbf16>
    %c1_191 = arith.constant 1 : index
    %c0_192 = arith.constant 0 : index
    %c0_193 = arith.constant 0 : index
    %c0_194 = arith.constant 0 : index
    %226 = vector.load %arg9[%c1_191, %c0_192, %c0_193, %c0_194] : memref<2x4x8x32xbf16, #tpu.memory_space<vmem>>, vector<1x1x8x32xbf16>
    %227 = vector.shape_cast %226 : vector<1x1x8x32xbf16> to vector<8x32xbf16>
    %cst_195 = arith.constant dense<0.000000e+00> : vector<16x32xf32>
    %228 = tpu.matmul %225, %227, %cst_195 {dimension_numbers = #tpu.dot_dimension_numbers<[1], [0], [0], [1], [0, 0, 1, 1], [], []>} : vector<16x8xbf16>, vector<8x32xbf16>, vector<16x32xf32> -> vector<16x32xf32>
    %229 = arith.addf %188, %228 : vector<16x32xf32>
    %c1_196 = arith.constant 1 : index
    %c1_197 = arith.constant 1 : index
    %c0_198 = arith.constant 0 : index
    %c0_199 = arith.constant 0 : index
    %230 = vector.load %arg3[%c1_196, %c1_197, %c0_198, %c0_199] : memref<2x4x32x8xbf16, #tpu.memory_space<vmem>>, vector<1x1x32x8xbf16>
    %231 = vector.shape_cast %230 : vector<1x1x32x8xbf16> to vector<32x8xbf16>
    %cst_200 = arith.constant dense<0.000000e+00> : vector<16x8xf32>
    %232 = tpu.matmul %187, %231, %cst_200 {dimension_numbers = #tpu.dot_dimension_numbers<[1], [0], [0], [1], [0, 0, 1, 1], [], []>} : vector<16x32xbf16>, vector<32x8xbf16>, vector<16x8xf32> -> vector<16x8xf32>
    %c1_201 = arith.constant 1 : index
    %c1_202 = arith.constant 1 : index
    %c0_203 = arith.constant 0 : index
    %c0_204 = arith.constant 0 : index
    %233 = vector.load %arg4[%c1_201, %c1_202, %c0_203, %c0_204] : memref<2x4x1x8xf32, #tpu.memory_space<vmem>>, vector<1x1x1x8xf32>
    %234 = vector.shape_cast %233 : vector<1x1x1x8xf32> to vector<1x8xf32>
    %235 = vector.broadcast %234 : vector<1x8xf32> to vector<16x8xf32>
    %236 = arith.addf %232, %235 : vector<16x8xf32>
    %c1_205 = arith.constant 1 : index
    %c1_206 = arith.constant 1 : index
    %c0_207 = arith.constant 0 : index
    %c0_208 = arith.constant 0 : index
    %237 = vector.load %arg5[%c1_205, %c1_206, %c0_207, %c0_208] : memref<2x4x32x8xbf16, #tpu.memory_space<vmem>>, vector<1x1x32x8xbf16>
    %238 = vector.shape_cast %237 : vector<1x1x32x8xbf16> to vector<32x8xbf16>
    %cst_209 = arith.constant dense<0.000000e+00> : vector<16x8xf32>
    %239 = tpu.matmul %187, %238, %cst_209 {dimension_numbers = #tpu.dot_dimension_numbers<[1], [0], [0], [1], [0, 0, 1, 1], [], []>} : vector<16x32xbf16>, vector<32x8xbf16>, vector<16x8xf32> -> vector<16x8xf32>
    %c1_210 = arith.constant 1 : index
    %c1_211 = arith.constant 1 : index
    %c0_212 = arith.constant 0 : index
    %c0_213 = arith.constant 0 : index
    %240 = vector.load %arg6[%c1_210, %c1_211, %c0_212, %c0_213] : memref<2x4x1x8xf32, #tpu.memory_space<vmem>>, vector<1x1x1x8xf32>
    %241 = vector.shape_cast %240 : vector<1x1x1x8xf32> to vector<1x8xf32>
    %242 = vector.broadcast %241 : vector<1x8xf32> to vector<16x8xf32>
    %243 = arith.addf %239, %242 : vector<16x8xf32>
    %c1_214 = arith.constant 1 : index
    %c1_215 = arith.constant 1 : index
    %c0_216 = arith.constant 0 : index
    %c0_217 = arith.constant 0 : index
    %244 = vector.load %arg7[%c1_214, %c1_215, %c0_216, %c0_217] : memref<2x4x32x8xbf16, #tpu.memory_space<vmem>>, vector<1x1x32x8xbf16>
    %245 = vector.shape_cast %244 : vector<1x1x32x8xbf16> to vector<32x8xbf16>
    %cst_218 = arith.constant dense<0.000000e+00> : vector<16x8xf32>
    %246 = tpu.matmul %187, %245, %cst_218 {dimension_numbers = #tpu.dot_dimension_numbers<[1], [0], [0], [1], [0, 0, 1, 1], [], []>} : vector<16x32xbf16>, vector<32x8xbf16>, vector<16x8xf32> -> vector<16x8xf32>
    %c1_219 = arith.constant 1 : index
    %c1_220 = arith.constant 1 : index
    %c0_221 = arith.constant 0 : index
    %c0_222 = arith.constant 0 : index
    %247 = vector.load %arg8[%c1_219, %c1_220, %c0_221, %c0_222] : memref<2x4x1x8xf32, #tpu.memory_space<vmem>>, vector<1x1x1x8xf32>
    %248 = vector.shape_cast %247 : vector<1x1x1x8xf32> to vector<1x8xf32>
    %249 = vector.broadcast %248 : vector<1x8xf32> to vector<16x8xf32>
    %250 = arith.addf %246, %249 : vector<16x8xf32>
    %251 = arith.truncf %236 : vector<16x8xf32> to vector<16x8xbf16>
    %252 = arith.truncf %243 : vector<16x8xf32> to vector<16x8xbf16>
    "tpu.trace_start"() <{level = 10 : i32, message = "qd,kd->qk"}> : () -> ()
    %cst_223 = arith.constant dense<0.000000e+00> : vector<16x16xf32>
    %253 = tpu.matmul %251, %252, %cst_223 {dimension_numbers = #tpu.dot_dimension_numbers<[1], [1], [0], [0], [0, 0, 1, 0], [], []>} : vector<16x8xbf16>, vector<16x8xbf16>, vector<16x16xf32> -> vector<16x16xf32>
    "tpu.trace_stop"() : () -> ()
    %cst_224 = arith.constant dense<0xFF800000> : vector<16xf32>
    %254 = vector.multi_reduction <maximumf>, %253, %cst_224 [1] : vector<16x16xf32> to vector<16xf32>
    %255 = vector.shape_cast %254 : vector<16xf32> to vector<16x1xf32>
    %256 = vector.broadcast %255 : vector<16x1xf32> to vector<16x16xf32>
    %257 = arith.subf %253, %256 : vector<16x16xf32>
    %258 = math.exp %257 : vector<16x16xf32>
    %cst_225 = arith.constant dense<0.000000e+00> : vector<16xf32>
    %259 = vector.multi_reduction <add>, %258, %cst_225 [1] : vector<16x16xf32> to vector<16xf32>
    %260 = vector.shape_cast %259 : vector<16xf32> to vector<16x1xf32>
    %261 = vector.broadcast %260 : vector<16x1xf32> to vector<16x16xf32>
    %262 = arith.divf %258, %261 : vector<16x16xf32>
    %263 = arith.truncf %262 : vector<16x16xf32> to vector<16x16xbf16>
    %264 = arith.truncf %250 : vector<16x8xf32> to vector<16x8xbf16>
    %cst_226 = arith.constant dense<0.000000e+00> : vector<16x8xf32>
    %265 = tpu.matmul %263, %264, %cst_226 {dimension_numbers = #tpu.dot_dimension_numbers<[1], [0], [0], [1], [0, 0, 1, 1], [], []>} : vector<16x16xbf16>, vector<16x8xbf16>, vector<16x8xf32> -> vector<16x8xf32>
    %266 = arith.truncf %265 : vector<16x8xf32> to vector<16x8xbf16>
    %c1_227 = arith.constant 1 : index
    %c1_228 = arith.constant 1 : index
    %c0_229 = arith.constant 0 : index
    %c0_230 = arith.constant 0 : index
    %267 = vector.load %arg9[%c1_227, %c1_228, %c0_229, %c0_230] : memref<2x4x8x32xbf16, #tpu.memory_space<vmem>>, vector<1x1x8x32xbf16>
    %268 = vector.shape_cast %267 : vector<1x1x8x32xbf16> to vector<8x32xbf16>
    %cst_231 = arith.constant dense<0.000000e+00> : vector<16x32xf32>
    %269 = tpu.matmul %266, %268, %cst_231 {dimension_numbers = #tpu.dot_dimension_numbers<[1], [0], [0], [1], [0, 0, 1, 1], [], []>} : vector<16x8xbf16>, vector<8x32xbf16>, vector<16x32xf32> -> vector<16x32xf32>
    %270 = arith.addf %229, %269 : vector<16x32xf32>
    %c1_232 = arith.constant 1 : index
    %c2_233 = arith.constant 2 : index
    %c0_234 = arith.constant 0 : index
    %c0_235 = arith.constant 0 : index
    %271 = vector.load %arg3[%c1_232, %c2_233, %c0_234, %c0_235] : memref<2x4x32x8xbf16, #tpu.memory_space<vmem>>, vector<1x1x32x8xbf16>
    %272 = vector.shape_cast %271 : vector<1x1x32x8xbf16> to vector<32x8xbf16>
    %cst_236 = arith.constant dense<0.000000e+00> : vector<16x8xf32>
    %273 = tpu.matmul %187, %272, %cst_236 {dimension_numbers = #tpu.dot_dimension_numbers<[1], [0], [0], [1], [0, 0, 1, 1], [], []>} : vector<16x32xbf16>, vector<32x8xbf16>, vector<16x8xf32> -> vector<16x8xf32>
    %c1_237 = arith.constant 1 : index
    %c2_238 = arith.constant 2 : index
    %c0_239 = arith.constant 0 : index
    %c0_240 = arith.constant 0 : index
    %274 = vector.load %arg4[%c1_237, %c2_238, %c0_239, %c0_240] : memref<2x4x1x8xf32, #tpu.memory_space<vmem>>, vector<1x1x1x8xf32>
    %275 = vector.shape_cast %274 : vector<1x1x1x8xf32> to vector<1x8xf32>
    %276 = vector.broadcast %275 : vector<1x8xf32> to vector<16x8xf32>
    %277 = arith.addf %273, %276 : vector<16x8xf32>
    %c1_241 = arith.constant 1 : index
    %c2_242 = arith.constant 2 : index
    %c0_243 = arith.constant 0 : index
    %c0_244 = arith.constant 0 : index
    %278 = vector.load %arg5[%c1_241, %c2_242, %c0_243, %c0_244] : memref<2x4x32x8xbf16, #tpu.memory_space<vmem>>, vector<1x1x32x8xbf16>
    %279 = vector.shape_cast %278 : vector<1x1x32x8xbf16> to vector<32x8xbf16>
    %cst_245 = arith.constant dense<0.000000e+00> : vector<16x8xf32>
    %280 = tpu.matmul %187, %279, %cst_245 {dimension_numbers = #tpu.dot_dimension_numbers<[1], [0], [0], [1], [0, 0, 1, 1], [], []>} : vector<16x32xbf16>, vector<32x8xbf16>, vector<16x8xf32> -> vector<16x8xf32>
    %c1_246 = arith.constant 1 : index
    %c2_247 = arith.constant 2 : index
    %c0_248 = arith.constant 0 : index
    %c0_249 = arith.constant 0 : index
    %281 = vector.load %arg6[%c1_246, %c2_247, %c0_248, %c0_249] : memref<2x4x1x8xf32, #tpu.memory_space<vmem>>, vector<1x1x1x8xf32>
    %282 = vector.shape_cast %281 : vector<1x1x1x8xf32> to vector<1x8xf32>
    %283 = vector.broadcast %282 : vector<1x8xf32> to vector<16x8xf32>
    %284 = arith.addf %280, %283 : vector<16x8xf32>
    %c1_250 = arith.constant 1 : index
    %c2_251 = arith.constant 2 : index
    %c0_252 = arith.constant 0 : index
    %c0_253 = arith.constant 0 : index
    %285 = vector.load %arg7[%c1_250, %c2_251, %c0_252, %c0_253] : memref<2x4x32x8xbf16, #tpu.memory_space<vmem>>, vector<1x1x32x8xbf16>
    %286 = vector.shape_cast %285 : vector<1x1x32x8xbf16> to vector<32x8xbf16>
    %cst_254 = arith.constant dense<0.000000e+00> : vector<16x8xf32>
    %287 = tpu.matmul %187, %286, %cst_254 {dimension_numbers = #tpu.dot_dimension_numbers<[1], [0], [0], [1], [0, 0, 1, 1], [], []>} : vector<16x32xbf16>, vector<32x8xbf16>, vector<16x8xf32> -> vector<16x8xf32>
    %c1_255 = arith.constant 1 : index
    %c2_256 = arith.constant 2 : index
    %c0_257 = arith.constant 0 : index
    %c0_258 = arith.constant 0 : index
    %288 = vector.load %arg8[%c1_255, %c2_256, %c0_257, %c0_258] : memref<2x4x1x8xf32, #tpu.memory_space<vmem>>, vector<1x1x1x8xf32>
    %289 = vector.shape_cast %288 : vector<1x1x1x8xf32> to vector<1x8xf32>
    %290 = vector.broadcast %289 : vector<1x8xf32> to vector<16x8xf32>
    %291 = arith.addf %287, %290 : vector<16x8xf32>
    %292 = arith.truncf %277 : vector<16x8xf32> to vector<16x8xbf16>
    %293 = arith.truncf %284 : vector<16x8xf32> to vector<16x8xbf16>
    "tpu.trace_start"() <{level = 10 : i32, message = "qd,kd->qk"}> : () -> ()
    %cst_259 = arith.constant dense<0.000000e+00> : vector<16x16xf32>
    %294 = tpu.matmul %292, %293, %cst_259 {dimension_numbers = #tpu.dot_dimension_numbers<[1], [1], [0], [0], [0, 0, 1, 0], [], []>} : vector<16x8xbf16>, vector<16x8xbf16>, vector<16x16xf32> -> vector<16x16xf32>
    "tpu.trace_stop"() : () -> ()
    %cst_260 = arith.constant dense<0xFF800000> : vector<16xf32>
    %295 = vector.multi_reduction <maximumf>, %294, %cst_260 [1] : vector<16x16xf32> to vector<16xf32>
    %296 = vector.shape_cast %295 : vector<16xf32> to vector<16x1xf32>
    %297 = vector.broadcast %296 : vector<16x1xf32> to vector<16x16xf32>
    %298 = arith.subf %294, %297 : vector<16x16xf32>
    %299 = math.exp %298 : vector<16x16xf32>
    %cst_261 = arith.constant dense<0.000000e+00> : vector<16xf32>
    %300 = vector.multi_reduction <add>, %299, %cst_261 [1] : vector<16x16xf32> to vector<16xf32>
    %301 = vector.shape_cast %300 : vector<16xf32> to vector<16x1xf32>
    %302 = vector.broadcast %301 : vector<16x1xf32> to vector<16x16xf32>
    %303 = arith.divf %299, %302 : vector<16x16xf32>
    %304 = arith.truncf %303 : vector<16x16xf32> to vector<16x16xbf16>
    %305 = arith.truncf %291 : vector<16x8xf32> to vector<16x8xbf16>
    %cst_262 = arith.constant dense<0.000000e+00> : vector<16x8xf32>
    %306 = tpu.matmul %304, %305, %cst_262 {dimension_numbers = #tpu.dot_dimension_numbers<[1], [0], [0], [1], [0, 0, 1, 1], [], []>} : vector<16x16xbf16>, vector<16x8xbf16>, vector<16x8xf32> -> vector<16x8xf32>
    %307 = arith.truncf %306 : vector<16x8xf32> to vector<16x8xbf16>
    %c1_263 = arith.constant 1 : index
    %c2_264 = arith.constant 2 : index
    %c0_265 = arith.constant 0 : index
    %c0_266 = arith.constant 0 : index
    %308 = vector.load %arg9[%c1_263, %c2_264, %c0_265, %c0_266] : memref<2x4x8x32xbf16, #tpu.memory_space<vmem>>, vector<1x1x8x32xbf16>
    %309 = vector.shape_cast %308 : vector<1x1x8x32xbf16> to vector<8x32xbf16>
    %cst_267 = arith.constant dense<0.000000e+00> : vector<16x32xf32>
    %310 = tpu.matmul %307, %309, %cst_267 {dimension_numbers = #tpu.dot_dimension_numbers<[1], [0], [0], [1], [0, 0, 1, 1], [], []>} : vector<16x8xbf16>, vector<8x32xbf16>, vector<16x32xf32> -> vector<16x32xf32>
    %311 = arith.addf %270, %310 : vector<16x32xf32>
    %c1_268 = arith.constant 1 : index
    %c3_269 = arith.constant 3 : index
    %c0_270 = arith.constant 0 : index
    %c0_271 = arith.constant 0 : index
    %312 = vector.load %arg3[%c1_268, %c3_269, %c0_270, %c0_271] : memref<2x4x32x8xbf16, #tpu.memory_space<vmem>>, vector<1x1x32x8xbf16>
    %313 = vector.shape_cast %312 : vector<1x1x32x8xbf16> to vector<32x8xbf16>
    %cst_272 = arith.constant dense<0.000000e+00> : vector<16x8xf32>
    %314 = tpu.matmul %187, %313, %cst_272 {dimension_numbers = #tpu.dot_dimension_numbers<[1], [0], [0], [1], [0, 0, 1, 1], [], []>} : vector<16x32xbf16>, vector<32x8xbf16>, vector<16x8xf32> -> vector<16x8xf32>
    %c1_273 = arith.constant 1 : index
    %c3_274 = arith.constant 3 : index
    %c0_275 = arith.constant 0 : index
    %c0_276 = arith.constant 0 : index
    %315 = vector.load %arg4[%c1_273, %c3_274, %c0_275, %c0_276] : memref<2x4x1x8xf32, #tpu.memory_space<vmem>>, vector<1x1x1x8xf32>
    %316 = vector.shape_cast %315 : vector<1x1x1x8xf32> to vector<1x8xf32>
    %317 = vector.broadcast %316 : vector<1x8xf32> to vector<16x8xf32>
    %318 = arith.addf %314, %317 : vector<16x8xf32>
    %c1_277 = arith.constant 1 : index
    %c3_278 = arith.constant 3 : index
    %c0_279 = arith.constant 0 : index
    %c0_280 = arith.constant 0 : index
    %319 = vector.load %arg5[%c1_277, %c3_278, %c0_279, %c0_280] : memref<2x4x32x8xbf16, #tpu.memory_space<vmem>>, vector<1x1x32x8xbf16>
    %320 = vector.shape_cast %319 : vector<1x1x32x8xbf16> to vector<32x8xbf16>
    %cst_281 = arith.constant dense<0.000000e+00> : vector<16x8xf32>
    %321 = tpu.matmul %187, %320, %cst_281 {dimension_numbers = #tpu.dot_dimension_numbers<[1], [0], [0], [1], [0, 0, 1, 1], [], []>} : vector<16x32xbf16>, vector<32x8xbf16>, vector<16x8xf32> -> vector<16x8xf32>
    %c1_282 = arith.constant 1 : index
    %c3_283 = arith.constant 3 : index
    %c0_284 = arith.constant 0 : index
    %c0_285 = arith.constant 0 : index
    %322 = vector.load %arg6[%c1_282, %c3_283, %c0_284, %c0_285] : memref<2x4x1x8xf32, #tpu.memory_space<vmem>>, vector<1x1x1x8xf32>
    %323 = vector.shape_cast %322 : vector<1x1x1x8xf32> to vector<1x8xf32>
    %324 = vector.broadcast %323 : vector<1x8xf32> to vector<16x8xf32>
    %325 = arith.addf %321, %324 : vector<16x8xf32>
    %c1_286 = arith.constant 1 : index
    %c3_287 = arith.constant 3 : index
    %c0_288 = arith.constant 0 : index
    %c0_289 = arith.constant 0 : index
    %326 = vector.load %arg7[%c1_286, %c3_287, %c0_288, %c0_289] : memref<2x4x32x8xbf16, #tpu.memory_space<vmem>>, vector<1x1x32x8xbf16>
    %327 = vector.shape_cast %326 : vector<1x1x32x8xbf16> to vector<32x8xbf16>
    %cst_290 = arith.constant dense<0.000000e+00> : vector<16x8xf32>
    %328 = tpu.matmul %187, %327, %cst_290 {dimension_numbers = #tpu.dot_dimension_numbers<[1], [0], [0], [1], [0, 0, 1, 1], [], []>} : vector<16x32xbf16>, vector<32x8xbf16>, vector<16x8xf32> -> vector<16x8xf32>
    %c1_291 = arith.constant 1 : index
    %c3_292 = arith.constant 3 : index
    %c0_293 = arith.constant 0 : index
    %c0_294 = arith.constant 0 : index
    %329 = vector.load %arg8[%c1_291, %c3_292, %c0_293, %c0_294] : memref<2x4x1x8xf32, #tpu.memory_space<vmem>>, vector<1x1x1x8xf32>
    %330 = vector.shape_cast %329 : vector<1x1x1x8xf32> to vector<1x8xf32>
    %331 = vector.broadcast %330 : vector<1x8xf32> to vector<16x8xf32>
    %332 = arith.addf %328, %331 : vector<16x8xf32>
    %333 = arith.truncf %318 : vector<16x8xf32> to vector<16x8xbf16>
    %334 = arith.truncf %325 : vector<16x8xf32> to vector<16x8xbf16>
    "tpu.trace_start"() <{level = 10 : i32, message = "qd,kd->qk"}> : () -> ()
    %cst_295 = arith.constant dense<0.000000e+00> : vector<16x16xf32>
    %335 = tpu.matmul %333, %334, %cst_295 {dimension_numbers = #tpu.dot_dimension_numbers<[1], [1], [0], [0], [0, 0, 1, 0], [], []>} : vector<16x8xbf16>, vector<16x8xbf16>, vector<16x16xf32> -> vector<16x16xf32>
    "tpu.trace_stop"() : () -> ()
    %cst_296 = arith.constant dense<0xFF800000> : vector<16xf32>
    %336 = vector.multi_reduction <maximumf>, %335, %cst_296 [1] : vector<16x16xf32> to vector<16xf32>
    %337 = vector.shape_cast %336 : vector<16xf32> to vector<16x1xf32>
    %338 = vector.broadcast %337 : vector<16x1xf32> to vector<16x16xf32>
    %339 = arith.subf %335, %338 : vector<16x16xf32>
    %340 = math.exp %339 : vector<16x16xf32>
    %cst_297 = arith.constant dense<0.000000e+00> : vector<16xf32>
    %341 = vector.multi_reduction <add>, %340, %cst_297 [1] : vector<16x16xf32> to vector<16xf32>
    %342 = vector.shape_cast %341 : vector<16xf32> to vector<16x1xf32>
    %343 = vector.broadcast %342 : vector<16x1xf32> to vector<16x16xf32>
    %344 = arith.divf %340, %343 : vector<16x16xf32>
    %345 = arith.truncf %344 : vector<16x16xf32> to vector<16x16xbf16>
    %346 = arith.truncf %332 : vector<16x8xf32> to vector<16x8xbf16>
    %cst_298 = arith.constant dense<0.000000e+00> : vector<16x8xf32>
    %347 = tpu.matmul %345, %346, %cst_298 {dimension_numbers = #tpu.dot_dimension_numbers<[1], [0], [0], [1], [0, 0, 1, 1], [], []>} : vector<16x16xbf16>, vector<16x8xbf16>, vector<16x8xf32> -> vector<16x8xf32>
    %348 = arith.truncf %347 : vector<16x8xf32> to vector<16x8xbf16>
    %c1_299 = arith.constant 1 : index
    %c3_300 = arith.constant 3 : index
    %c0_301 = arith.constant 0 : index
    %c0_302 = arith.constant 0 : index
    %349 = vector.load %arg9[%c1_299, %c3_300, %c0_301, %c0_302] : memref<2x4x8x32xbf16, #tpu.memory_space<vmem>>, vector<1x1x8x32xbf16>
    %350 = vector.shape_cast %349 : vector<1x1x8x32xbf16> to vector<8x32xbf16>
    %cst_303 = arith.constant dense<0.000000e+00> : vector<16x32xf32>
    %351 = tpu.matmul %348, %350, %cst_303 {dimension_numbers = #tpu.dot_dimension_numbers<[1], [0], [0], [1], [0, 0, 1, 1], [], []>} : vector<16x8xbf16>, vector<8x32xbf16>, vector<16x32xf32> -> vector<16x32xf32>
    %352 = arith.addf %311, %351 : vector<16x32xf32>
    %c1_304 = arith.constant 1 : index
    %c0_305 = arith.constant 0 : index
    %c0_306 = arith.constant 0 : index
    %353 = vector.load %arg10[%c1_304, %c0_305, %c0_306] : memref<2x1x32xf32, #tpu.memory_space<vmem>>, vector<1x1x32xf32>
    %354 = vector.shape_cast %353 : vector<1x1x32xf32> to vector<1x32xf32>
    %355 = vector.broadcast %354 : vector<1x32xf32> to vector<16x32xf32>
    %356 = arith.addf %352, %355 : vector<16x32xf32>
    %357 = arith.addf %186, %356 : vector<16x32xf32>
    %cst_307 = arith.constant dense<0.000000e+00> : vector<16x32xf32>
    %358 = tpu.matmul %2, %357, %cst_307 {dimension_numbers = #tpu.dot_dimension_numbers<[1], [0], [0], [1], [0, 0, 1, 1], [], []>} : vector<16x16xf32>, vector<16x32xf32>, vector<16x32xf32> -> vector<16x32xf32>
    %359 = arith.truncf %358 : vector<16x32xf32> to vector<16x32xbf16>
    %c1_308 = arith.constant 1 : index
    %c0_309 = arith.constant 0 : index
    %c0_310 = arith.constant 0 : index
    %360 = vector.load %arg11[%c1_308, %c0_309, %c0_310] : memref<2x32x64xbf16, #tpu.memory_space<vmem>>, vector<1x32x64xbf16>
    %361 = vector.shape_cast %360 : vector<1x32x64xbf16> to vector<32x64xbf16>
    %cst_311 = arith.constant dense<0.000000e+00> : vector<16x64xf32>
    %362 = tpu.matmul %359, %361, %cst_311 {dimension_numbers = #tpu.dot_dimension_numbers<[1], [0], [0], [1], [0, 0, 1, 1], [], []>} : vector<16x32xbf16>, vector<32x64xbf16>, vector<16x64xf32> -> vector<16x64xf32>
    %cst_312 = arith.constant 0.000000e+00 : f32
    %363 = vector.broadcast %cst_312 : f32 to vector<16x64xf32>
    %364 = arith.maximumf %362, %363 : vector<16x64xf32>
    %365 = arith.truncf %364 : vector<16x64xf32> to vector<16x64xbf16>
    %c1_313 = arith.constant 1 : index
    %c0_314 = arith.constant 0 : index
    %c0_315 = arith.constant 0 : index
    %366 = vector.load %arg12[%c1_313, %c0_314, %c0_315] : memref<2x64x32xbf16, #tpu.memory_space<vmem>>, vector<1x64x32xbf16>
    %367 = vector.shape_cast %366 : vector<1x64x32xbf16> to vector<64x32xbf16>
    %cst_316 = arith.constant dense<0.000000e+00> : vector<16x32xf32>
    %368 = tpu.matmul %365, %367, %cst_316 {dimension_numbers = #tpu.dot_dimension_numbers<[1], [0], [0], [1], [0, 0, 1, 1], [], []>} : vector<16x64xbf16>, vector<64x32xbf16>, vector<16x32xf32> -> vector<16x32xf32>
    %369 = arith.addf %358, %368 : vector<16x32xf32>
    %cst_317 = arith.constant dense<0.000000e+00> : vector<16x32xf32>
    %370 = tpu.matmul %2, %369, %cst_317 {dimension_numbers = #tpu.dot_dimension_numbers<[1], [0], [0], [1], [0, 0, 1, 1], [], []>} : vector<16x16xf32>, vector<16x32xf32>, vector<16x32xf32> -> vector<16x32xf32>
    %cst_318 = arith.constant dense<0.000000e+00> : vector<16xf32>
    %371 = vector.multi_reduction <add>, %370, %cst_318 [1] : vector<16x32xf32> to vector<16xf32>
    %372 = vector.shape_cast %371 : vector<16xf32> to vector<16x1xf32>
    %cst_319 = arith.constant 3.200000e+01 : f32
    %373 = vector.broadcast %cst_319 : f32 to vector<16x1xf32>
    %374 = arith.divf %372, %373 : vector<16x1xf32>
    %375 = vector.broadcast %374 : vector<16x1xf32> to vector<16x32xf32>
    %376 = arith.subf %370, %375 : vector<16x32xf32>
    %377 = arith.mulf %376, %376 : vector<16x32xf32>
    %cst_320 = arith.constant dense<0.000000e+00> : vector<16xf32>
    %378 = vector.multi_reduction <add>, %377, %cst_320 [1] : vector<16x32xf32> to vector<16xf32>
    %379 = vector.shape_cast %378 : vector<16xf32> to vector<16x1xf32>
    %cst_321 = arith.constant 3.200000e+01 : f32
    %380 = vector.broadcast %cst_321 : f32 to vector<16x1xf32>
    %381 = arith.divf %379, %380 : vector<16x1xf32>
    %382 = vector.broadcast %374 : vector<16x1xf32> to vector<16x32xf32>
    %383 = arith.subf %370, %382 : vector<16x32xf32>
    %cst_322 = arith.constant 9.99999974E-6 : f32
    %384 = vector.broadcast %cst_322 : f32 to vector<16x1xf32>
    %385 = arith.addf %381, %384 : vector<16x1xf32>
    %386 = math.rsqrt %385 : vector<16x1xf32>
    %387 = vector.broadcast %386 : vector<16x1xf32> to vector<16x32xf32>
    %388 = arith.mulf %383, %387 : vector<16x32xf32>
    %c0_323 = arith.constant 0 : index
    %c0_324 = arith.constant 0 : index
    %389 = vector.load %arg13[%c0_323, %c0_324] : memref<1x32xf32, #tpu.memory_space<vmem>>, vector<1x32xf32>
    %390 = vector.broadcast %389 : vector<1x32xf32> to vector<16x32xf32>
    %391 = arith.mulf %388, %390 : vector<16x32xf32>
    %c0_325 = arith.constant 0 : index
    %c0_326 = arith.constant 0 : index
    %392 = vector.load %arg14[%c0_325, %c0_326] : memref<1x32xf32, #tpu.memory_space<vmem>>, vector<1x32xf32>
    %393 = vector.broadcast %392 : vector<1x32xf32> to vector<16x32xf32>
    %394 = arith.addf %391, %393 : vector<16x32xf32>
    %cst_327 = arith.constant dense<0.000000e+00> : vector<32xf32>
    %395 = vector.multi_reduction <add>, %394, %cst_327 [0] : vector<16x32xf32> to vector<32xf32>
    %396 = vector.shape_cast %395 : vector<32xf32> to vector<1x32xf32>
    %cst_328 = arith.constant 1.600000e+01 : f32
    %397 = vector.broadcast %cst_328 : f32 to vector<1x32xf32>
    %398 = arith.divf %396, %397 : vector<1x32xf32>
    %399 = vector.broadcast %398 : vector<1x32xf32> to vector<16x32xf32>
    %400 = arith.subf %394, %399 : vector<16x32xf32>
    %c0_329 = arith.constant 0 : index
    %c0_330 = arith.constant 0 : index
    %c0_331 = arith.constant 0 : index
    %401 = vector.load %arg15[%c0_329, %c0_330, %c0_331] : memref<1x16x32xf32, #tpu.memory_space<vmem>>, vector<1x16x32xf32>
    %402 = vector.shape_cast %401 : vector<1x16x32xf32> to vector<16x32xf32>
    %403 = vector.shape_cast %400 : vector<16x32xf32> to vector<1x16x32xf32>
    tpu.vector_store %arg15[%c0_329, %c0_330, %c0_331], %403 {strides = array<i32>} : memref<1x16x32xf32, #tpu.memory_space<vmem>>, vector<1x16x32xf32>,
    return
  }
  func.func @transform_0(%arg0: i32) -> (i32, i32, i32) {
    %c0_i32 = arith.constant 0 : i32
    %c0_i32_0 = arith.constant 0 : i32
    %c0_i32_1 = arith.constant 0 : i32
    return %arg0, %c0_i32, %c0_i32_0 : i32, i32, i32
  }
  func.func @transform_1(%arg0: i32) -> (i32, i32) {
    %c0_i32 = arith.constant 0 : i32
    %c0_i32_0 = arith.constant 0 : i32
    %c0_i32_1 = arith.constant 0 : i32
    return %c0_i32, %c0_i32_0 : i32, i32
  }
  func.func @transform_2(%arg0: i32) -> (i32, i32, i32, i32) {
    %c0_i32 = arith.constant 0 : i32
    %c0_i32_0 = arith.constant 0 : i32
    %c0_i32_1 = arith.constant 0 : i32
    %c0_i32_2 = arith.constant 0 : i32
    %c0_i32_3 = arith.constant 0 : i32
    return %c0_i32, %c0_i32_0, %c0_i32_1, %c0_i32_2 : i32, i32, i32, i32
  }
  func.func @transform_3(%arg0: i32) -> (i32, i32, i32, i32) {
    %c0_i32 = arith.constant 0 : i32
    %c0_i32_0 = arith.constant 0 : i32
    %c0_i32_1 = arith.constant 0 : i32
    %c0_i32_2 = arith.constant 0 : i32
    %c0_i32_3 = arith.constant 0 : i32
    return %c0_i32, %c0_i32_0, %c0_i32_1, %c0_i32_2 : i32, i32, i32, i32
  }
  func.func @transform_4(%arg0: i32) -> (i32, i32, i32, i32) {
    %c0_i32 = arith.constant 0 : i32
    %c0_i32_0 = arith.constant 0 : i32
    %c0_i32_1 = arith.constant 0 : i32
    %c0_i32_2 = arith.constant 0 : i32
    %c0_i32_3 = arith.constant 0 : i32
    return %c0_i32, %c0_i32_0, %c0_i32_1, %c0_i32_2 : i32, i32, i32, i32
  }
  func.func @transform_5(%arg0: i32) -> (i32, i32, i32, i32) {
    %c0_i32 = arith.constant 0 : i32
    %c0_i32_0 = arith.constant 0 : i32
    %c0_i32_1 = arith.constant 0 : i32
    %c0_i32_2 = arith.constant 0 : i32
    %c0_i32_3 = arith.constant 0 : i32
    return %c0_i32, %c0_i32_0, %c0_i32_1, %c0_i32_2 : i32, i32, i32, i32
  }
  func.func @transform_6(%arg0: i32) -> (i32, i32, i32, i32) {
    %c0_i32 = arith.constant 0 : i32
    %c0_i32_0 = arith.constant 0 : i32
    %c0_i32_1 = arith.constant 0 : i32
    %c0_i32_2 = arith.constant 0 : i32
    %c0_i32_3 = arith.constant 0 : i32
    return %c0_i32, %c0_i32_0, %c0_i32_1, %c0_i32_2 : i32, i32, i32, i32
  }
  func.func @transform_7(%arg0: i32) -> (i32, i32, i32, i32) {
    %c0_i32 = arith.constant 0 : i32
    %c0_i32_0 = arith.constant 0 : i32
    %c0_i32_1 = arith.constant 0 : i32
    %c0_i32_2 = arith.constant 0 : i32
    %c0_i32_3 = arith.constant 0 : i32
    return %c0_i32, %c0_i32_0, %c0_i32_1, %c0_i32_2 : i32, i32, i32, i32
  }
  func.func @transform_8(%arg0: i32) -> (i32, i32, i32, i32) {
    %c0_i32 = arith.constant 0 : i32
    %c0_i32_0 = arith.constant 0 : i32
    %c0_i32_1 = arith.constant 0 : i32
    %c0_i32_2 = arith.constant 0 : i32
    %c0_i32_3 = arith.constant 0 : i32
    return %c0_i32, %c0_i32_0, %c0_i32_1, %c0_i32_2 : i32, i32, i32, i32
  }
  func.func @transform_9(%arg0: i32) -> (i32, i32, i32) {
    %c0_i32 = arith.constant 0 : i32
    %c0_i32_0 = arith.constant 0 : i32
    %c0_i32_1 = arith.constant 0 : i32
    %c0_i32_2 = arith.constant 0 : i32
    return %c0_i32, %c0_i32_0, %c0_i32_1 : i32, i32, i32
  }
  func.func @transform_10(%arg0: i32) -> (i32, i32, i32) {
    %c0_i32 = arith.constant 0 : i32
    %c0_i32_0 = arith.constant 0 : i32
    %c0_i32_1 = arith.constant 0 : i32
    %c0_i32_2 = arith.constant 0 : i32
    return %c0_i32, %c0_i32_0, %c0_i32_1 : i32, i32, i32
  }
  func.func @transform_11(%arg0: i32) -> (i32, i32, i32) {
    %c0_i32 = arith.constant 0 : i32
    %c0_i32_0 = arith.constant 0 : i32
    %c0_i32_1 = arith.constant 0 : i32
    %c0_i32_2 = arith.constant 0 : i32
    return %c0_i32, %c0_i32_0, %c0_i32_1 : i32, i32, i32
  }
  func.func @transform_12(%arg0: i32) -> (i32, i32) {
    %c0_i32 = arith.constant 0 : i32
    %c0_i32_0 = arith.constant 0 : i32
    %c0_i32_1 = arith.constant 0 : i32
    return %c0_i32, %c0_i32_0 : i32, i32
  }
  func.func @transform_13(%arg0: i32) -> (i32, i32) {
    %c0_i32 = arith.constant 0 : i32
    %c0_i32_0 = arith.constant 0 : i32
    %c0_i32_1 = arith.constant 0 : i32
    return %c0_i32, %c0_i32_0 : i32, i32
  }
  func.func @transform_14(%arg0: i32) -> (i32, i32, i32) {
    %c0_i32 = arith.constant 0 : i32
    %c0_i32_0 = arith.constant 0 : i32
    %c0_i32_1 = arith.constant 0 : i32
    return %arg0, %c0_i32, %c0_i32_0 : i32, i32, i32
  }
}

</mosaic_0001>

<llo_original>
// kernel: tpu_custom_call.1
$region0: #{tpu_custom_call.1}
  #allocation0 [shape = 'u32[]', space=smem, size = 0x4, offset = 0x4, fixed_abs, tag = 'smem constant byte address 0x4 - core index']
  #allocation1 [shape = 'u32[144,128]{1,0:T(1,128)}', space=vmem, size = 0x12000, scoped, tag = 'internal scratch']
  %s0 = inlined_call_operand.vmem [shape: f32[2,16,32], index: 0, kind: input, shape index: {}]
  %s1 = inlined_call_operand.vmem [shape: f32[16,16], index: 1, kind: input, shape index: {}]
  %s2 = inlined_call_operand.vmem [shape: bf16[2,4,32,8], index: 2, kind: input, shape index: {}]
  %s3 = inlined_call_operand.vmem [shape: f32[2,4,1,8], index: 3, kind: input, shape index: {}]
  %s4 = inlined_call_operand.vmem [shape: bf16[2,4,32,8], index: 4, kind: input, shape index: {}]
  %s5 = inlined_call_operand.vmem [shape: f32[2,4,1,8], index: 5, kind: input, shape index: {}]
  %s6 = inlined_call_operand.vmem [shape: bf16[2,4,32,8], index: 6, kind: input, shape index: {}]
  %s7 = inlined_call_operand.vmem [shape: f32[2,4,1,8], index: 7, kind: input, shape index: {}]
  %s8 = inlined_call_operand.vmem [shape: bf16[2,4,8,32], index: 8, kind: input, shape index: {}]
  %s9 = inlined_call_operand.vmem [shape: f32[2,1,32], index: 9, kind: input, shape index: {}]
  %s10 = inlined_call_operand.vmem [shape: bf16[2,32,64], index: 10, kind: input, shape index: {}]
  %s11 = inlined_call_operand.vmem [shape: bf16[2,64,32], index: 11, kind: input, shape index: {}]
  %s12 = inlined_call_operand.vmem [shape: f32[1,32], index: 12, kind: input, shape index: {}]
  %s13 = inlined_call_operand.vmem [shape: f32[1,32], index: 13, kind: input, shape index: {}]
  %s14 = inlined_call_operand.hbm [shape: f32[2,16,32], index: 14, kind: output, shape index: {}]
  %s15 = sld [smem:[#allocation0]]
  $region89: #{tpu_custom_call.1} parent=0
    _
  %s17 = ssub.s32 1, %s15
  %s18 = scalar_select 0, %s17, %s15
  $region1: #{tpu_custom_call.1} parent=0
    #allocation2 [shape = 'u8[16384]{0}', space=vmem, size = 0x4000, scoped, tag = 'output window, operand 0']
    #allocation3 [shape = 's32[2]{0}', space=sflag, size = 0x8, scoped, tag = 'scoped memory for tpu_custom_call.1']
    %19 = vsyncpa [#allocation3], 0
    %s20 = scalar_lea.sflag [#allocation3], 1
    %21 = vsyncpa %s20, 0
    loop: start=0, step=1, limit=4
    $region2: #{tpu_custom_call.1} parent=1 // loop_pre_header
      _
    $region3: #{tpu_custom_call.1} parent=1 // loop_header
      %s23 = sphi 0, %s27
      %p24 = scmp.ge.s32.totalorder %s23, 4
      %s33 = sphi 0, %s35
      %s36 = sphi 0, %s33
      %s37 = sphi 0, %s36
      %s53 = sphi 0, %s37
      %s57 = sphi 0, %s57
      %s59 = sphi 0, %s57
      %s60 = sphi 0, %s59
      %s74 = sphi 0, %s60
      %s78 = sphi 0, %s78
      %s80 = sphi 0, %s78
      %s81 = sphi 0, %s80
      %s95 = sphi 0, %s81
      %s99 = sphi 0, %s99
      %s101 = sphi 0, %s99
      %s102 = sphi 0, %s101
      %s116 = sphi 0, %s102
      %s120 = sphi 0, %s120
      %s122 = sphi 0, %s120
      %s123 = sphi 0, %s122
      %s137 = sphi 0, %s123
      %s141 = sphi 0, %s141
      %s143 = sphi 0, %s141
      %s144 = sphi 0, %s143
      %s158 = sphi 0, %s144
      %s162 = sphi 0, %s162
      %s164 = sphi 0, %s162
      %s165 = sphi 0, %s164
      %s179 = sphi 0, %s165
      %s183 = sphi 0, %s183
      %s185 = sphi 0, %s183
      %s186 = sphi 0, %s185
      %s200 = sphi 0, %s186
      %s204 = sphi 0, %s204
      %s206 = sphi 0, %s204
      %s207 = sphi 0, %s206
      %s221 = sphi 0, %s207
      %s225 = sphi 0, %s225
      %s227 = sphi 0, %s225
      %s228 = sphi 0, %s227
      %s242 = sphi 0, %s228
      %s246 = sphi 0, %s246
      %s248 = sphi 0, %s246
      %s249 = sphi 0, %s248
      %s263 = sphi 0, %s249
      %s267 = sphi 0, %s267
      %s269 = sphi 0, %s267
      %s270 = sphi 0, %s269
      %s284 = sphi 0, %s270
      %s288 = sphi 0, %s288
      %s290 = sphi 0, %s288
      %s291 = sphi 0, %s290
      %s305 = sphi 0, %s291
      %s309 = sphi 0, %s309
      %s311 = sphi 0, %s309
      %s312 = sphi 0, %s311
      %s326 = sphi 0, %s312
      %s332 = sphi 0, %s334
      %s335 = sphi 0, %s332
      %s336 = sphi 0, %s335
      %s352 = sphi 0, %s336
    $region4: #{tpu_custom_call.1} parent=1 // loop_header_branch
      %26 = sbr.rel (%p24) target = $region8
    $region5: #{tpu_custom_call.1} parent=1 // loop_body
      %s28 = ssub.s32 %s23, 1
      %s29 = ssub.s32 %s23, 2
      %s30 = sadd.s32 %s23, 1
      %s31 = ssub.s32 %s23, %s30
      %p32 = scmp.eq.s32.totalorder %s31, 0
      %s34 = sadd.s32 %s33, 1
      %s35 = scalar_select %p32, %s33, %s34
      %p38 = pneg %p32
      %p39 = scmp.eq.s32.totalorder %s23, 1
      %p40 = por %p38, %p39
      %p41 = scmp.ne.s32.totalorder %s33, %s36
      %p42 = scmp.eq.s32.totalorder %s23, 0
      %p43 = por %p41, %p42
      %p44 = scmp.ne.s32.totalorder %s33, %s36
      %p45 = scmp.eq.s32.totalorder %s28, 1
      %p46 = por %p44, %p45
      %p47 = scmp.ne.s32.totalorder %s36, %s37
      %p48 = scmp.eq.s32.totalorder %s28, 0
      %p49 = por %p47, %p48
      %p50 = scmp.ne.s32.totalorder %s36, %s37
      %p51 = scmp.eq.s32.totalorder %s29, 1
      %p52 = por %p50, %p51
      %p54 = scmp.ne.s32.totalorder %s37, %s53
      %p55 = scmp.eq.s32.totalorder %s29, 0
      %p56 = por %p54, %p55
      %s58 = sadd.s32 %s57, 1
      %p61 = scmp.eq.s32.totalorder %s23, 1
      %p62 = scmp.ne.s32.totalorder %s57, %s59
      %p63 = scmp.eq.s32.totalorder %s23, 0
      %p64 = por %p62, %p63
      %p65 = scmp.ne.s32.totalorder %s57, %s59
      %p66 = scmp.eq.s32.totalorder %s28, 1
      %p67 = por %p65, %p66
      %p68 = scmp.ne.s32.totalorder %s59, %s60
      %p69 = scmp.eq.s32.totalorder %s28, 0
      %p70 = por %p68, %p69
      %p71 = scmp.ne.s32.totalorder %s59, %s60
      %p72 = scmp.eq.s32.totalorder %s29, 1
      %p73 = por %p71, %p72
      %p75 = scmp.ne.s32.totalorder %s60, %s74
      %p76 = scmp.eq.s32.totalorder %s29, 0
      %p77 = por %p75, %p76
      %s79 = sadd.s32 %s78, 1
      %p82 = scmp.eq.s32.totalorder %s23, 1
      %p83 = scmp.ne.s32.totalorder %s78, %s80
      %p84 = scmp.eq.s32.totalorder %s23, 0
      %p85 = por %p83, %p84
      %p86 = scmp.ne.s32.totalorder %s78, %s80
      %p87 = scmp.eq.s32.totalorder %s28, 1
      %p88 = por %p86, %p87
      %p89 = scmp.ne.s32.totalorder %s80, %s81
      %p90 = scmp.eq.s32.totalorder %s28, 0
      %p91 = por %p89, %p90
      %p92 = scmp.ne.s32.totalorder %s80, %s81
      %p93 = scmp.eq.s32.totalorder %s29, 1
      %p94 = por %p92, %p93
      %p96 = scmp.ne.s32.totalorder %s81, %s95
      %p97 = scmp.eq.s32.totalorder %s29, 0
      %p98 = por %p96, %p97
      %s100 = sadd.s32 %s99, 1
      %p103 = scmp.eq.s32.totalorder %s23, 1
      %p104 = scmp.ne.s32.totalorder %s99, %s101
      %p105 = scmp.eq.s32.totalorder %s23, 0
      %p106 = por %p104, %p105
      %p107 = scmp.ne.s32.totalorder %s99, %s101
      %p108 = scmp.eq.s32.totalorder %s28, 1
      %p109 = por %p107, %p108
      %p110 = scmp.ne.s32.totalorder %s101, %s102
      %p111 = scmp.eq.s32.totalorder %s28, 0
      %p112 = por %p110, %p111
      %p113 = scmp.ne.s32.totalorder %s101, %s102
      %p114 = scmp.eq.s32.totalorder %s29, 1
      %p115 = por %p113, %p114
      %p117 = scmp.ne.s32.totalorder %s102, %s116
      %p118 = scmp.eq.s32.totalorder %s29, 0
      %p119 = por %p117, %p118
      %s121 = sadd.s32 %s120, 1
      %p124 = scmp.eq.s32.totalorder %s23, 1
      %p125 = scmp.ne.s32.totalorder %s120, %s122
      %p126 = scmp.eq.s32.totalorder %s23, 0
      %p127 = por %p125, %p126
      %p128 = scmp.ne.s32.totalorder %s120, %s122
      %p129 = scmp.eq.s32.totalorder %s28, 1
      %p130 = por %p128, %p129
      %p131 = scmp.ne.s32.totalorder %s122, %s123
      %p132 = scmp.eq.s32.totalorder %s28, 0
      %p133 = por %p131, %p132
      %p134 = scmp.ne.s32.totalorder %s122, %s123
      %p135 = scmp.eq.s32.totalorder %s29, 1
      %p136 = por %p134, %p135
      %p138 = scmp.ne.s32.totalorder %s123, %s137
      %p139 = scmp.eq.s32.totalorder %s29, 0
      %p140 = por %p138, %p139
      %s142 = sadd.s32 %s141, 1
      %p145 = scmp.eq.s32.totalorder %s23, 1
      %p146 = scmp.ne.s32.totalorder %s141, %s143
      %p147 = scmp.eq.s32.totalorder %s23, 0
      %p148 = por %p146, %p147
      %p149 = scmp.ne.s32.totalorder %s141, %s143
      %p150 = scmp.eq.s32.totalorder %s28, 1
      %p151 = por %p149, %p150
      %p152 = scmp.ne.s32.totalorder %s143, %s144
      %p153 = scmp.eq.s32.totalorder %s28, 0
      %p154 = por %p152, %p153
      %p155 = scmp.ne.s32.totalorder %s143, %s144
      %p156 = scmp.eq.s32.totalorder %s29, 1
      %p157 = por %p155, %p156
      %p159 = scmp.ne.s32.totalorder %s144, %s158
      %p160 = scmp.eq.s32.totalorder %s29, 0
      %p161 = por %p159, %p160
      %s163 = sadd.s32 %s162, 1
      %p166 = scmp.eq.s32.totalorder %s23, 1
      %p167 = scmp.ne.s32.totalorder %s162, %s164
      %p168 = scmp.eq.s32.totalorder %s23, 0
      %p169 = por %p167, %p168
      %p170 = scmp.ne.s32.totalorder %s162, %s164
      %p171 = scmp.eq.s32.totalorder %s28, 1
      %p172 = por %p170, %p171
      %p173 = scmp.ne.s32.totalorder %s164, %s165
      %p174 = scmp.eq.s32.totalorder %s28, 0
      %p175 = por %p173, %p174
      %p176 = scmp.ne.s32.totalorder %s164, %s165
      %p177 = scmp.eq.s32.totalorder %s29, 1
      %p178 = por %p176, %p177
      %p180 = scmp.ne.s32.totalorder %s165, %s179
      %p181 = scmp.eq.s32.totalorder %s29, 0
      %p182 = por %p180, %p181
      %s184 = sadd.s32 %s183, 1
      %p187 = scmp.eq.s32.totalorder %s23, 1
      %p188 = scmp.ne.s32.totalorder %s183, %s185
      %p189 = scmp.eq.s32.totalorder %s23, 0
      %p190 = por %p188, %p189
      %p191 = scmp.ne.s32.totalorder %s183, %s185
      %p192 = scmp.eq.s32.totalorder %s28, 1
      %p193 = por %p191, %p192
      %p194 = scmp.ne.s32.totalorder %s185, %s186
      %p195 = scmp.eq.s32.totalorder %s28, 0
      %p196 = por %p194, %p195
      %p197 = scmp.ne.s32.totalorder %s185, %s186
      %p198 = scmp.eq.s32.totalorder %s29, 1
      %p199 = por %p197, %p198
      %p201 = scmp.ne.s32.totalorder %s186, %s200
      %p202 = scmp.eq.s32.totalorder %s29, 0
      %p203 = por %p201, %p202
      %s205 = sadd.s32 %s204, 1
      %p208 = scmp.eq.s32.totalorder %s23, 1
      %p209 = scmp.ne.s32.totalorder %s204, %s206
      %p210 = scmp.eq.s32.totalorder %s23, 0
      %p211 = por %p209, %p210
      %p212 = scmp.ne.s32.totalorder %s204, %s206
      %p213 = scmp.eq.s32.totalorder %s28, 1
      %p214 = por %p212, %p213
      %p215 = scmp.ne.s32.totalorder %s206, %s207
      %p216 = scmp.eq.s32.totalorder %s28, 0
      %p217 = por %p215, %p216
      %p218 = scmp.ne.s32.totalorder %s206, %s207
      %p219 = scmp.eq.s32.totalorder %s29, 1
      %p220 = por %p218, %p219
      %p222 = scmp.ne.s32.totalorder %s207, %s221
      %p223 = scmp.eq.s32.totalorder %s29, 0
      %p224 = por %p222, %p223
      %s226 = sadd.s32 %s225, 1
      %p229 = scmp.eq.s32.totalorder %s23, 1
      %p230 = scmp.ne.s32.totalorder %s225, %s227
      %p231 = scmp.eq.s32.totalorder %s23, 0
      %p232 = por %p230, %p231
      %p233 = scmp.ne.s32.totalorder %s225, %s227
      %p234 = scmp.eq.s32.totalorder %s28, 1
      %p235 = por %p233, %p234
      %p236 = scmp.ne.s32.totalorder %s227, %s228
      %p237 = scmp.eq.s32.totalorder %s28, 0
      %p238 = por %p236, %p237
      %p239 = scmp.ne.s32.totalorder %s227, %s228
      %p240 = scmp.eq.s32.totalorder %s29, 1
      %p241 = por %p239, %p240
      %p243 = scmp.ne.s32.totalorder %s228, %s242
      %p244 = scmp.eq.s32.totalorder %s29, 0
      %p245 = por %p243, %p244
      %s247 = sadd.s32 %s246, 1
      %p250 = scmp.eq.s32.totalorder %s23, 1
      %p251 = scmp.ne.s32.totalorder %s246, %s248
      %p252 = scmp.eq.s32.totalorder %s23, 0
      %p253 = por %p251, %p252
      %p254 = scmp.ne.s32.totalorder %s246, %s248
      %p255 = scmp.eq.s32.totalorder %s28, 1
      %p256 = por %p254, %p255
      %p257 = scmp.ne.s32.totalorder %s248, %s249
      %p258 = scmp.eq.s32.totalorder %s28, 0
      %p259 = por %p257, %p258
      %p260 = scmp.ne.s32.totalorder %s248, %s249
      %p261 = scmp.eq.s32.totalorder %s29, 1
      %p262 = por %p260, %p261
      %p264 = scmp.ne.s32.totalorder %s249, %s263
      %p265 = scmp.eq.s32.totalorder %s29, 0
      %p266 = por %p264, %p265
      %s268 = sadd.s32 %s267, 1
      %p271 = scmp.eq.s32.totalorder %s23, 1
      %p272 = scmp.ne.s32.totalorder %s267, %s269
      %p273 = scmp.eq.s32.totalorder %s23, 0
      %p274 = por %p272, %p273
      %p275 = scmp.ne.s32.totalorder %s267, %s269
      %p276 = scmp.eq.s32.totalorder %s28, 1
      %p277 = por %p275, %p276
      %p278 = scmp.ne.s32.totalorder %s269, %s270
      %p279 = scmp.eq.s32.totalorder %s28, 0
      %p280 = por %p278, %p279
      %p281 = scmp.ne.s32.totalorder %s269, %s270
      %p282 = scmp.eq.s32.totalorder %s29, 1
      %p283 = por %p281, %p282
      %p285 = scmp.ne.s32.totalorder %s270, %s284
      %p286 = scmp.eq.s32.totalorder %s29, 0
      %p287 = por %p285, %p286
      %s289 = sadd.s32 %s288, 1
      %p292 = scmp.eq.s32.totalorder %s23, 1
      %p293 = scmp.ne.s32.totalorder %s288, %s290
      %p294 = scmp.eq.s32.totalorder %s23, 0
      %p295 = por %p293, %p294
      %p296 = scmp.ne.s32.totalorder %s288, %s290
      %p297 = scmp.eq.s32.totalorder %s28, 1
      %p298 = por %p296, %p297
      %p299 = scmp.ne.s32.totalorder %s290, %s291
      %p300 = scmp.eq.s32.totalorder %s28, 0
      %p301 = por %p299, %p300
      %p302 = scmp.ne.s32.totalorder %s290, %s291
      %p303 = scmp.eq.s32.totalorder %s29, 1
      %p304 = por %p302, %p303
      %p306 = scmp.ne.s32.totalorder %s291, %s305
      %p307 = scmp.eq.s32.totalorder %s29, 0
      %p308 = por %p306, %p307
      %s310 = sadd.s32 %s309, 1
      %p313 = scmp.eq.s32.totalorder %s23, 1
      %p314 = scmp.ne.s32.totalorder %s309, %s311
      %p315 = scmp.eq.s32.totalorder %s23, 0
      %p316 = por %p314, %p315
      %p317 = scmp.ne.s32.totalorder %s309, %s311
      %p318 = scmp.eq.s32.totalorder %s28, 1
      %p319 = por %p317, %p318
      %p320 = scmp.ne.s32.totalorder %s311, %s312
      %p321 = scmp.eq.s32.totalorder %s28, 0
      %p322 = por %p320, %p321
      %p323 = scmp.ne.s32.totalorder %s311, %s312
      %p324 = scmp.eq.s32.totalorder %s29, 1
      %p325 = por %p323, %p324
      %p327 = scmp.ne.s32.totalorder %s312, %s326
      %p328 = scmp.eq.s32.totalorder %s29, 0
      %p329 = por %p327, %p328
      %s330 = ssub.s32 %s23, %s30
      %p331 = scmp.eq.s32.totalorder %s330, 0
      %s333 = sadd.s32 %s332, 1
      %s334 = scalar_select %p331, %s332, %s333
      %p337 = pneg %p331
      %p338 = scmp.eq.s32.totalorder %s23, 1
      %p339 = por %p337, %p338
      %p340 = scmp.ne.s32.totalorder %s332, %s335
      %p341 = scmp.eq.s32.totalorder %s23, 0
      %p342 = por %p340, %p341
      %p343 = scmp.ne.s32.totalorder %s332, %s335
      %p344 = scmp.eq.s32.totalorder %s28, 1
      %p345 = por %p343, %p344
      %p346 = scmp.ne.s32.totalorder %s335, %s336
      %p347 = scmp.eq.s32.totalorder %s28, 0
      %p348 = por %p346, %p347
      %p349 = scmp.ne.s32.totalorder %s335, %s336
      %p350 = scmp.eq.s32.totalorder %s29, 1
      %p351 = por %p349, %p350
      %p353 = scmp.ne.s32.totalorder %s336, %s352
      %p354 = scmp.eq.s32.totalorder %s29, 0
      %p355 = por %p353, %p354
      %p356 = scmp.le.s32.totalorder 1, %s23
      %p357 = scmp.lt.s32.totalorder %s23, 3
      %p358 = pnand %p356, %p357
      %p359 = pneg %p358
      // Predicated region
      $region9: #{tpu_custom_call.1} parent=5 // pred_check
        _
      $region10: #{tpu_custom_call.1} parent=5 // pred_check_branch
        %361 = sbr.rel (%p358) target = $region12
      $region11: #{tpu_custom_call.1} parent=5 // pred_region
        %s362 = ssub.s32 %s23, 1
        // Predicated region
        $region13: #{tpu_custom_call.1} parent=11 // pred_check
          %p363 = pneg %p70
        $region14: #{tpu_custom_call.1} parent=11 // pred_check_branch
          %365 = sbr.rel (%p363) target = $region16
        $region15: #{tpu_custom_call.1} parent=11 // pred_region
          _
        $region16: #{tpu_custom_call.1} parent=11 // pred_fallthru
          _
        // Predicated region
        $region17: #{tpu_custom_call.1} parent=11 // pred_check
          %p366 = pneg %p91
        $region18: #{tpu_custom_call.1} parent=11 // pred_check_branch
          %368 = sbr.rel (%p366) target = $region20
        $region19: #{tpu_custom_call.1} parent=11 // pred_region
          _
        $region20: #{tpu_custom_call.1} parent=11 // pred_fallthru
          _
        // Predicated region
        $region21: #{tpu_custom_call.1} parent=11 // pred_check
          %p369 = pneg %p112
        $region22: #{tpu_custom_call.1} parent=11 // pred_check_branch
          %371 = sbr.rel (%p369) target = $region24
        $region23: #{tpu_custom_call.1} parent=11 // pred_region
          _
        $region24: #{tpu_custom_call.1} parent=11 // pred_fallthru
          _
        // Predicated region
        $region25: #{tpu_custom_call.1} parent=11 // pred_check
          %p372 = pneg %p133
        $region26: #{tpu_custom_call.1} parent=11 // pred_check_branch
          %374 = sbr.rel (%p372) target = $region28
        $region27: #{tpu_custom_call.1} parent=11 // pred_region
          _
        $region28: #{tpu_custom_call.1} parent=11 // pred_fallthru
          _
        // Predicated region
        $region29: #{tpu_custom_call.1} parent=11 // pred_check
          %p375 = pneg %p154
        $region30: #{tpu_custom_call.1} parent=11 // pred_check_branch
          %377 = sbr.rel (%p375) target = $region32
        $region31: #{tpu_custom_call.1} parent=11 // pred_region
          _
        $region32: #{tpu_custom_call.1} parent=11 // pred_fallthru
          _
        // Predicated region
        $region33: #{tpu_custom_call.1} parent=11 // pred_check
          %p378 = pneg %p175
        $region34: #{tpu_custom_call.1} parent=11 // pred_check_branch
          %380 = sbr.rel (%p378) target = $region36
        $region35: #{tpu_custom_call.1} parent=11 // pred_region
          _
        $region36: #{tpu_custom_call.1} parent=11 // pred_fallthru
          _
        // Predicated region
        $region37: #{tpu_custom_call.1} parent=11 // pred_check
          %p381 = pneg %p196
        $region38: #{tpu_custom_call.1} parent=11 // pred_check_branch
          %383 = sbr.rel (%p381) target = $region40
        $region39: #{tpu_custom_call.1} parent=11 // pred_region
          _
        $region40: #{tpu_custom_call.1} parent=11 // pred_fallthru
          _
        // Predicated region
        $region41: #{tpu_custom_call.1} parent=11 // pred_check
          %p384 = pneg %p217
        $region42: #{tpu_custom_call.1} parent=11 // pred_check_branch
          %386 = sbr.rel (%p384) target = $region44
        $region43: #{tpu_custom_call.1} parent=11 // pred_region
          _
        $region44: #{tpu_custom_call.1} parent=11 // pred_fallthru
          _
        // Predicated region
        $region45: #{tpu_custom_call.1} parent=11 // pred_check
          %p387 = pneg %p238
        $region46: #{tpu_custom_call.1} parent=11 // pred_check_branch
          %389 = sbr.rel (%p387) target = $region48
        $region47: #{tpu_custom_call.1} parent=11 // pred_region
          _
        $region48: #{tpu_custom_call.1} parent=11 // pred_fallthru
          _
        // Predicated region
        $region49: #{tpu_custom_call.1} parent=11 // pred_check
          %p390 = pneg %p259
        $region50: #{tpu_custom_call.1} parent=11 // pred_check_branch
          %392 = sbr.rel (%p390) target = $region52
        $region51: #{tpu_custom_call.1} parent=11 // pred_region
          _
        $region52: #{tpu_custom_call.1} parent=11 // pred_fallthru
          _
        // Predicated region
        $region53: #{tpu_custom_call.1} parent=11 // pred_check
          %p393 = pneg %p280
        $region54: #{tpu_custom_call.1} parent=11 // pred_check_branch
          %395 = sbr.rel (%p393) target = $region56
        $region55: #{tpu_custom_call.1} parent=11 // pred_region
          _
        $region56: #{tpu_custom_call.1} parent=11 // pred_fallthru
          _
        // Predicated region
        $region57: #{tpu_custom_call.1} parent=11 // pred_check
          %p396 = pneg %p301
        $region58: #{tpu_custom_call.1} parent=11 // pred_check_branch
          %398 = sbr.rel (%p396) target = $region60
        $region59: #{tpu_custom_call.1} parent=11 // pred_region
          _
        $region60: #{tpu_custom_call.1} parent=11 // pred_fallthru
          _
        // Predicated region
        $region61: #{tpu_custom_call.1} parent=11 // pred_check
          %p399 = pneg %p322
        $region62: #{tpu_custom_call.1} parent=11 // pred_check_branch
          %401 = sbr.rel (%p399) target = $region64
        $region63: #{tpu_custom_call.1} parent=11 // pred_region
          _
        $region64: #{tpu_custom_call.1} parent=11 // pred_fallthru
          _
      $region12: #{tpu_custom_call.1} parent=5 // pred_fallthru
        _
      %p402 = scmp.lt.s32.totalorder %s23, 2
      // Predicated region
      $region65: #{tpu_custom_call.1} parent=5 // pred_check
        %p403 = pneg %p402
      $region66: #{tpu_custom_call.1} parent=5 // pred_check_branch
        %405 = sbr.rel (%p403) target = $region68
      $region67: #{tpu_custom_call.1} parent=5 // pred_region
        // Predicated region
        $region69: #{tpu_custom_call.1} parent=67 // pred_check
          %p406 = pneg %p43
        $region70: #{tpu_custom_call.1} parent=67 // pred_check_branch
          %408 = sbr.rel (%p406) target = $region72
        $region71: #{tpu_custom_call.1} parent=67 // pred_region
          %p409 = scmp.lt.s32.totalorder %s23, 1
          %s410 = scalar_select %p409, %s23, 1
          %s411 = smul.addr %s410, 2
          %s412 = smul.addr %s411, 8
          %s413 = scalar_lea.vmem %s0, %s412
        $region72: #{tpu_custom_call.1} parent=67 // pred_fallthru
          _
      $region68: #{tpu_custom_call.1} parent=5 // pred_fallthru
        _
      %p414 = scmp.le.s32.totalorder 1, %s23
      %p415 = scmp.lt.s32.totalorder %s23, 3
      %p416 = pnand %p414, %p415
      %p417 = pneg %p416
      // Predicated region
      $region73: #{tpu_custom_call.1} parent=5 // pred_check
        _
      $region74: #{tpu_custom_call.1} parent=5 // pred_check_branch
        %419 = sbr.rel (%p416) target = $region76
      $region75: #{tpu_custom_call.1} parent=5 // pred_region
        %s420 = ssub.s32 %s23, 1
        %p421 = scmp.lt.s32.totalorder %s28, 1
        %s422 = scalar_select %p421, %s28, 1
        %s423 = smul.addr %s422, 2
        %s424 = smul.addr %s423, 8
        %s425 = scalar_lea.vmem %s0, %s424
        %p426 = pneg %p49
        %p427 = pneg %p46
        %p428 = pneg %p70
        %p429 = pneg %p67
        %p430 = pneg %p91
        %p431 = pneg %p88
        %p432 = pneg %p112
        %p433 = pneg %p109
        %p434 = pneg %p133
        %p435 = pneg %p130
        %p436 = pneg %p154
        %p437 = pneg %p151
        %p438 = pneg %p175
        %p439 = pneg %p172
        %p440 = pneg %p196
        %p441 = pneg %p193
        %p442 = pneg %p217
        %p443 = pneg %p214
        %p444 = pneg %p238
        %p445 = pneg %p235
        %p446 = pneg %p259
        %p447 = pneg %p256
        %p448 = pneg %p280
        %p449 = pneg %p277
        %p450 = pneg %p301
        %p451 = pneg %p298
        %p452 = pneg %p322
        %p453 = pneg %p319
        %p454 = pneg %p348
        %p455 = pneg %p345
        %s456 = sand.u32 %s335, 1
        %s457 = scalar_lea.sflag [#allocation3], %s456
        %s458 = sand.u32 %s335, 1
        %s459 = smul.addr %s458, 16
        %s460 = scalar_lea.vmem [#allocation2], %s459
        %p461 = scmp.lt.s32.totalorder %s28, 1
        %s462 = scalar_select %p461, %s28, 1
        %s463 = smul.addr %s462, 2
        %s464 = smul.addr %s463, 8
        %s465 = scalar_lea.vmem %s0, %s464
        %v467 = vld [vmem:[%s465] sm:$0xff]
        %v468 = vld [vmem:[%s465 + $0x8] sm:$0xff]
        %v469 = vld [vmem:[%s1] sm:$0xff]
        %v470 = vld [vmem:[%s1 + $0x8] sm:$0xff]
        %v471 = vpack.c.bf16 %v468, %v467
        %v472 = vld [vmem:[%s2] sm:$0xf]
        %v473 = vld [vmem:[%s2 + $0x4] sm:$0xf]
        %v474 = vld [vmem:[%s2 + $0x8] sm:$0xf]
        %v475 = vld [vmem:[%s2 + $0xc] sm:$0xf]
        %v476 = vld [vmem:[%s3] sm:$0x1]
        %v478 = vlaneseq
        %v479 = vshrl.u32 %v478, 7
        %v480 = vsub.s32 0, %v479
        %v481 = vrot.slane %v476, %v480
        %v487 = vunpack.c.l.b16 %v472
        %v488 = vunpack.c.l.b16 %v473
        %v489 = vunpack.c.l.b16 %v474
        %v490 = vunpack.c.l.b16 %v475
        %v491 = vpack.c.b16 %v488, %v487
        %v492 = vpack.c.b16 %v490, %v489
        %vm495 = vcmask 261120
        %v497 = vsel %vm495, %v471, 0
        %499 = vmatprep.subr.bf16.mxu0 0
        %500 = vmatpush1.bf16.msra.mxu0 %v491
        %501 = vmatprep.subr.bf16.mxu0 0
        %502 = vmatpush1.bf16.msra.mxu0 %v492
        %503 = vmatprep.subr.bf16.mxu0 0
        %504 = vmatpush1.bf16.msra.mxu0 0
        %505 = vmatprep.subr.bf16.mxu0 0
        %506 = vmatpush1.bf16.msra.mxu0 0
        %507 = vmatprep.subr.bf16.mxu0 0
        %508 = vmatpush1.bf16.msra.mxu0 0
        %509 = vmatprep.subr.bf16.mxu0 0
        %510 = vmatpush1.bf16.msra.mxu0 0
        %511 = vmatprep.subr.bf16.mxu0 0
        %512 = vmatpush1.bf16.msra.mxu0 0
        %513 = vmatprep.subr.bf16.mxu0 0
        %514 = vmatpush1.bf16.msra.mxu0 0
        %515 = vmatprep.subr.bf16.mxu0 0
        %516 = vmatpush1.bf16.msra.mxu0 0
        %517 = vmatprep.subr.bf16.mxu0 0
        %518 = vmatpush1.bf16.msra.mxu0 0
        %519 = vmatprep.subr.bf16.mxu0 0
        %520 = vmatpush1.bf16.msra.mxu0 0
        %521 = vmatprep.subr.bf16.mxu0 0
        %522 = vmatpush1.bf16.msra.mxu0 0
        %523 = vmatprep.subr.bf16.mxu0 0
        %524 = vmatpush1.bf16.msra.mxu0 0
        %525 = vmatprep.subr.bf16.mxu0 0
        %526 = vmatpush1.bf16.msra.mxu0 0
        %527 = vmatprep.subr.bf16.mxu0 0
        %528 = vmatpush1.bf16.msra.mxu0 0
        %529 = vmatprep.subr.bf16.mxu0 0
        %530 = vmatpush1.bf16.msra.mxu0 0
        %531 = vmatprep.mubr.bf16.mxu0 0
        %532 = vmatmul.mubr.bf16.gmra.mrb[0].mxu0 %v497
        %v533 = vpop.f32.mrb[0].mxu0
        %v534 = vadd.f32 %v481, %v533
        %v535 = vpop.f32.mrb[0].mxu0
        %v536 = vpop.f32.mrb[0].mxu0
        %v537 = vadd.f32 %v481, %v536
        %v538 = vpop.f32.mrb[0].mxu0
        %539 = vdwg.mxu0
        %v540 = vld [vmem:[%s4] sm:$0xf]
        %v541 = vld [vmem:[%s4 + $0x4] sm:$0xf]
        %v542 = vld [vmem:[%s4 + $0x8] sm:$0xf]
        %v543 = vld [vmem:[%s4 + $0xc] sm:$0xf]
        %v544 = vld [vmem:[%s5] sm:$0x1]
        %v546 = vlaneseq
        %v547 = vshrl.u32 %v546, 7
        %v548 = vsub.s32 0, %v547
        %v549 = vrot.slane %v544, %v548
        %v555 = vunpack.c.l.b16 %v540
        %v556 = vunpack.c.l.b16 %v541
        %v557 = vunpack.c.l.b16 %v542
        %v558 = vunpack.c.l.b16 %v543
        %v559 = vpack.c.b16 %v556, %v555
        %v560 = vpack.c.b16 %v558, %v557
        %563 = vmatprep.subr.bf16.mxu0 0
        %564 = vmatpush1.bf16.msra.mxu0 %v559
        %565 = vmatprep.subr.bf16.mxu0 0
        %566 = vmatpush1.bf16.msra.mxu0 %v560
        %567 = vmatprep.subr.bf16.mxu0 0
        %568 = vmatpush1.bf16.msra.mxu0 0
        %569 = vmatprep.subr.bf16.mxu0 0
        %570 = vmatpush1.bf16.msra.mxu0 0
        %571 = vmatprep.subr.bf16.mxu0 0
        %572 = vmatpush1.bf16.msra.mxu0 0
        %573 = vmatprep.subr.bf16.mxu0 0
        %574 = vmatpush1.bf16.msra.mxu0 0
        %575 = vmatprep.subr.bf16.mxu0 0
        %576 = vmatpush1.bf16.msra.mxu0 0
        %577 = vmatprep.subr.bf16.mxu0 0
        %578 = vmatpush1.bf16.msra.mxu0 0
        %579 = vmatprep.subr.bf16.mxu0 0
        %580 = vmatpush1.bf16.msra.mxu0 0
        %581 = vmatprep.subr.bf16.mxu0 0
        %582 = vmatpush1.bf16.msra.mxu0 0
        %583 = vmatprep.subr.bf16.mxu0 0
        %584 = vmatpush1.bf16.msra.mxu0 0
        %585 = vmatprep.subr.bf16.mxu0 0
        %586 = vmatpush1.bf16.msra.mxu0 0
        %587 = vmatprep.subr.bf16.mxu0 0
        %588 = vmatpush1.bf16.msra.mxu0 0
        %589 = vmatprep.subr.bf16.mxu0 0
        %590 = vmatpush1.bf16.msra.mxu0 0
        %591 = vmatprep.subr.bf16.mxu0 0
        %592 = vmatpush1.bf16.msra.mxu0 0
        %593 = vmatprep.subr.bf16.mxu0 0
        %594 = vmatpush1.bf16.msra.mxu0 0
        %595 = vmatprep.mubr.bf16.mxu0 0
        %596 = vmatmul.mubr.bf16.gmra.mrb[0].mxu0 %v497
        %v597 = vpop.f32.mrb[0].mxu0
        %v598 = vadd.f32 %v549, %v597
        %v599 = vpop.f32.mrb[0].mxu0
        %v600 = vpop.f32.mrb[0].mxu0
        %v601 = vadd.f32 %v549, %v600
        %v602 = vpop.f32.mrb[0].mxu0
        %603 = vdwg.mxu0
        %v604 = vld [vmem:[%s6] sm:$0xf]
        %v605 = vld [vmem:[%s6 + $0x4] sm:$0xf]
        %v606 = vld [vmem:[%s6 + $0x8] sm:$0xf]
        %v607 = vld [vmem:[%s6 + $0xc] sm:$0xf]
        %v608 = vld [vmem:[%s7] sm:$0x1]
        %v610 = vlaneseq
        %v611 = vshrl.u32 %v610, 7
        %v612 = vsub.s32 0, %v611
        %v613 = vrot.slane %v608, %v612
        %v619 = vunpack.c.l.b16 %v604
        %v620 = vunpack.c.l.b16 %v605
        %v621 = vunpack.c.l.b16 %v606
        %v622 = vunpack.c.l.b16 %v607
        %v623 = vpack.c.b16 %v620, %v619
        %v624 = vpack.c.b16 %v622, %v621
        %627 = vmatprep.subr.bf16.mxu0 0
        %628 = vmatpush1.bf16.msra.mxu0 %v623
        %629 = vmatprep.subr.bf16.mxu0 0
        %630 = vmatpush1.bf16.msra.mxu0 %v624
        %631 = vmatprep.subr.bf16.mxu0 0
        %632 = vmatpush1.bf16.msra.mxu0 0
        %633 = vmatprep.subr.bf16.mxu0 0
        %634 = vmatpush1.bf16.msra.mxu0 0
        %635 = vmatprep.subr.bf16.mxu0 0
        %636 = vmatpush1.bf16.msra.mxu0 0
        %637 = vmatprep.subr.bf16.mxu0 0
        %638 = vmatpush1.bf16.msra.mxu0 0
        %639 = vmatprep.subr.bf16.mxu0 0
        %640 = vmatpush1.bf16.msra.mxu0 0
        %641 = vmatprep.subr.bf16.mxu0 0
        %642 = vmatpush1.bf16.msra.mxu0 0
        %643 = vmatprep.subr.bf16.mxu0 0
        %644 = vmatpush1.bf16.msra.mxu0 0
        %645 = vmatprep.subr.bf16.mxu0 0
        %646 = vmatpush1.bf16.msra.mxu0 0
        %647 = vmatprep.subr.bf16.mxu0 0
        %648 = vmatpush1.bf16.msra.mxu0 0
        %649 = vmatprep.subr.bf16.mxu0 0
        %650 = vmatpush1.bf16.msra.mxu0 0
        %651 = vmatprep.subr.bf16.mxu0 0
        %652 = vmatpush1.bf16.msra.mxu0 0
        %653 = vmatprep.subr.bf16.mxu0 0
        %654 = vmatpush1.bf16.msra.mxu0 0
        %655 = vmatprep.subr.bf16.mxu0 0
        %656 = vmatpush1.bf16.msra.mxu0 0
        %657 = vmatprep.subr.bf16.mxu0 0
        %658 = vmatpush1.bf16.msra.mxu0 0
        %659 = vmatprep.mubr.bf16.mxu0 0
        %660 = vmatmul.mubr.bf16.gmra.mrb[0].mxu0 %v497
        %v661 = vpop.f32.mrb[0].mxu0
        %v662 = vadd.f32 %v613, %v661
        %v663 = vpop.f32.mrb[0].mxu0
        %v664 = vpop.f32.mrb[0].mxu0
        %v665 = vadd.f32 %v613, %v664
        %v666 = vpop.f32.mrb[0].mxu0
        %667 = vdwg.mxu0
        %v668 = vpack.c.bf16 %v537, %v534
        %v669 = vpack.c.bf16 %v601, %v598
        %vm670 = vcmask 64512
        %v672 = vsel %vm670, %v668, 0
        %v675 = vsel %vm670, %v669, 0
        %677 = vmatprep.subr.bf16.mxu0 0
        %678 = vmatpush1.bf16.xpose.msra.mxu0 %v675
        %679 = vmatprep.subr.bf16.mxu0 0
        %680 = vmatpush1.bf16.xpose.msra.mxu0 0
        %681 = vmatprep.subr.bf16.mxu0 0
        %682 = vmatpush1.bf16.xpose.msra.mxu0 0
        %683 = vmatprep.subr.bf16.mxu0 0
        %684 = vmatpush1.bf16.xpose.msra.mxu0 0
        %685 = vmatprep.subr.bf16.mxu0 0
        %686 = vmatpush1.bf16.xpose.msra.mxu0 0
        %687 = vmatprep.subr.bf16.mxu0 0
        %688 = vmatpush1.bf16.xpose.msra.mxu0 0
        %689 = vmatprep.subr.bf16.mxu0 0
        %690 = vmatpush1.bf16.xpose.msra.mxu0 0
        %691 = vmatprep.subr.bf16.mxu0 0
        %692 = vmatpush1.bf16.xpose.msra.mxu0 0
        %693 = vmatprep.subr.bf16.mxu0 0
        %694 = vmatpush1.bf16.xpose.msra.mxu0 0
        %695 = vmatprep.subr.bf16.mxu0 0
        %696 = vmatpush1.bf16.xpose.msra.mxu0 0
        %697 = vmatprep.subr.bf16.mxu0 0
        %698 = vmatpush1.bf16.xpose.msra.mxu0 0
        %699 = vmatprep.subr.bf16.mxu0 0
        %700 = vmatpush1.bf16.xpose.msra.mxu0 0
        %701 = vmatprep.subr.bf16.mxu0 0
        %702 = vmatpush1.bf16.xpose.msra.mxu0 0
        %703 = vmatprep.subr.bf16.mxu0 0
        %704 = vmatpush1.bf16.xpose.msra.mxu0 0
        %705 = vmatprep.subr.bf16.mxu0 0
        %706 = vmatpush1.bf16.xpose.msra.mxu0 0
        %707 = vmatprep.subr.bf16.mxu0 0
        %708 = vmatpush1.bf16.xpose.msra.mxu0 0
        %709 = vmatprep.mubr.bf16.mxu0 0
        %710 = vmatmul.mubr.bf16.gmra.mrb[0].mxu0 %v672
        %v711 = vpop.f32.mrb[0].mxu0
        %v712 = vadd.f32 0.0, %v711
        %v713 = vpop.f32.mrb[0].mxu0
        %v714 = vpop.f32.mrb[0].mxu0
        %v715 = vadd.f32 0.0, %v714
        %v716 = vpop.f32.mrb[0].mxu0
        %717 = vdwg.mxu0
        %vm718 = vcmask 130048
        %v719 = vsel %vm718, %v712, -inf
        %720 = vmax.xlane.f32.xlu0 %v719
        %v721 = vpop.xlane.xlu0 %720
        %v722 = vsel %vm718, %v715, -inf
        %723 = vmax.xlane.f32.xlu0 %v722
        %v724 = vpop.xlane.xlu0 %723
        %v725 = vsub.f32 %v712, %v721
        %v726 = vsub.f32 %v715, %v724
        %v727 = vmul.f32 %v725, 1.442695
        %v728 = vpow.pop %v727
        %v729 = vmul.f32 %v726, 1.442695
        %v730 = vpow.pop %v729
        %v731 = vsel %vm718, %v728, 0.0
        %732 = vadd.xlane.f32.xlu0 %v731
        %v733 = vpop.xlane.xlu0 %732
        %v734 = vsel %vm718, %v730, 0.0
        %735 = vadd.xlane.f32.xlu0 %v734
        %v736 = vpop.xlane.xlu0 %735
        %v737 = vrcp.pop %v733
        %v738 = vmul.f32 %v728, %v737
        %v739 = vrcp.pop %v736
        %v740 = vmul.f32 %v730, %v739
        %v741 = vpack.c.bf16 %v740, %v738
        %v742 = vpack.c.bf16 %v665, %v662
        %v744 = vsel %vm718, %v741, 0
        %746 = vmatprep.subr.bf16.mxu0 0
        %747 = vmatpush1.bf16.msra.mxu0 %v742
        %748 = vmatprep.subr.bf16.mxu0 0
        %749 = vmatpush1.bf16.msra.mxu0 0
        %750 = vmatprep.subr.bf16.mxu0 0
        %751 = vmatpush1.bf16.msra.mxu0 0
        %752 = vmatprep.subr.bf16.mxu0 0
        %753 = vmatpush1.bf16.msra.mxu0 0
        %754 = vmatprep.subr.bf16.mxu0 0
        %755 = vmatpush1.bf16.msra.mxu0 0
        %756 = vmatprep.subr.bf16.mxu0 0
        %757 = vmatpush1.bf16.msra.mxu0 0
        %758 = vmatprep.subr.bf16.mxu0 0
        %759 = vmatpush1.bf16.msra.mxu0 0
        %760 = vmatprep.subr.bf16.mxu0 0
        %761 = vmatpush1.bf16.msra.mxu0 0
        %762 = vmatprep.subr.bf16.mxu0 0
        %763 = vmatpush1.bf16.msra.mxu0 0
        %764 = vmatprep.subr.bf16.mxu0 0
        %765 = vmatpush1.bf16.msra.mxu0 0
        %766 = vmatprep.subr.bf16.mxu0 0
        %767 = vmatpush1.bf16.msra.mxu0 0
        %768 = vmatprep.subr.bf16.mxu0 0
        %769 = vmatpush1.bf16.msra.mxu0 0
        %770 = vmatprep.subr.bf16.mxu0 0
        %771 = vmatpush1.bf16.msra.mxu0 0
        %772 = vmatprep.subr.bf16.mxu0 0
        %773 = vmatpush1.bf16.msra.mxu0 0
        %774 = vmatprep.subr.bf16.mxu0 0
        %775 = vmatpush1.bf16.msra.mxu0 0
        %776 = vmatprep.subr.bf16.mxu0 0
        %777 = vmatpush1.bf16.msra.mxu0 0
        %778 = vmatprep.mubr.bf16.mxu0 0
        %779 = vmatmul.mubr.bf16.gmra.mrb[0].mxu0 %v744
        %v780 = vpop.f32.mrb[0].mxu0
        %v781 = vadd.f32 0.0, %v780
        %v782 = vpop.f32.mrb[0].mxu0
        %v783 = vpop.f32.mrb[0].mxu0
        %v784 = vadd.f32 0.0, %v783
        %v785 = vpop.f32.mrb[0].mxu0
        %786 = vdwg.mxu0
        %v787 = vpack.c.bf16 %v784, %v781
        %v788 = vld [vmem:[%s8] sm:$0xf]
        %s789 = scalar_lea.vmem %s2, 16
        %v790 = vld [vmem:[%s789] sm:$0xf]
        %v791 = vld [vmem:[%s789 + $0x4] sm:$0xf]
        %v792 = vld [vmem:[%s789 + $0x8] sm:$0xf]
        %v793 = vld [vmem:[%s789 + $0xc] sm:$0xf]
        %s794 = scalar_lea.vmem %s3, 1
        %v795 = vld [vmem:[%s794] sm:$0x1]
        %v797 = vlaneseq
        %v798 = vshrl.u32 %v797, 7
        %v799 = vsub.s32 0, %v798
        %v800 = vrot.slane %v795, %v799
        %v806 = vunpack.c.l.b16 %v790
        %v807 = vunpack.c.l.b16 %v791
        %v808 = vunpack.c.l.b16 %v792
        %v809 = vunpack.c.l.b16 %v793
        %v810 = vpack.c.b16 %v807, %v806
        %v811 = vpack.c.b16 %v809, %v808
        %814 = vmatprep.subr.bf16.mxu0 0
        %815 = vmatpush1.bf16.msra.mxu0 %v810
        %816 = vmatprep.subr.bf16.mxu0 0
        %817 = vmatpush1.bf16.msra.mxu0 %v811
        %818 = vmatprep.subr.bf16.mxu0 0
        %819 = vmatpush1.bf16.msra.mxu0 0
        %820 = vmatprep.subr.bf16.mxu0 0
        %821 = vmatpush1.bf16.msra.mxu0 0
        %822 = vmatprep.subr.bf16.mxu0 0
        %823 = vmatpush1.bf16.msra.mxu0 0
        %824 = vmatprep.subr.bf16.mxu0 0
        %825 = vmatpush1.bf16.msra.mxu0 0
        %826 = vmatprep.subr.bf16.mxu0 0
        %827 = vmatpush1.bf16.msra.mxu0 0
        %828 = vmatprep.subr.bf16.mxu0 0
        %829 = vmatpush1.bf16.msra.mxu0 0
        %830 = vmatprep.subr.bf16.mxu0 0
        %831 = vmatpush1.bf16.msra.mxu0 0
        %832 = vmatprep.subr.bf16.mxu0 0
        %833 = vmatpush1.bf16.msra.mxu0 0
        %834 = vmatprep.subr.bf16.mxu0 0
        %835 = vmatpush1.bf16.msra.mxu0 0
        %836 = vmatprep.subr.bf16.mxu0 0
        %837 = vmatpush1.bf16.msra.mxu0 0
        %838 = vmatprep.subr.bf16.mxu0 0
        %839 = vmatpush1.bf16.msra.mxu0 0
        %840 = vmatprep.subr.bf16.mxu0 0
        %841 = vmatpush1.bf16.msra.mxu0 0
        %842 = vmatprep.subr.bf16.mxu0 0
        %843 = vmatpush1.bf16.msra.mxu0 0
        %844 = vmatprep.subr.bf16.mxu0 0
        %845 = vmatpush1.bf16.msra.mxu0 0
        %846 = vmatprep.mubr.bf16.mxu0 0
        %847 = vmatmul.mubr.bf16.gmra.mrb[0].mxu0 %v497
        %v848 = vpop.f32.mrb[0].mxu0
        %v849 = vadd.f32 %v800, %v848
        %v850 = vpop.f32.mrb[0].mxu0
        %v851 = vpop.f32.mrb[0].mxu0
        %v852 = vadd.f32 %v800, %v851
        %v853 = vpop.f32.mrb[0].mxu0
        %854 = vdwg.mxu0
        %s855 = scalar_lea.vmem %s4, 16
        %v856 = vld [vmem:[%s855] sm:$0xf]
        %v857 = vld [vmem:[%s855 + $0x4] sm:$0xf]
        %v858 = vld [vmem:[%s855 + $0x8] sm:$0xf]
        %v859 = vld [vmem:[%s855 + $0xc] sm:$0xf]
        %s860 = scalar_lea.vmem %s5, 1
        %v861 = vld [vmem:[%s860] sm:$0x1]
        %v863 = vlaneseq
        %v864 = vshrl.u32 %v863, 7
        %v865 = vsub.s32 0, %v864
        %v866 = vrot.slane %v861, %v865
        %v872 = vunpack.c.l.b16 %v856
        %v873 = vunpack.c.l.b16 %v857
        %v874 = vunpack.c.l.b16 %v858
        %v875 = vunpack.c.l.b16 %v859
        %v876 = vpack.c.b16 %v873, %v872
        %v877 = vpack.c.b16 %v875, %v874
        %880 = vmatprep.subr.bf16.mxu0 0
        %881 = vmatpush1.bf16.msra.mxu0 %v876
        %882 = vmatprep.subr.bf16.mxu0 0
        %883 = vmatpush1.bf16.msra.mxu0 %v877
        %884 = vmatprep.subr.bf16.mxu0 0
        %885 = vmatpush1.bf16.msra.mxu0 0
        %886 = vmatprep.subr.bf16.mxu0 0
        %887 = vmatpush1.bf16.msra.mxu0 0
        %888 = vmatprep.subr.bf16.mxu0 0
        %889 = vmatpush1.bf16.msra.mxu0 0
        %890 = vmatprep.subr.bf16.mxu0 0
        %891 = vmatpush1.bf16.msra.mxu0 0
        %892 = vmatprep.subr.bf16.mxu0 0
        %893 = vmatpush1.bf16.msra.mxu0 0
        %894 = vmatprep.subr.bf16.mxu0 0
        %895 = vmatpush1.bf16.msra.mxu0 0
        %896 = vmatprep.subr.bf16.mxu0 0
        %897 = vmatpush1.bf16.msra.mxu0 0
        %898 = vmatprep.subr.bf16.mxu0 0
        %899 = vmatpush1.bf16.msra.mxu0 0
        %900 = vmatprep.subr.bf16.mxu0 0
        %901 = vmatpush1.bf16.msra.mxu0 0
        %902 = vmatprep.subr.bf16.mxu0 0
        %903 = vmatpush1.bf16.msra.mxu0 0
        %904 = vmatprep.subr.bf16.mxu0 0
        %905 = vmatpush1.bf16.msra.mxu0 0
        %906 = vmatprep.subr.bf16.mxu0 0
        %907 = vmatpush1.bf16.msra.mxu0 0
        %908 = vmatprep.subr.bf16.mxu0 0
        %909 = vmatpush1.bf16.msra.mxu0 0
        %910 = vmatprep.subr.bf16.mxu0 0
        %911 = vmatpush1.bf16.msra.mxu0 0
        %912 = vmatprep.mubr.bf16.mxu0 0
        %913 = vmatmul.mubr.bf16.gmra.mrb[0].mxu0 %v497
        %v914 = vpop.f32.mrb[0].mxu0
        %v915 = vadd.f32 %v866, %v914
        %v916 = vpop.f32.mrb[0].mxu0
        %v917 = vpop.f32.mrb[0].mxu0
        %v918 = vadd.f32 %v866, %v917
        %v919 = vpop.f32.mrb[0].mxu0
        %920 = vdwg.mxu0
        %s921 = scalar_lea.vmem %s6, 16
        %v922 = vld [vmem:[%s921] sm:$0xf]
        %v923 = vld [vmem:[%s921 + $0x4] sm:$0xf]
        %v924 = vld [vmem:[%s921 + $0x8] sm:$0xf]
        %v925 = vld [vmem:[%s921 + $0xc] sm:$0xf]
        %s926 = scalar_lea.vmem %s7, 1
        %v927 = vld [vmem:[%s926] sm:$0x1]
        %v929 = vlaneseq
        %v930 = vshrl.u32 %v929, 7
        %v931 = vsub.s32 0, %v930
        %v932 = vrot.slane %v927, %v931
        %v938 = vunpack.c.l.b16 %v922
        %v939 = vunpack.c.l.b16 %v923
        %v940 = vunpack.c.l.b16 %v924
        %v941 = vunpack.c.l.b16 %v925
        %v942 = vpack.c.b16 %v939, %v938
        %v943 = vpack.c.b16 %v941, %v940
        %946 = vmatprep.subr.bf16.mxu0 0
        %947 = vmatpush1.bf16.msra.mxu0 %v942
        %948 = vmatprep.subr.bf16.mxu0 0
        %949 = vmatpush1.bf16.msra.mxu0 %v943
        %950 = vmatprep.subr.bf16.mxu0 0
        %951 = vmatpush1.bf16.msra.mxu0 0
        %952 = vmatprep.subr.bf16.mxu0 0
        %953 = vmatpush1.bf16.msra.mxu0 0
        %954 = vmatprep.subr.bf16.mxu0 0
        %955 = vmatpush1.bf16.msra.mxu0 0
        %956 = vmatprep.subr.bf16.mxu0 0
        %957 = vmatpush1.bf16.msra.mxu0 0
        %958 = vmatprep.subr.bf16.mxu0 0
        %959 = vmatpush1.bf16.msra.mxu0 0
        %960 = vmatprep.subr.bf16.mxu0 0
        %961 = vmatpush1.bf16.msra.mxu0 0
        %962 = vmatprep.subr.bf16.mxu0 0
        %963 = vmatpush1.bf16.msra.mxu0 0
        %964 = vmatprep.subr.bf16.mxu0 0
        %965 = vmatpush1.bf16.msra.mxu0 0
        %966 = vmatprep.subr.bf16.mxu0 0
        %967 = vmatpush1.bf16.msra.mxu0 0
        %968 = vmatprep.subr.bf16.mxu0 0
        %969 = vmatpush1.bf16.msra.mxu0 0
        %970 = vmatprep.subr.bf16.mxu0 0
        %971 = vmatpush1.bf16.msra.mxu0 0
        %972 = vmatprep.subr.bf16.mxu0 0
        %973 = vmatpush1.bf16.msra.mxu0 0
        %974 = vmatprep.subr.bf16.mxu0 0
        %975 = vmatpush1.bf16.msra.mxu0 0
        %976 = vmatprep.subr.bf16.mxu0 0
        %977 = vmatpush1.bf16.msra.mxu0 0
        %978 = vmatprep.mubr.bf16.mxu0 0
        %979 = vmatmul.mubr.bf16.gmra.mrb[0].mxu0 %v497
        %v980 = vpop.f32.mrb[0].mxu0
        %v981 = vadd.f32 %v932, %v980
        %v982 = vpop.f32.mrb[0].mxu0
        %v983 = vpop.f32.mrb[0].mxu0
        %v984 = vadd.f32 %v932, %v983
        %v985 = vpop.f32.mrb[0].mxu0
        %986 = vdwg.mxu0
        %v987 = vpack.c.bf16 %v852, %v849
        %v988 = vpack.c.bf16 %v918, %v915
        %v990 = vsel %vm670, %v987, 0
        %v993 = vsel %vm670, %v988, 0
        %995 = vmatprep.subr.bf16.mxu0 0
        %996 = vmatpush1.bf16.xpose.msra.mxu0 %v993
        %997 = vmatprep.subr.bf16.mxu0 0
        %998 = vmatpush1.bf16.xpose.msra.mxu0 0
        %999 = vmatprep.subr.bf16.mxu0 0
        %1000 = vmatpush1.bf16.xpose.msra.mxu0 0
        %1001 = vmatprep.subr.bf16.mxu0 0
        %1002 = vmatpush1.bf16.xpose.msra.mxu0 0
        %1003 = vmatprep.subr.bf16.mxu0 0
        %1004 = vmatpush1.bf16.xpose.msra.mxu0 0
        %1005 = vmatprep.subr.bf16.mxu0 0
        %1006 = vmatpush1.bf16.xpose.msra.mxu0 0
        %1007 = vmatprep.subr.bf16.mxu0 0
        %1008 = vmatpush1.bf16.xpose.msra.mxu0 0
        %1009 = vmatprep.subr.bf16.mxu0 0
        %1010 = vmatpush1.bf16.xpose.msra.mxu0 0
        %1011 = vmatprep.subr.bf16.mxu0 0
        %1012 = vmatpush1.bf16.xpose.msra.mxu0 0
        %1013 = vmatprep.subr.bf16.mxu0 0
        %1014 = vmatpush1.bf16.xpose.msra.mxu0 0
        %1015 = vmatprep.subr.bf16.mxu0 0
        %1016 = vmatpush1.bf16.xpose.msra.mxu0 0
        %1017 = vmatprep.subr.bf16.mxu0 0
        %1018 = vmatpush1.bf16.xpose.msra.mxu0 0
        %1019 = vmatprep.subr.bf16.mxu0 0
        %1020 = vmatpush1.bf16.xpose.msra.mxu0 0
        %1021 = vmatprep.subr.bf16.mxu0 0
        %1022 = vmatpush1.bf16.xpose.msra.mxu0 0
        %1023 = vmatprep.subr.bf16.mxu0 0
        %1024 = vmatpush1.bf16.xpose.msra.mxu0 0
        %1025 = vmatprep.subr.bf16.mxu0 0
        %1026 = vmatpush1.bf16.xpose.msra.mxu0 0
        %1027 = vmatprep.mubr.bf16.mxu0 0
        %1028 = vmatmul.mubr.bf16.gmra.mrb[0].mxu0 %v990
        %v1029 = vpop.f32.mrb[0].mxu0
        %v1030 = vadd.f32 0.0, %v1029
        %v1031 = vpop.f32.mrb[0].mxu0
        %v1032 = vpop.f32.mrb[0].mxu0
        %v1033 = vadd.f32 0.0, %v1032
        %v1034 = vpop.f32.mrb[0].mxu0
        %1035 = vdwg.mxu0
        %v1036 = vsel %vm718, %v1030, -inf
        %1037 = vmax.xlane.f32.xlu0 %v1036
        %v1038 = vpop.xlane.xlu0 %1037
        %v1039 = vsel %vm718, %v1033, -inf
        %1040 = vmax.xlane.f32.xlu0 %v1039
        %v1041 = vpop.xlane.xlu0 %1040
        %v1042 = vsub.f32 %v1030, %v1038
        %v1043 = vsub.f32 %v1033, %v1041
        %v1044 = vmul.f32 %v1042, 1.442695
        %v1045 = vpow.pop %v1044
        %v1046 = vmul.f32 %v1043, 1.442695
        %v1047 = vpow.pop %v1046
        %v1048 = vsel %vm718, %v1045, 0.0
        %1049 = vadd.xlane.f32.xlu0 %v1048
        %v1050 = vpop.xlane.xlu0 %1049
        %v1051 = vsel %vm718, %v1047, 0.0
        %1052 = vadd.xlane.f32.xlu0 %v1051
        %v1053 = vpop.xlane.xlu0 %1052
        %v1054 = vrcp.pop %v1050
        %v1055 = vmul.f32 %v1045, %v1054
        %v1056 = vrcp.pop %v1053
        %v1057 = vmul.f32 %v1047, %v1056
        %v1058 = vpack.c.bf16 %v1057, %v1055
        %v1059 = vpack.c.bf16 %v984, %v981
        %v1061 = vsel %vm718, %v1058, 0
        %1063 = vmatprep.subr.bf16.mxu0 0
        %1064 = vmatpush1.bf16.msra.mxu0 %v1059
        %1065 = vmatprep.subr.bf16.mxu0 0
        %1066 = vmatpush1.bf16.msra.mxu0 0
        %1067 = vmatprep.subr.bf16.mxu0 0
        %1068 = vmatpush1.bf16.msra.mxu0 0
        %1069 = vmatprep.subr.bf16.mxu0 0
        %1070 = vmatpush1.bf16.msra.mxu0 0
        %1071 = vmatprep.subr.bf16.mxu0 0
        %1072 = vmatpush1.bf16.msra.mxu0 0
        %1073 = vmatprep.subr.bf16.mxu0 0
        %1074 = vmatpush1.bf16.msra.mxu0 0
        %1075 = vmatprep.subr.bf16.mxu0 0
        %1076 = vmatpush1.bf16.msra.mxu0 0
        %1077 = vmatprep.subr.bf16.mxu0 0
        %1078 = vmatpush1.bf16.msra.mxu0 0
        %1079 = vmatprep.subr.bf16.mxu0 0
        %1080 = vmatpush1.bf16.msra.mxu0 0
        %1081 = vmatprep.subr.bf16.mxu0 0
        %1082 = vmatpush1.bf16.msra.mxu0 0
        %1083 = vmatprep.subr.bf16.mxu0 0
        %1084 = vmatpush1.bf16.msra.mxu0 0
        %1085 = vmatprep.subr.bf16.mxu0 0
        %1086 = vmatpush1.bf16.msra.mxu0 0
        %1087 = vmatprep.subr.bf16.mxu0 0
        %1088 = vmatpush1.bf16.msra.mxu0 0
        %1089 = vmatprep.subr.bf16.mxu0 0
        %1090 = vmatpush1.bf16.msra.mxu0 0
        %1091 = vmatprep.subr.bf16.mxu0 0
        %1092 = vmatpush1.bf16.msra.mxu0 0
        %1093 = vmatprep.subr.bf16.mxu0 0
        %1094 = vmatpush1.bf16.msra.mxu0 0
        %1095 = vmatprep.mubr.bf16.mxu0 0
        %1096 = vmatmul.mubr.bf16.gmra.mrb[0].mxu0 %v1061
        %v1097 = vpop.f32.mrb[0].mxu0
        %v1098 = vadd.f32 0.0, %v1097
        %v1099 = vpop.f32.mrb[0].mxu0
        %v1100 = vpop.f32.mrb[0].mxu0
        %v1101 = vadd.f32 0.0, %v1100
        %v1102 = vpop.f32.mrb[0].mxu0
        %1103 = vdwg.mxu0
        %v1104 = vpack.c.bf16 %v1101, %v1098
        %s1105 = scalar_lea.vmem %s8, 4
        %v1106 = vld [vmem:[%s1105] sm:$0xf]
        %v1108 = vsel %vm670, %v1104, 0
        %vm1110 = vcmask 1043456
        %v1112 = vsel %vm1110, %v1106, 0
        %1114 = vmatprep.subr.bf16.mxu0 0
        %1115 = vmatpush1.bf16.msra.mxu0 %v1112
        %1116 = vmatprep.subr.bf16.mxu0 0
        %1117 = vmatpush1.bf16.msra.mxu0 0
        %1118 = vmatprep.subr.bf16.mxu0 0
        %1119 = vmatpush1.bf16.msra.mxu0 0
        %1120 = vmatprep.subr.bf16.mxu0 0
        %1121 = vmatpush1.bf16.msra.mxu0 0
        %1122 = vmatprep.subr.bf16.mxu0 0
        %1123 = vmatpush1.bf16.msra.mxu0 0
        %1124 = vmatprep.subr.bf16.mxu0 0
        %1125 = vmatpush1.bf16.msra.mxu0 0
        %1126 = vmatprep.subr.bf16.mxu0 0
        %1127 = vmatpush1.bf16.msra.mxu0 0
        %1128 = vmatprep.subr.bf16.mxu0 0
        %1129 = vmatpush1.bf16.msra.mxu0 0
        %1130 = vmatprep.subr.bf16.mxu0 0
        %1131 = vmatpush1.bf16.msra.mxu0 0
        %1132 = vmatprep.subr.bf16.mxu0 0
        %1133 = vmatpush1.bf16.msra.mxu0 0
        %1134 = vmatprep.subr.bf16.mxu0 0
        %1135 = vmatpush1.bf16.msra.mxu0 0
        %1136 = vmatprep.subr.bf16.mxu0 0
        %1137 = vmatpush1.bf16.msra.mxu0 0
        %1138 = vmatprep.subr.bf16.mxu0 0
        %1139 = vmatpush1.bf16.msra.mxu0 0
        %1140 = vmatprep.subr.bf16.mxu0 0
        %1141 = vmatpush1.bf16.msra.mxu0 0
        %1142 = vmatprep.subr.bf16.mxu0 0
        %1143 = vmatpush1.bf16.msra.mxu0 0
        %1144 = vmatprep.subr.bf16.mxu0 0
        %1145 = vmatpush1.bf16.msra.mxu0 0
        %1146 = vmatprep.mubr.bf16.mxu0 0
        %1147 = vmatmul.mubr.bf16.gmra.mrb[0].mxu0 %v1108
        %v1148 = vpop.f32.mrb[0].mxu0
        %v1149 = vadd.f32 0.0, %v1148
        %v1150 = vpop.f32.mrb[0].mxu0
        %v1151 = vpop.f32.mrb[0].mxu0
        %v1152 = vadd.f32 0.0, %v1151
        %v1153 = vpop.f32.mrb[0].mxu0
        %1154 = vdwg.mxu0
        %v1156 = vsel %vm670, %v787, 0
        %v1159 = vsel %vm1110, %v788, 0
        %1161 = vmatprep.subr.bf16.mxu0 0
        %1162 = vmatpush1.bf16.msra.mxu0 %v1159
        %1163 = vmatprep.subr.bf16.mxu0 0
        %1164 = vmatpush1.bf16.msra.mxu0 0
        %1165 = vmatprep.subr.bf16.mxu0 0
        %1166 = vmatpush1.bf16.msra.mxu0 0
        %1167 = vmatprep.subr.bf16.mxu0 0
        %1168 = vmatpush1.bf16.msra.mxu0 0
        %1169 = vmatprep.subr.bf16.mxu0 0
        %1170 = vmatpush1.bf16.msra.mxu0 0
        %1171 = vmatprep.subr.bf16.mxu0 0
        %1172 = vmatpush1.bf16.msra.mxu0 0
        %1173 = vmatprep.subr.bf16.mxu0 0
        %1174 = vmatpush1.bf16.msra.mxu0 0
        %1175 = vmatprep.subr.bf16.mxu0 0
        %1176 = vmatpush1.bf16.msra.mxu0 0
        %1177 = vmatprep.subr.bf16.mxu0 0
        %1178 = vmatpush1.bf16.msra.mxu0 0
        %1179 = vmatprep.subr.bf16.mxu0 0
        %1180 = vmatpush1.bf16.msra.mxu0 0
        %1181 = vmatprep.subr.bf16.mxu0 0
        %1182 = vmatpush1.bf16.msra.mxu0 0
        %1183 = vmatprep.subr.bf16.mxu0 0
        %1184 = vmatpush1.bf16.msra.mxu0 0
        %1185 = vmatprep.subr.bf16.mxu0 0
        %1186 = vmatpush1.bf16.msra.mxu0 0
        %1187 = vmatprep.subr.bf16.mxu0 0
        %1188 = vmatpush1.bf16.msra.mxu0 0
        %1189 = vmatprep.subr.bf16.mxu0 0
        %1190 = vmatpush1.bf16.msra.mxu0 0
        %1191 = vmatprep.subr.bf16.mxu0 0
        %1192 = vmatpush1.bf16.msra.mxu0 0
        %1193 = vmatprep.mubr.bf16.mxu0 0
        %1194 = vmatmul.mubr.bf16.gmra.mrb[0].mxu0 %v1156
        %v1195 = vpop.f32.mrb[0].mxu0
        %v1196 = vadd.f32 %v1149, %v1195
        %v1197 = vpop.f32.mrb[0].mxu0
        %v1198 = vpop.f32.mrb[0].mxu0
        %v1199 = vadd.f32 %v1152, %v1198
        %v1200 = vpop.f32.mrb[0].mxu0
        %1201 = vdwg.mxu0
        %s1202 = scalar_lea.vmem %s2, 32
        %v1203 = vld [vmem:[%s1202] sm:$0xf]
        %v1204 = vld [vmem:[%s1202 + $0x4] sm:$0xf]
        %v1205 = vld [vmem:[%s1202 + $0x8] sm:$0xf]
        %v1206 = vld [vmem:[%s1202 + $0xc] sm:$0xf]
        %s1207 = scalar_lea.vmem %s3, 2
        %v1208 = vld [vmem:[%s1207] sm:$0x1]
        %v1210 = vlaneseq
        %v1211 = vshrl.u32 %v1210, 7
        %v1212 = vsub.s32 0, %v1211
        %v1213 = vrot.slane %v1208, %v1212
        %v1219 = vunpack.c.l.b16 %v1203
        %v1220 = vunpack.c.l.b16 %v1204
        %v1221 = vunpack.c.l.b16 %v1205
        %v1222 = vunpack.c.l.b16 %v1206
        %v1223 = vpack.c.b16 %v1220, %v1219
        %v1224 = vpack.c.b16 %v1222, %v1221
        %1227 = vmatprep.subr.bf16.mxu0 0
        %1228 = vmatpush1.bf16.msra.mxu0 %v1223
        %1229 = vmatprep.subr.bf16.mxu0 0
        %1230 = vmatpush1.bf16.msra.mxu0 %v1224
        %1231 = vmatprep.subr.bf16.mxu0 0
        %1232 = vmatpush1.bf16.msra.mxu0 0
        %1233 = vmatprep.subr.bf16.mxu0 0
        %1234 = vmatpush1.bf16.msra.mxu0 0
        %1235 = vmatprep.subr.bf16.mxu0 0
        %1236 = vmatpush1.bf16.msra.mxu0 0
        %1237 = vmatprep.subr.bf16.mxu0 0
        %1238 = vmatpush1.bf16.msra.mxu0 0
        %1239 = vmatprep.subr.bf16.mxu0 0
        %1240 = vmatpush1.bf16.msra.mxu0 0
        %1241 = vmatprep.subr.bf16.mxu0 0
        %1242 = vmatpush1.bf16.msra.mxu0 0
        %1243 = vmatprep.subr.bf16.mxu0 0
        %1244 = vmatpush1.bf16.msra.mxu0 0
        %1245 = vmatprep.subr.bf16.mxu0 0
        %1246 = vmatpush1.bf16.msra.mxu0 0
        %1247 = vmatprep.subr.bf16.mxu0 0
        %1248 = vmatpush1.bf16.msra.mxu0 0
        %1249 = vmatprep.subr.bf16.mxu0 0
        %1250 = vmatpush1.bf16.msra.mxu0 0
        %1251 = vmatprep.subr.bf16.mxu0 0
        %1252 = vmatpush1.bf16.msra.mxu0 0
        %1253 = vmatprep.subr.bf16.mxu0 0
        %1254 = vmatpush1.bf16.msra.mxu0 0
        %1255 = vmatprep.subr.bf16.mxu0 0
        %1256 = vmatpush1.bf16.msra.mxu0 0
        %1257 = vmatprep.subr.bf16.mxu0 0
        %1258 = vmatpush1.bf16.msra.mxu0 0
        %1259 = vmatprep.mubr.bf16.mxu0 0
        %1260 = vmatmul.mubr.bf16.gmra.mrb[0].mxu0 %v497
        %v1261 = vpop.f32.mrb[0].mxu0
        %v1262 = vadd.f32 %v1213, %v1261
        %v1263 = vpop.f32.mrb[0].mxu0
        %v1264 = vpop.f32.mrb[0].mxu0
        %v1265 = vadd.f32 %v1213, %v1264
        %v1266 = vpop.f32.mrb[0].mxu0
        %1267 = vdwg.mxu0
        %s1268 = scalar_lea.vmem %s4, 32
        %v1269 = vld [vmem:[%s1268] sm:$0xf]
        %v1270 = vld [vmem:[%s1268 + $0x4] sm:$0xf]
        %v1271 = vld [vmem:[%s1268 + $0x8] sm:$0xf]
        %v1272 = vld [vmem:[%s1268 + $0xc] sm:$0xf]
        %s1273 = scalar_lea.vmem %s5, 2
        %v1274 = vld [vmem:[%s1273] sm:$0x1]
        %v1276 = vlaneseq
        %v1277 = vshrl.u32 %v1276, 7
        %v1278 = vsub.s32 0, %v1277
        %v1279 = vrot.slane %v1274, %v1278
        %v1285 = vunpack.c.l.b16 %v1269
        %v1286 = vunpack.c.l.b16 %v1270
        %v1287 = vunpack.c.l.b16 %v1271
        %v1288 = vunpack.c.l.b16 %v1272
        %v1289 = vpack.c.b16 %v1286, %v1285
        %v1290 = vpack.c.b16 %v1288, %v1287
        %1293 = vmatprep.subr.bf16.mxu0 0
        %1294 = vmatpush1.bf16.msra.mxu0 %v1289
        %1295 = vmatprep.subr.bf16.mxu0 0
        %1296 = vmatpush1.bf16.msra.mxu0 %v1290
        %1297 = vmatprep.subr.bf16.mxu0 0
        %1298 = vmatpush1.bf16.msra.mxu0 0
        %1299 = vmatprep.subr.bf16.mxu0 0
        %1300 = vmatpush1.bf16.msra.mxu0 0
        %1301 = vmatprep.subr.bf16.mxu0 0
        %1302 = vmatpush1.bf16.msra.mxu0 0
        %1303 = vmatprep.subr.bf16.mxu0 0
        %1304 = vmatpush1.bf16.msra.mxu0 0
        %1305 = vmatprep.subr.bf16.mxu0 0
        %1306 = vmatpush1.bf16.msra.mxu0 0
        %1307 = vmatprep.subr.bf16.mxu0 0
        %1308 = vmatpush1.bf16.msra.mxu0 0
        %1309 = vmatprep.subr.bf16.mxu0 0
        %1310 = vmatpush1.bf16.msra.mxu0 0
        %1311 = vmatprep.subr.bf16.mxu0 0
        %1312 = vmatpush1.bf16.msra.mxu0 0
        %1313 = vmatprep.subr.bf16.mxu0 0
        %1314 = vmatpush1.bf16.msra.mxu0 0
        %1315 = vmatprep.subr.bf16.mxu0 0
        %1316 = vmatpush1.bf16.msra.mxu0 0
        %1317 = vmatprep.subr.bf16.mxu0 0
        %1318 = vmatpush1.bf16.msra.mxu0 0
        %1319 = vmatprep.subr.bf16.mxu0 0
        %1320 = vmatpush1.bf16.msra.mxu0 0
        %1321 = vmatprep.subr.bf16.mxu0 0
        %1322 = vmatpush1.bf16.msra.mxu0 0
        %1323 = vmatprep.subr.bf16.mxu0 0
        %1324 = vmatpush1.bf16.msra.mxu0 0
        %1325 = vmatprep.mubr.bf16.mxu0 0
        %1326 = vmatmul.mubr.bf16.gmra.mrb[0].mxu0 %v497
        %v1327 = vpop.f32.mrb[0].mxu0
        %v1328 = vadd.f32 %v1279, %v1327
        %v1329 = vpop.f32.mrb[0].mxu0
        %v1330 = vpop.f32.mrb[0].mxu0
        %v1331 = vadd.f32 %v1279, %v1330
        %v1332 = vpop.f32.mrb[0].mxu0
        %1333 = vdwg.mxu0
        %s1334 = scalar_lea.vmem %s6, 32
        %v1335 = vld [vmem:[%s1334] sm:$0xf]
        %v1336 = vld [vmem:[%s1334 + $0x4] sm:$0xf]
        %v1337 = vld [vmem:[%s1334 + $0x8] sm:$0xf]
        %v1338 = vld [vmem:[%s1334 + $0xc] sm:$0xf]
        %s1339 = scalar_lea.vmem %s7, 2
        %v1340 = vld [vmem:[%s1339] sm:$0x1]
        %v1342 = vlaneseq
        %v1343 = vshrl.u32 %v1342, 7
        %v1344 = vsub.s32 0, %v1343
        %v1345 = vrot.slane %v1340, %v1344
        %v1351 = vunpack.c.l.b16 %v1335
        %v1352 = vunpack.c.l.b16 %v1336
        %v1353 = vunpack.c.l.b16 %v1337
        %v1354 = vunpack.c.l.b16 %v1338
        %v1355 = vpack.c.b16 %v1352, %v1351
        %v1356 = vpack.c.b16 %v1354, %v1353
        %1359 = vmatprep.subr.bf16.mxu0 0
        %1360 = vmatpush1.bf16.msra.mxu0 %v1355
        %1361 = vmatprep.subr.bf16.mxu0 0
        %1362 = vmatpush1.bf16.msra.mxu0 %v1356
        %1363 = vmatprep.subr.bf16.mxu0 0
        %1364 = vmatpush1.bf16.msra.mxu0 0
        %1365 = vmatprep.subr.bf16.mxu0 0
        %1366 = vmatpush1.bf16.msra.mxu0 0
        %1367 = vmatprep.subr.bf16.mxu0 0
        %1368 = vmatpush1.bf16.msra.mxu0 0
        %1369 = vmatprep.subr.bf16.mxu0 0
        %1370 = vmatpush1.bf16.msra.mxu0 0
        %1371 = vmatprep.subr.bf16.mxu0 0
        %1372 = vmatpush1.bf16.msra.mxu0 0
        %1373 = vmatprep.subr.bf16.mxu0 0
        %1374 = vmatpush1.bf16.msra.mxu0 0
        %1375 = vmatprep.subr.bf16.mxu0 0
        %1376 = vmatpush1.bf16.msra.mxu0 0
        %1377 = vmatprep.subr.bf16.mxu0 0
        %1378 = vmatpush1.bf16.msra.mxu0 0
        %1379 = vmatprep.subr.bf16.mxu0 0
        %1380 = vmatpush1.bf16.msra.mxu0 0
        %1381 = vmatprep.subr.bf16.mxu0 0
        %1382 = vmatpush1.bf16.msra.mxu0 0
        %1383 = vmatprep.subr.bf16.mxu0 0
        %1384 = vmatpush1.bf16.msra.mxu0 0
        %1385 = vmatprep.subr.bf16.mxu0 0
        %1386 = vmatpush1.bf16.msra.mxu0 0
        %1387 = vmatprep.subr.bf16.mxu0 0
        %1388 = vmatpush1.bf16.msra.mxu0 0
        %1389 = vmatprep.subr.bf16.mxu0 0
        %1390 = vmatpush1.bf16.msra.mxu0 0
        %1391 = vmatprep.mubr.bf16.mxu0 0
        %1392 = vmatmul.mubr.bf16.gmra.mrb[0].mxu0 %v497
        %v1393 = vpop.f32.mrb[0].mxu0
        %v1394 = vadd.f32 %v1345, %v1393
        %v1395 = vpop.f32.mrb[0].mxu0
        %v1396 = vpop.f32.mrb[0].mxu0
        %v1397 = vadd.f32 %v1345, %v1396
        %v1398 = vpop.f32.mrb[0].mxu0
        %1399 = vdwg.mxu0
        %v1400 = vpack.c.bf16 %v1265, %v1262
        %v1401 = vpack.c.bf16 %v1331, %v1328
        %v1403 = vsel %vm670, %v1400, 0
        %v1406 = vsel %vm670, %v1401, 0
        %1408 = vmatprep.subr.bf16.mxu0 0
        %1409 = vmatpush1.bf16.xpose.msra.mxu0 %v1406
        %1410 = vmatprep.subr.bf16.mxu0 0
        %1411 = vmatpush1.bf16.xpose.msra.mxu0 0
        %1412 = vmatprep.subr.bf16.mxu0 0
        %1413 = vmatpush1.bf16.xpose.msra.mxu0 0
        %1414 = vmatprep.subr.bf16.mxu0 0
        %1415 = vmatpush1.bf16.xpose.msra.mxu0 0
        %1416 = vmatprep.subr.bf16.mxu0 0
        %1417 = vmatpush1.bf16.xpose.msra.mxu0 0
        %1418 = vmatprep.subr.bf16.mxu0 0
        %1419 = vmatpush1.bf16.xpose.msra.mxu0 0
        %1420 = vmatprep.subr.bf16.mxu0 0
        %1421 = vmatpush1.bf16.xpose.msra.mxu0 0
        %1422 = vmatprep.subr.bf16.mxu0 0
        %1423 = vmatpush1.bf16.xpose.msra.mxu0 0
        %1424 = vmatprep.subr.bf16.mxu0 0
        %1425 = vmatpush1.bf16.xpose.msra.mxu0 0
        %1426 = vmatprep.subr.bf16.mxu0 0
        %1427 = vmatpush1.bf16.xpose.msra.mxu0 0
        %1428 = vmatprep.subr.bf16.mxu0 0
        %1429 = vmatpush1.bf16.xpose.msra.mxu0 0
        %1430 = vmatprep.subr.bf16.mxu0 0
        %1431 = vmatpush1.bf16.xpose.msra.mxu0 0
        %1432 = vmatprep.subr.bf16.mxu0 0
        %1433 = vmatpush1.bf16.xpose.msra.mxu0 0
        %1434 = vmatprep.subr.bf16.mxu0 0
        %1435 = vmatpush1.bf16.xpose.msra.mxu0 0
        %1436 = vmatprep.subr.bf16.mxu0 0
        %1437 = vmatpush1.bf16.xpose.msra.mxu0 0
        %1438 = vmatprep.subr.bf16.mxu0 0
        %1439 = vmatpush1.bf16.xpose.msra.mxu0 0
        %1440 = vmatprep.mubr.bf16.mxu0 0
        %1441 = vmatmul.mubr.bf16.gmra.mrb[0].mxu0 %v1403
        %v1442 = vpop.f32.mrb[0].mxu0
        %v1443 = vadd.f32 0.0, %v1442
        %v1444 = vpop.f32.mrb[0].mxu0
        %v1445 = vpop.f32.mrb[0].mxu0
        %v1446 = vadd.f32 0.0, %v1445
        %v1447 = vpop.f32.mrb[0].mxu0
        %1448 = vdwg.mxu0
        %v1449 = vsel %vm718, %v1443, -inf
        %1450 = vmax.xlane.f32.xlu0 %v1449
        %v1451 = vpop.xlane.xlu0 %1450
        %v1452 = vsel %vm718, %v1446, -inf
        %1453 = vmax.xlane.f32.xlu0 %v1452
        %v1454 = vpop.xlane.xlu0 %1453
        %v1455 = vsub.f32 %v1443, %v1451
        %v1456 = vsub.f32 %v1446, %v1454
        %v1457 = vmul.f32 %v1455, 1.442695
        %v1458 = vpow.pop %v1457
        %v1459 = vmul.f32 %v1456, 1.442695
        %v1460 = vpow.pop %v1459
        %v1461 = vsel %vm718, %v1458, 0.0
        %1462 = vadd.xlane.f32.xlu0 %v1461
        %v1463 = vpop.xlane.xlu0 %1462
        %v1464 = vsel %vm718, %v1460, 0.0
        %1465 = vadd.xlane.f32.xlu0 %v1464
        %v1466 = vpop.xlane.xlu0 %1465
        %v1467 = vrcp.pop %v1463
        %v1468 = vmul.f32 %v1458, %v1467
        %v1469 = vrcp.pop %v1466
        %v1470 = vmul.f32 %v1460, %v1469
        %v1471 = vpack.c.bf16 %v1470, %v1468
        %v1472 = vpack.c.bf16 %v1397, %v1394
        %v1474 = vsel %vm718, %v1471, 0
        %1476 = vmatprep.subr.bf16.mxu0 0
        %1477 = vmatpush1.bf16.msra.mxu0 %v1472
        %1478 = vmatprep.subr.bf16.mxu0 0
        %1479 = vmatpush1.bf16.msra.mxu0 0
        %1480 = vmatprep.subr.bf16.mxu0 0
        %1481 = vmatpush1.bf16.msra.mxu0 0
        %1482 = vmatprep.subr.bf16.mxu0 0
        %1483 = vmatpush1.bf16.msra.mxu0 0
        %1484 = vmatprep.subr.bf16.mxu0 0
        %1485 = vmatpush1.bf16.msra.mxu0 0
        %1486 = vmatprep.subr.bf16.mxu0 0
        %1487 = vmatpush1.bf16.msra.mxu0 0
        %1488 = vmatprep.subr.bf16.mxu0 0
        %1489 = vmatpush1.bf16.msra.mxu0 0
        %1490 = vmatprep.subr.bf16.mxu0 0
        %1491 = vmatpush1.bf16.msra.mxu0 0
        %1492 = vmatprep.subr.bf16.mxu0 0
        %1493 = vmatpush1.bf16.msra.mxu0 0
        %1494 = vmatprep.subr.bf16.mxu0 0
        %1495 = vmatpush1.bf16.msra.mxu0 0
        %1496 = vmatprep.subr.bf16.mxu0 0
        %1497 = vmatpush1.bf16.msra.mxu0 0
        %1498 = vmatprep.subr.bf16.mxu0 0
        %1499 = vmatpush1.bf16.msra.mxu0 0
        %1500 = vmatprep.subr.bf16.mxu0 0
        %1501 = vmatpush1.bf16.msra.mxu0 0
        %1502 = vmatprep.subr.bf16.mxu0 0
        %1503 = vmatpush1.bf16.msra.mxu0 0
        %1504 = vmatprep.subr.bf16.mxu0 0
        %1505 = vmatpush1.bf16.msra.mxu0 0
        %1506 = vmatprep.subr.bf16.mxu0 0
        %1507 = vmatpush1.bf16.msra.mxu0 0
        %1508 = vmatprep.mubr.bf16.mxu0 0
        %1509 = vmatmul.mubr.bf16.gmra.mrb[0].mxu0 %v1474
        %v1510 = vpop.f32.mrb[0].mxu0
        %v1511 = vadd.f32 0.0, %v1510
        %v1512 = vpop.f32.mrb[0].mxu0
        %v1513 = vpop.f32.mrb[0].mxu0
        %v1514 = vadd.f32 0.0, %v1513
        %v1515 = vpop.f32.mrb[0].mxu0
        %1516 = vdwg.mxu0
        %v1517 = vpack.c.bf16 %v1514, %v1511
        %s1518 = scalar_lea.vmem %s8, 8
        %v1519 = vld [vmem:[%s1518] sm:$0xf]
        %v1521 = vsel %vm670, %v1517, 0
        %v1524 = vsel %vm1110, %v1519, 0
        %1526 = vmatprep.subr.bf16.mxu0 0
        %1527 = vmatpush1.bf16.msra.mxu0 %v1524
        %1528 = vmatprep.subr.bf16.mxu0 0
        %1529 = vmatpush1.bf16.msra.mxu0 0
        %1530 = vmatprep.subr.bf16.mxu0 0
        %1531 = vmatpush1.bf16.msra.mxu0 0
        %1532 = vmatprep.subr.bf16.mxu0 0
        %1533 = vmatpush1.bf16.msra.mxu0 0
        %1534 = vmatprep.subr.bf16.mxu0 0
        %1535 = vmatpush1.bf16.msra.mxu0 0
        %1536 = vmatprep.subr.bf16.mxu0 0
        %1537 = vmatpush1.bf16.msra.mxu0 0
        %1538 = vmatprep.subr.bf16.mxu0 0
        %1539 = vmatpush1.bf16.msra.mxu0 0
        %1540 = vmatprep.subr.bf16.mxu0 0
        %1541 = vmatpush1.bf16.msra.mxu0 0
        %1542 = vmatprep.subr.bf16.mxu0 0
        %1543 = vmatpush1.bf16.msra.mxu0 0
        %1544 = vmatprep.subr.bf16.mxu0 0
        %1545 = vmatpush1.bf16.msra.mxu0 0
        %1546 = vmatprep.subr.bf16.mxu0 0
        %1547 = vmatpush1.bf16.msra.mxu0 0
        %1548 = vmatprep.subr.bf16.mxu0 0
        %1549 = vmatpush1.bf16.msra.mxu0 0
        %1550 = vmatprep.subr.bf16.mxu0 0
        %1551 = vmatpush1.bf16.msra.mxu0 0
        %1552 = vmatprep.subr.bf16.mxu0 0
        %1553 = vmatpush1.bf16.msra.mxu0 0
        %1554 = vmatprep.subr.bf16.mxu0 0
        %1555 = vmatpush1.bf16.msra.mxu0 0
        %1556 = vmatprep.subr.bf16.mxu0 0
        %1557 = vmatpush1.bf16.msra.mxu0 0
        %1558 = vmatprep.mubr.bf16.mxu0 0
        %1559 = vmatmul.mubr.bf16.gmra.mrb[0].mxu0 %v1521
        %v1560 = vpop.f32.mrb[0].mxu0
        %v1561 = vadd.f32 0.0, %v1560
        %v1562 = vpop.f32.mrb[0].mxu0
        %v1563 = vpop.f32.mrb[0].mxu0
        %v1564 = vadd.f32 0.0, %v1563
        %v1565 = vpop.f32.mrb[0].mxu0
        %1566 = vdwg.mxu0
        %v1567 = vadd.f32 %v1196, %v1561
        %v1568 = vadd.f32 %v1199, %v1564
        %s1569 = scalar_lea.vmem %s2, 48
        %v1570 = vld [vmem:[%s1569] sm:$0xf]
        %v1571 = vld [vmem:[%s1569 + $0x4] sm:$0xf]
        %v1572 = vld [vmem:[%s1569 + $0x8] sm:$0xf]
        %v1573 = vld [vmem:[%s1569 + $0xc] sm:$0xf]
        %s1574 = scalar_lea.vmem %s3, 3
        %v1575 = vld [vmem:[%s1574] sm:$0x1]
        %v1577 = vlaneseq
        %v1578 = vshrl.u32 %v1577, 7
        %v1579 = vsub.s32 0, %v1578
        %v1580 = vrot.slane %v1575, %v1579
        %v1586 = vunpack.c.l.b16 %v1570
        %v1587 = vunpack.c.l.b16 %v1571
        %v1588 = vunpack.c.l.b16 %v1572
        %v1589 = vunpack.c.l.b16 %v1573
        %v1590 = vpack.c.b16 %v1587, %v1586
        %v1591 = vpack.c.b16 %v1589, %v1588
        %1594 = vmatprep.subr.bf16.mxu0 0
        %1595 = vmatpush1.bf16.msra.mxu0 %v1590
        %1596 = vmatprep.subr.bf16.mxu0 0
        %1597 = vmatpush1.bf16.msra.mxu0 %v1591
        %1598 = vmatprep.subr.bf16.mxu0 0
        %1599 = vmatpush1.bf16.msra.mxu0 0
        %1600 = vmatprep.subr.bf16.mxu0 0
        %1601 = vmatpush1.bf16.msra.mxu0 0
        %1602 = vmatprep.subr.bf16.mxu0 0
        %1603 = vmatpush1.bf16.msra.mxu0 0
        %1604 = vmatprep.subr.bf16.mxu0 0
        %1605 = vmatpush1.bf16.msra.mxu0 0
        %1606 = vmatprep.subr.bf16.mxu0 0
        %1607 = vmatpush1.bf16.msra.mxu0 0
        %1608 = vmatprep.subr.bf16.mxu0 0
        %1609 = vmatpush1.bf16.msra.mxu0 0
        %1610 = vmatprep.subr.bf16.mxu0 0
        %1611 = vmatpush1.bf16.msra.mxu0 0
        %1612 = vmatprep.subr.bf16.mxu0 0
        %1613 = vmatpush1.bf16.msra.mxu0 0
        %1614 = vmatprep.subr.bf16.mxu0 0
        %1615 = vmatpush1.bf16.msra.mxu0 0
        %1616 = vmatprep.subr.bf16.mxu0 0
        %1617 = vmatpush1.bf16.msra.mxu0 0
        %1618 = vmatprep.subr.bf16.mxu0 0
        %1619 = vmatpush1.bf16.msra.mxu0 0
        %1620 = vmatprep.subr.bf16.mxu0 0
        %1621 = vmatpush1.bf16.msra.mxu0 0
        %1622 = vmatprep.subr.bf16.mxu0 0
        %1623 = vmatpush1.bf16.msra.mxu0 0
        %1624 = vmatprep.subr.bf16.mxu0 0
        %1625 = vmatpush1.bf16.msra.mxu0 0
        %1626 = vmatprep.mubr.bf16.mxu0 0
        %1627 = vmatmul.mubr.bf16.gmra.mrb[0].mxu0 %v497
        %v1628 = vpop.f32.mrb[0].mxu0
        %v1629 = vadd.f32 %v1580, %v1628
        %v1630 = vpop.f32.mrb[0].mxu0
        %v1631 = vpop.f32.mrb[0].mxu0
        %v1632 = vadd.f32 %v1580, %v1631
        %v1633 = vpop.f32.mrb[0].mxu0
        %1634 = vdwg.mxu0
        %s1635 = scalar_lea.vmem %s4, 48
        %v1636 = vld [vmem:[%s1635] sm:$0xf]
        %v1637 = vld [vmem:[%s1635 + $0x4] sm:$0xf]
        %v1638 = vld [vmem:[%s1635 + $0x8] sm:$0xf]
        %v1639 = vld [vmem:[%s1635 + $0xc] sm:$0xf]
        %s1640 = scalar_lea.vmem %s5, 3
        %v1641 = vld [vmem:[%s1640] sm:$0x1]
        %v1643 = vlaneseq
        %v1644 = vshrl.u32 %v1643, 7
        %v1645 = vsub.s32 0, %v1644
        %v1646 = vrot.slane %v1641, %v1645
        %v1652 = vunpack.c.l.b16 %v1636
        %v1653 = vunpack.c.l.b16 %v1637
        %v1654 = vunpack.c.l.b16 %v1638
        %v1655 = vunpack.c.l.b16 %v1639
        %v1656 = vpack.c.b16 %v1653, %v1652
        %v1657 = vpack.c.b16 %v1655, %v1654
        %1660 = vmatprep.subr.bf16.mxu0 0
        %1661 = vmatpush1.bf16.msra.mxu0 %v1656
        %1662 = vmatprep.subr.bf16.mxu0 0
        %1663 = vmatpush1.bf16.msra.mxu0 %v1657
        %1664 = vmatprep.subr.bf16.mxu0 0
        %1665 = vmatpush1.bf16.msra.mxu0 0
        %1666 = vmatprep.subr.bf16.mxu0 0
        %1667 = vmatpush1.bf16.msra.mxu0 0
        %1668 = vmatprep.subr.bf16.mxu0 0
        %1669 = vmatpush1.bf16.msra.mxu0 0
        %1670 = vmatprep.subr.bf16.mxu0 0
        %1671 = vmatpush1.bf16.msra.mxu0 0
        %1672 = vmatprep.subr.bf16.mxu0 0
        %1673 = vmatpush1.bf16.msra.mxu0 0
        %1674 = vmatprep.subr.bf16.mxu0 0
        %1675 = vmatpush1.bf16.msra.mxu0 0
        %1676 = vmatprep.subr.bf16.mxu0 0
        %1677 = vmatpush1.bf16.msra.mxu0 0
        %1678 = vmatprep.subr.bf16.mxu0 0
        %1679 = vmatpush1.bf16.msra.mxu0 0
        %1680 = vmatprep.subr.bf16.mxu0 0
        %1681 = vmatpush1.bf16.msra.mxu0 0
        %1682 = vmatprep.subr.bf16.mxu0 0
        %1683 = vmatpush1.bf16.msra.mxu0 0
        %1684 = vmatprep.subr.bf16.mxu0 0
        %1685 = vmatpush1.bf16.msra.mxu0 0
        %1686 = vmatprep.subr.bf16.mxu0 0
        %1687 = vmatpush1.bf16.msra.mxu0 0
        %1688 = vmatprep.subr.bf16.mxu0 0
        %1689 = vmatpush1.bf16.msra.mxu0 0
        %1690 = vmatprep.subr.bf16.mxu0 0
        %1691 = vmatpush1.bf16.msra.mxu0 0
        %1692 = vmatprep.mubr.bf16.mxu0 0
        %1693 = vmatmul.mubr.bf16.gmra.mrb[0].mxu0 %v497
        %v1694 = vpop.f32.mrb[0].mxu0
        %v1695 = vadd.f32 %v1646, %v1694
        %v1696 = vpop.f32.mrb[0].mxu0
        %v1697 = vpop.f32.mrb[0].mxu0
        %v1698 = vadd.f32 %v1646, %v1697
        %v1699 = vpop.f32.mrb[0].mxu0
        %1700 = vdwg.mxu0
        %s1701 = scalar_lea.vmem %s6, 48
        %v1702 = vld [vmem:[%s1701] sm:$0xf]
        %v1703 = vld [vmem:[%s1701 + $0x4] sm:$0xf]
        %v1704 = vld [vmem:[%s1701 + $0x8] sm:$0xf]
        %v1705 = vld [vmem:[%s1701 + $0xc] sm:$0xf]
        %s1706 = scalar_lea.vmem %s7, 3
        %v1707 = vld [vmem:[%s1706] sm:$0x1]
        %v1709 = vlaneseq
        %v1710 = vshrl.u32 %v1709, 7
        %v1711 = vsub.s32 0, %v1710
        %v1712 = vrot.slane %v1707, %v1711
        %v1718 = vunpack.c.l.b16 %v1702
        %v1719 = vunpack.c.l.b16 %v1703
        %v1720 = vunpack.c.l.b16 %v1704
        %v1721 = vunpack.c.l.b16 %v1705
        %v1722 = vpack.c.b16 %v1719, %v1718
        %v1723 = vpack.c.b16 %v1721, %v1720
        %1726 = vmatprep.subr.bf16.mxu0 0
        %1727 = vmatpush1.bf16.msra.mxu0 %v1722
        %1728 = vmatprep.subr.bf16.mxu0 0
        %1729 = vmatpush1.bf16.msra.mxu0 %v1723
        %1730 = vmatprep.subr.bf16.mxu0 0
        %1731 = vmatpush1.bf16.msra.mxu0 0
        %1732 = vmatprep.subr.bf16.mxu0 0
        %1733 = vmatpush1.bf16.msra.mxu0 0
        %1734 = vmatprep.subr.bf16.mxu0 0
        %1735 = vmatpush1.bf16.msra.mxu0 0
        %1736 = vmatprep.subr.bf16.mxu0 0
        %1737 = vmatpush1.bf16.msra.mxu0 0
        %1738 = vmatprep.subr.bf16.mxu0 0
        %1739 = vmatpush1.bf16.msra.mxu0 0
        %1740 = vmatprep.subr.bf16.mxu0 0
        %1741 = vmatpush1.bf16.msra.mxu0 0
        %1742 = vmatprep.subr.bf16.mxu0 0
        %1743 = vmatpush1.bf16.msra.mxu0 0
        %1744 = vmatprep.subr.bf16.mxu0 0
        %1745 = vmatpush1.bf16.msra.mxu0 0
        %1746 = vmatprep.subr.bf16.mxu0 0
        %1747 = vmatpush1.bf16.msra.mxu0 0
        %1748 = vmatprep.subr.bf16.mxu0 0
        %1749 = vmatpush1.bf16.msra.mxu0 0
        %1750 = vmatprep.subr.bf16.mxu0 0
        %1751 = vmatpush1.bf16.msra.mxu0 0
        %1752 = vmatprep.subr.bf16.mxu0 0
        %1753 = vmatpush1.bf16.msra.mxu0 0
        %1754 = vmatprep.subr.bf16.mxu0 0
        %1755 = vmatpush1.bf16.msra.mxu0 0
        %1756 = vmatprep.subr.bf16.mxu0 0
        %1757 = vmatpush1.bf16.msra.mxu0 0
        %1758 = vmatprep.mubr.bf16.mxu0 0
        %1759 = vmatmul.mubr.bf16.gmra.mrb[0].mxu0 %v497
        %v1760 = vpop.f32.mrb[0].mxu0
        %v1761 = vadd.f32 %v1712, %v1760
        %v1762 = vpop.f32.mrb[0].mxu0
        %v1763 = vpop.f32.mrb[0].mxu0
        %v1764 = vadd.f32 %v1712, %v1763
        %v1765 = vpop.f32.mrb[0].mxu0
        %1766 = vdwg.mxu0
        %v1767 = vpack.c.bf16 %v1632, %v1629
        %v1768 = vpack.c.bf16 %v1698, %v1695
        %v1770 = vsel %vm670, %v1767, 0
        %v1773 = vsel %vm670, %v1768, 0
        %1775 = vmatprep.subr.bf16.mxu0 0
        %1776 = vmatpush1.bf16.xpose.msra.mxu0 %v1773
        %1777 = vmatprep.subr.bf16.mxu0 0
        %1778 = vmatpush1.bf16.xpose.msra.mxu0 0
        %1779 = vmatprep.subr.bf16.mxu0 0
        %1780 = vmatpush1.bf16.xpose.msra.mxu0 0
        %1781 = vmatprep.subr.bf16.mxu0 0
        %1782 = vmatpush1.bf16.xpose.msra.mxu0 0
        %1783 = vmatprep.subr.bf16.mxu0 0
        %1784 = vmatpush1.bf16.xpose.msra.mxu0 0
        %1785 = vmatprep.subr.bf16.mxu0 0
        %1786 = vmatpush1.bf16.xpose.msra.mxu0 0
        %1787 = vmatprep.subr.bf16.mxu0 0
        %1788 = vmatpush1.bf16.xpose.msra.mxu0 0
        %1789 = vmatprep.subr.bf16.mxu0 0
        %1790 = vmatpush1.bf16.xpose.msra.mxu0 0
        %1791 = vmatprep.subr.bf16.mxu0 0
        %1792 = vmatpush1.bf16.xpose.msra.mxu0 0
        %1793 = vmatprep.subr.bf16.mxu0 0
        %1794 = vmatpush1.bf16.xpose.msra.mxu0 0
        %1795 = vmatprep.subr.bf16.mxu0 0
        %1796 = vmatpush1.bf16.xpose.msra.mxu0 0
        %1797 = vmatprep.subr.bf16.mxu0 0
        %1798 = vmatpush1.bf16.xpose.msra.mxu0 0
        %1799 = vmatprep.subr.bf16.mxu0 0
        %1800 = vmatpush1.bf16.xpose.msra.mxu0 0
        %1801 = vmatprep.subr.bf16.mxu0 0
        %1802 = vmatpush1.bf16.xpose.msra.mxu0 0
        %1803 = vmatprep.subr.bf16.mxu0 0
        %1804 = vmatpush1.bf16.xpose.msra.mxu0 0
        %1805 = vmatprep.subr.bf16.mxu0 0
        %1806 = vmatpush1.bf16.xpose.msra.mxu0 0
        %1807 = vmatprep.mubr.bf16.mxu0 0
        %1808 = vmatmul.mubr.bf16.gmra.mrb[0].mxu0 %v1770
        %v1809 = vpop.f32.mrb[0].mxu0
        %v1810 = vadd.f32 0.0, %v1809
        %v1811 = vpop.f32.mrb[0].mxu0
        %v1812 = vpop.f32.mrb[0].mxu0
        %v1813 = vadd.f32 0.0, %v1812
        %v1814 = vpop.f32.mrb[0].mxu0
        %1815 = vdwg.mxu0
        %v1816 = vsel %vm718, %v1810, -inf
        %1817 = vmax.xlane.f32.xlu0 %v1816
        %v1818 = vpop.xlane.xlu0 %1817
        %v1819 = vsel %vm718, %v1813, -inf
        %1820 = vmax.xlane.f32.xlu0 %v1819
        %v1821 = vpop.xlane.xlu0 %1820
        %v1822 = vsub.f32 %v1810, %v1818
        %v1823 = vsub.f32 %v1813, %v1821
        %v1824 = vmul.f32 %v1822, 1.442695
        %v1825 = vpow.pop %v1824
        %v1826 = vmul.f32 %v1823, 1.442695
        %v1827 = vpow.pop %v1826
        %v1828 = vsel %vm718, %v1825, 0.0
        %1829 = vadd.xlane.f32.xlu0 %v1828
        %v1830 = vpop.xlane.xlu0 %1829
        %v1831 = vsel %vm718, %v1827, 0.0
        %1832 = vadd.xlane.f32.xlu0 %v1831
        %v1833 = vpop.xlane.xlu0 %1832
        %v1834 = vrcp.pop %v1830
        %v1835 = vmul.f32 %v1825, %v1834
        %v1836 = vrcp.pop %v1833
        %v1837 = vmul.f32 %v1827, %v1836
        %v1838 = vpack.c.bf16 %v1837, %v1835
        %v1839 = vpack.c.bf16 %v1764, %v1761
        %v1841 = vsel %vm718, %v1838, 0
        %1843 = vmatprep.subr.bf16.mxu0 0
        %1844 = vmatpush1.bf16.msra.mxu0 %v1839
        %1845 = vmatprep.subr.bf16.mxu0 0
        %1846 = vmatpush1.bf16.msra.mxu0 0
        %1847 = vmatprep.subr.bf16.mxu0 0
        %1848 = vmatpush1.bf16.msra.mxu0 0
        %1849 = vmatprep.subr.bf16.mxu0 0
        %1850 = vmatpush1.bf16.msra.mxu0 0
        %1851 = vmatprep.subr.bf16.mxu0 0
        %1852 = vmatpush1.bf16.msra.mxu0 0
        %1853 = vmatprep.subr.bf16.mxu0 0
        %1854 = vmatpush1.bf16.msra.mxu0 0
        %1855 = vmatprep.subr.bf16.mxu0 0
        %1856 = vmatpush1.bf16.msra.mxu0 0
        %1857 = vmatprep.subr.bf16.mxu0 0
        %1858 = vmatpush1.bf16.msra.mxu0 0
        %1859 = vmatprep.subr.bf16.mxu0 0
        %1860 = vmatpush1.bf16.msra.mxu0 0
        %1861 = vmatprep.subr.bf16.mxu0 0
        %1862 = vmatpush1.bf16.msra.mxu0 0
        %1863 = vmatprep.subr.bf16.mxu0 0
        %1864 = vmatpush1.bf16.msra.mxu0 0
        %1865 = vmatprep.subr.bf16.mxu0 0
        %1866 = vmatpush1.bf16.msra.mxu0 0
        %1867 = vmatprep.subr.bf16.mxu0 0
        %1868 = vmatpush1.bf16.msra.mxu0 0
        %1869 = vmatprep.subr.bf16.mxu0 0
        %1870 = vmatpush1.bf16.msra.mxu0 0
        %1871 = vmatprep.subr.bf16.mxu0 0
        %1872 = vmatpush1.bf16.msra.mxu0 0
        %1873 = vmatprep.subr.bf16.mxu0 0
        %1874 = vmatpush1.bf16.msra.mxu0 0
        %1875 = vmatprep.mubr.bf16.mxu0 0
        %1876 = vmatmul.mubr.bf16.gmra.mrb[0].mxu0 %v1841
        %v1877 = vpop.f32.mrb[0].mxu0
        %v1878 = vadd.f32 0.0, %v1877
        %v1879 = vpop.f32.mrb[0].mxu0
        %v1880 = vpop.f32.mrb[0].mxu0
        %v1881 = vadd.f32 0.0, %v1880
        %v1882 = vpop.f32.mrb[0].mxu0
        %1883 = vdwg.mxu0
        %v1884 = vpack.c.bf16 %v1881, %v1878
        %s1885 = scalar_lea.vmem %s8, 12
        %v1886 = vld [vmem:[%s1885] sm:$0xf]
        %v1888 = vsel %vm670, %v1884, 0
        %v1891 = vsel %vm1110, %v1886, 0
        %1893 = vmatprep.subr.bf16.mxu0 0
        %1894 = vmatpush1.bf16.msra.mxu0 %v1891
        %1895 = vmatprep.subr.bf16.mxu0 0
        %1896 = vmatpush1.bf16.msra.mxu0 0
        %1897 = vmatprep.subr.bf16.mxu0 0
        %1898 = vmatpush1.bf16.msra.mxu0 0
        %1899 = vmatprep.subr.bf16.mxu0 0
        %1900 = vmatpush1.bf16.msra.mxu0 0
        %1901 = vmatprep.subr.bf16.mxu0 0
        %1902 = vmatpush1.bf16.msra.mxu0 0
        %1903 = vmatprep.subr.bf16.mxu0 0
        %1904 = vmatpush1.bf16.msra.mxu0 0
        %1905 = vmatprep.subr.bf16.mxu0 0
        %1906 = vmatpush1.bf16.msra.mxu0 0
        %1907 = vmatprep.subr.bf16.mxu0 0
        %1908 = vmatpush1.bf16.msra.mxu0 0
        %1909 = vmatprep.subr.bf16.mxu0 0
        %1910 = vmatpush1.bf16.msra.mxu0 0
        %1911 = vmatprep.subr.bf16.mxu0 0
        %1912 = vmatpush1.bf16.msra.mxu0 0
        %1913 = vmatprep.subr.bf16.mxu0 0
        %1914 = vmatpush1.bf16.msra.mxu0 0
        %1915 = vmatprep.subr.bf16.mxu0 0
        %1916 = vmatpush1.bf16.msra.mxu0 0
        %1917 = vmatprep.subr.bf16.mxu0 0
        %1918 = vmatpush1.bf16.msra.mxu0 0
        %1919 = vmatprep.subr.bf16.mxu0 0
        %1920 = vmatpush1.bf16.msra.mxu0 0
        %1921 = vmatprep.subr.bf16.mxu0 0
        %1922 = vmatpush1.bf16.msra.mxu0 0
        %1923 = vmatprep.subr.bf16.mxu0 0
        %1924 = vmatpush1.bf16.msra.mxu0 0
        %1925 = vmatprep.mubr.bf16.mxu0 0
        %1926 = vmatmul.mubr.bf16.gmra.mrb[0].mxu0 %v1888
        %v1927 = vpop.f32.mrb[0].mxu0
        %v1928 = vadd.f32 0.0, %v1927
        %v1929 = vpop.f32.mrb[0].mxu0
        %v1930 = vpop.f32.mrb[0].mxu0
        %v1931 = vadd.f32 0.0, %v1930
        %v1932 = vpop.f32.mrb[0].mxu0
        %1933 = vdwg.mxu0
        %v1934 = vadd.f32 %v1567, %v1928
        %v1935 = vadd.f32 %v1568, %v1931
        %v1936 = vld [vmem:[%s9] sm:$0x1]
        %v1938 = vlaneseq
        %v1939 = vshrl.u32 %v1938, 7
        %v1940 = vsub.s32 0, %v1939
        %v1941 = vrot.slane %v1936, %v1940
        %v1943 = vadd.f32 %v1934, %v1941
        %v1944 = vadd.f32 %v1935, %v1941
        %v1945 = vadd.f32 %v467, %v1943
        %v1946 = vadd.f32 %v468, %v1944
        %v1948 = vsel %vm718, %v469, 0
        %v1951 = vsel %vm718, %v470, 0
        %1953 = vmatprep.subr.mxu0 0.0
        %1954 = vmatpush1.msra.mxu0 %v1945
        %1955 = vmatprep.subr.mxu0 0.0
        %1956 = vmatpush1.msra.mxu0 %v1946
        %1957 = vmatprep.subr.mxu0 0.0
        %1958 = vmatpush1.msra.mxu0 0.0
        %1959 = vmatprep.subr.mxu0 0.0
        %1960 = vmatpush1.msra.mxu0 0.0
        %1961 = vmatprep.subr.mxu0 0.0
        %1962 = vmatpush1.msra.mxu0 0.0
        %1963 = vmatprep.subr.mxu0 0.0
        %1964 = vmatpush1.msra.mxu0 0.0
        %1965 = vmatprep.subr.mxu0 0.0
        %1966 = vmatpush1.msra.mxu0 0.0
        %1967 = vmatprep.subr.mxu0 0.0
        %1968 = vmatpush1.msra.mxu0 0.0
        %1969 = vmatprep.subr.mxu0 0.0
        %1970 = vmatpush1.msra.mxu0 0.0
        %1971 = vmatprep.subr.mxu0 0.0
        %1972 = vmatpush1.msra.mxu0 0.0
        %1973 = vmatprep.subr.mxu0 0.0
        %1974 = vmatpush1.msra.mxu0 0.0
        %1975 = vmatprep.subr.mxu0 0.0
        %1976 = vmatpush1.msra.mxu0 0.0
        %1977 = vmatprep.subr.mxu0 0.0
        %1978 = vmatpush1.msra.mxu0 0.0
        %1979 = vmatprep.subr.mxu0 0.0
        %1980 = vmatpush1.msra.mxu0 0.0
        %1981 = vmatprep.subr.mxu0 0.0
        %1982 = vmatpush1.msra.mxu0 0.0
        %1983 = vmatprep.subr.mxu0 0.0
        %1984 = vmatpush1.msra.mxu0 0.0
        %1985 = vmatprep.subr.mxu0 0.0
        %1986 = vmatpush1.msra.mxu0 0.0
        %1987 = vmatprep.subr.mxu0 0.0
        %1988 = vmatpush1.msra.mxu0 0.0
        %1989 = vmatprep.subr.mxu0 0.0
        %1990 = vmatpush1.msra.mxu0 0.0
        %1991 = vmatprep.subr.mxu0 0.0
        %1992 = vmatpush1.msra.mxu0 0.0
        %1993 = vmatprep.subr.mxu0 0.0
        %1994 = vmatpush1.msra.mxu0 0.0
        %1995 = vmatprep.subr.mxu0 0.0
        %1996 = vmatpush1.msra.mxu0 0.0
        %1997 = vmatprep.subr.mxu0 0.0
        %1998 = vmatpush1.msra.mxu0 0.0
        %1999 = vmatprep.subr.mxu0 0.0
        %2000 = vmatpush1.msra.mxu0 0.0
        %2001 = vmatprep.subr.mxu0 0.0
        %2002 = vmatpush1.msra.mxu0 0.0
        %2003 = vmatprep.subr.mxu0 0.0
        %2004 = vmatpush1.msra.mxu0 0.0
        %2005 = vmatprep.subr.mxu0 0.0
        %2006 = vmatpush1.msra.mxu0 0.0
        %2007 = vmatprep.subr.mxu0 0.0
        %2008 = vmatpush1.msra.mxu0 0.0
        %2009 = vmatprep.subr.mxu0 0.0
        %2010 = vmatpush1.msra.mxu0 0.0
        %2011 = vmatprep.subr.mxu0 0.0
        %2012 = vmatpush1.msra.mxu0 0.0
        %2013 = vmatprep.subr.mxu0 0.0
        %2014 = vmatpush1.msra.mxu0 0.0
        %2015 = vmatprep.subr.mxu0 0.0
        %2016 = vmatpush1.msra.mxu0 0.0
        %2017 = vmatprep.mubr.f32.mxu0 0.0
        %2018 = vmatmul.mubr.f32.gmra.mrb[0].mxu0 %v1948
        %v2019 = vpop.f32.mrb[0].mxu0
        %v2020 = vadd.f32 0.0, %v2019
        %v2021 = vpop.f32.mrb[0].mxu0
        %2022 = vmatprep.mubr.f32.mxu0 0.0
        %2023 = vmatmul.mubr.f32.gmra.mrb[0].mxu0 %v1951
        %v2024 = vpop.f32.mrb[0].mxu0
        %v2025 = vadd.f32 0.0, %v2024
        %v2026 = vpop.f32.mrb[0].mxu0
        %2027 = vdwg.mxu0
        %v2028 = vpack.c.bf16 %v2025, %v2020
        %v2029 = vld [vmem:[%s10] sm:$0xf]
        %v2030 = vld [vmem:[%s10 + $0x4] sm:$0xf]
        %v2031 = vld [vmem:[%s10 + $0x8] sm:$0xf]
        %v2032 = vld [vmem:[%s10 + $0xc] sm:$0xf]
        %v2037 = vunpack.c.l.b16 %v2029
        %v2038 = vunpack.c.l.b16 %v2030
        %v2039 = vunpack.c.l.b16 %v2031
        %v2040 = vunpack.c.l.b16 %v2032
        %v2041 = vpack.c.b16 %v2038, %v2037
        %v2042 = vpack.c.b16 %v2040, %v2039
        %v2046 = vsel %vm495, %v2028, 0
        %2048 = vmatprep.subr.bf16.mxu0 0
        %2049 = vmatpush1.bf16.msra.mxu0 %v2041
        %2050 = vmatprep.subr.bf16.mxu0 0
        %2051 = vmatpush1.bf16.msra.mxu0 %v2042
        %2052 = vmatprep.subr.bf16.mxu0 0
        %2053 = vmatpush1.bf16.msra.mxu0 0
        %2054 = vmatprep.subr.bf16.mxu0 0
        %2055 = vmatpush1.bf16.msra.mxu0 0
        %2056 = vmatprep.subr.bf16.mxu0 0
        %2057 = vmatpush1.bf16.msra.mxu0 0
        %2058 = vmatprep.subr.bf16.mxu0 0
        %2059 = vmatpush1.bf16.msra.mxu0 0
        %2060 = vmatprep.subr.bf16.mxu0 0
        %2061 = vmatpush1.bf16.msra.mxu0 0
        %2062 = vmatprep.subr.bf16.mxu0 0
        %2063 = vmatpush1.bf16.msra.mxu0 0
        %2064 = vmatprep.subr.bf16.mxu0 0
        %2065 = vmatpush1.bf16.msra.mxu0 0
        %2066 = vmatprep.subr.bf16.mxu0 0
        %2067 = vmatpush1.bf16.msra.mxu0 0
        %2068 = vmatprep.subr.bf16.mxu0 0
        %2069 = vmatpush1.bf16.msra.mxu0 0
        %2070 = vmatprep.subr.bf16.mxu0 0
        %2071 = vmatpush1.bf16.msra.mxu0 0
        %2072 = vmatprep.subr.bf16.mxu0 0
        %2073 = vmatpush1.bf16.msra.mxu0 0
        %2074 = vmatprep.subr.bf16.mxu0 0
        %2075 = vmatpush1.bf16.msra.mxu0 0
        %2076 = vmatprep.subr.bf16.mxu0 0
        %2077 = vmatpush1.bf16.msra.mxu0 0
        %2078 = vmatprep.subr.bf16.mxu0 0
        %2079 = vmatpush1.bf16.msra.mxu0 0
        %2080 = vmatprep.mubr.bf16.mxu0 0
        %2081 = vmatmul.mubr.bf16.gmra.mrb[0].mxu0 %v2046
        %v2082 = vpop.f32.mrb[0].mxu0
        %v2083 = vadd.f32 0.0, %v2082
        %v2084 = vpop.f32.mrb[0].mxu0
        %v2085 = vpop.f32.mrb[0].mxu0
        %v2086 = vadd.f32 0.0, %v2085
        %v2087 = vpop.f32.mrb[0].mxu0
        %2088 = vdwg.mxu0
        %v2089 = vmax.f32 %v2083, 0.0
        %v2090 = vmax.f32 %v2086, 0.0
        %v2091 = vpack.c.bf16 %v2090, %v2089
        %v2092 = vld [vmem:[%s11] sm:$0xf]
        %v2093 = vld [vmem:[%s11 + $0x4] sm:$0xf]
        %v2094 = vld [vmem:[%s11 + $0x8] sm:$0xf]
        %v2095 = vld [vmem:[%s11 + $0xc] sm:$0xf]
        %v2096 = vld [vmem:[%s11 + $0x10] sm:$0xf]
        %v2097 = vld [vmem:[%s11 + $0x14] sm:$0xf]
        %v2098 = vld [vmem:[%s11 + $0x18] sm:$0xf]
        %v2099 = vld [vmem:[%s11 + $0x1c] sm:$0xf]
        %v2108 = vunpack.c.l.b16 %v2092
        %v2109 = vunpack.c.l.b16 %v2093
        %v2110 = vunpack.c.l.b16 %v2094
        %v2111 = vunpack.c.l.b16 %v2095
        %v2112 = vunpack.c.l.b16 %v2096
        %v2113 = vunpack.c.l.b16 %v2097
        %v2114 = vunpack.c.l.b16 %v2098
        %v2115 = vunpack.c.l.b16 %v2099
        %v2116 = vpack.c.b16 %v2109, %v2108
        %v2117 = vpack.c.b16 %v2111, %v2110
        %v2118 = vpack.c.b16 %v2113, %v2112
        %v2119 = vpack.c.b16 %v2115, %v2114
        %vm2124 = vcmask 523264
        %v2126 = vsel %vm2124, %v2091, 0
        %2128 = vmatprep.subr.bf16.mxu0 0
        %2129 = vmatpush1.bf16.msra.mxu0 %v2116
        %2130 = vmatprep.subr.bf16.mxu0 0
        %2131 = vmatpush1.bf16.msra.mxu0 %v2117
        %2132 = vmatprep.subr.bf16.mxu0 0
        %2133 = vmatpush1.bf16.msra.mxu0 %v2118
        %2134 = vmatprep.subr.bf16.mxu0 0
        %2135 = vmatpush1.bf16.msra.mxu0 %v2119
        %2136 = vmatprep.subr.bf16.mxu0 0
        %2137 = vmatpush1.bf16.msra.mxu0 0
        %2138 = vmatprep.subr.bf16.mxu0 0
        %2139 = vmatpush1.bf16.msra.mxu0 0
        %2140 = vmatprep.subr.bf16.mxu0 0
        %2141 = vmatpush1.bf16.msra.mxu0 0
        %2142 = vmatprep.subr.bf16.mxu0 0
        %2143 = vmatpush1.bf16.msra.mxu0 0
        %2144 = vmatprep.subr.bf16.mxu0 0
        %2145 = vmatpush1.bf16.msra.mxu0 0
        %2146 = vmatprep.subr.bf16.mxu0 0
        %2147 = vmatpush1.bf16.msra.mxu0 0
        %2148 = vmatprep.subr.bf16.mxu0 0
        %2149 = vmatpush1.bf16.msra.mxu0 0
        %2150 = vmatprep.subr.bf16.mxu0 0
        %2151 = vmatpush1.bf16.msra.mxu0 0
        %2152 = vmatprep.subr.bf16.mxu0 0
        %2153 = vmatpush1.bf16.msra.mxu0 0
        %2154 = vmatprep.subr.bf16.mxu0 0
        %2155 = vmatpush1.bf16.msra.mxu0 0
        %2156 = vmatprep.subr.bf16.mxu0 0
        %2157 = vmatpush1.bf16.msra.mxu0 0
        %2158 = vmatprep.subr.bf16.mxu0 0
        %2159 = vmatpush1.bf16.msra.mxu0 0
        %2160 = vmatprep.mubr.bf16.mxu0 0
        %2161 = vmatmul.mubr.bf16.gmra.mrb[0].mxu0 %v2126
        %v2162 = vpop.f32.mrb[0].mxu0
        %v2163 = vadd.f32 0.0, %v2162
        %v2164 = vpop.f32.mrb[0].mxu0
        %v2165 = vpop.f32.mrb[0].mxu0
        %v2166 = vadd.f32 0.0, %v2165
        %v2167 = vpop.f32.mrb[0].mxu0
        %2168 = vdwg.mxu0
        %v2169 = vadd.f32 %v2020, %v2163
        %v2170 = vadd.f32 %v2025, %v2166
        %2171 = vmatprep.subr.mxu0 0.0
        %2172 = vmatpush1.msra.mxu0 %v2169
        %2173 = vmatprep.subr.mxu0 0.0
        %2174 = vmatpush1.msra.mxu0 %v2170
        %2175 = vmatprep.subr.mxu0 0.0
        %2176 = vmatpush1.msra.mxu0 0.0
        %2177 = vmatprep.subr.mxu0 0.0
        %2178 = vmatpush1.msra.mxu0 0.0
        %2179 = vmatprep.subr.mxu0 0.0
        %2180 = vmatpush1.msra.mxu0 0.0
        %2181 = vmatprep.subr.mxu0 0.0
        %2182 = vmatpush1.msra.mxu0 0.0
        %2183 = vmatprep.subr.mxu0 0.0
        %2184 = vmatpush1.msra.mxu0 0.0
        %2185 = vmatprep.subr.mxu0 0.0
        %2186 = vmatpush1.msra.mxu0 0.0
        %2187 = vmatprep.subr.mxu0 0.0
        %2188 = vmatpush1.msra.mxu0 0.0
        %2189 = vmatprep.subr.mxu0 0.0
        %2190 = vmatpush1.msra.mxu0 0.0
        %2191 = vmatprep.subr.mxu0 0.0
        %2192 = vmatpush1.msra.mxu0 0.0
        %2193 = vmatprep.subr.mxu0 0.0
        %2194 = vmatpush1.msra.mxu0 0.0
        %2195 = vmatprep.subr.mxu0 0.0
        %2196 = vmatpush1.msra.mxu0 0.0
        %2197 = vmatprep.subr.mxu0 0.0
        %2198 = vmatpush1.msra.mxu0 0.0
        %2199 = vmatprep.subr.mxu0 0.0
        %2200 = vmatpush1.msra.mxu0 0.0
        %2201 = vmatprep.subr.mxu0 0.0
        %2202 = vmatpush1.msra.mxu0 0.0
        %2203 = vmatprep.subr.mxu0 0.0
        %2204 = vmatpush1.msra.mxu0 0.0
        %2205 = vmatprep.subr.mxu0 0.0
        %2206 = vmatpush1.msra.mxu0 0.0
        %2207 = vmatprep.subr.mxu0 0.0
        %2208 = vmatpush1.msra.mxu0 0.0
        %2209 = vmatprep.subr.mxu0 0.0
        %2210 = vmatpush1.msra.mxu0 0.0
        %2211 = vmatprep.subr.mxu0 0.0
        %2212 = vmatpush1.msra.mxu0 0.0
        %2213 = vmatprep.subr.mxu0 0.0
        %2214 = vmatpush1.msra.mxu0 0.0
        %2215 = vmatprep.subr.mxu0 0.0
        %2216 = vmatpush1.msra.mxu0 0.0
        %2217 = vmatprep.subr.mxu0 0.0
        %2218 = vmatpush1.msra.mxu0 0.0
        %2219 = vmatprep.subr.mxu0 0.0
        %2220 = vmatpush1.msra.mxu0 0.0
        %2221 = vmatprep.subr.mxu0 0.0
        %2222 = vmatpush1.msra.mxu0 0.0
        %2223 = vmatprep.subr.mxu0 0.0
        %2224 = vmatpush1.msra.mxu0 0.0
        %2225 = vmatprep.subr.mxu0 0.0
        %2226 = vmatpush1.msra.mxu0 0.0
        %2227 = vmatprep.subr.mxu0 0.0
        %2228 = vmatpush1.msra.mxu0 0.0
        %2229 = vmatprep.subr.mxu0 0.0
        %2230 = vmatpush1.msra.mxu0 0.0
        %2231 = vmatprep.subr.mxu0 0.0
        %2232 = vmatpush1.msra.mxu0 0.0
        %2233 = vmatprep.subr.mxu0 0.0
        %2234 = vmatpush1.msra.mxu0 0.0
        %2235 = vmatprep.mubr.f32.mxu0 0.0
        %2236 = vmatmul.mubr.f32.gmra.mrb[0].mxu0 %v1948
        %v2237 = vpop.f32.mrb[0].mxu0
        %v2238 = vadd.f32 0.0, %v2237
        %v2239 = vpop.f32.mrb[0].mxu0
        %2240 = vmatprep.mubr.f32.mxu0 0.0
        %2241 = vmatmul.mubr.f32.gmra.mrb[0].mxu0 %v1951
        %v2242 = vpop.f32.mrb[0].mxu0
        %v2243 = vadd.f32 0.0, %v2242
        %v2244 = vpop.f32.mrb[0].mxu0
        %2245 = vdwg.mxu0
        %v2246 = vpack.c.bf16 %v2243, %v2238
        %s2247 = scalar_lea.vmem %s2, 64
        %v2248 = vld [vmem:[%s2247] sm:$0xf]
        %v2249 = vld [vmem:[%s2247 + $0x4] sm:$0xf]
        %v2250 = vld [vmem:[%s2247 + $0x8] sm:$0xf]
        %v2251 = vld [vmem:[%s2247 + $0xc] sm:$0xf]
        %s2252 = scalar_lea.vmem %s3, 4
        %v2253 = vld [vmem:[%s2252] sm:$0x1]
        %v2255 = vlaneseq
        %v2256 = vshrl.u32 %v2255, 7
        %v2257 = vsub.s32 0, %v2256
        %v2258 = vrot.slane %v2253, %v2257
        %v2264 = vunpack.c.l.b16 %v2248
        %v2265 = vunpack.c.l.b16 %v2249
        %v2266 = vunpack.c.l.b16 %v2250
        %v2267 = vunpack.c.l.b16 %v2251
        %v2268 = vpack.c.b16 %v2265, %v2264
        %v2269 = vpack.c.b16 %v2267, %v2266
        %v2273 = vsel %vm495, %v2246, 0
        %2275 = vmatprep.subr.bf16.mxu0 0
        %2276 = vmatpush1.bf16.msra.mxu0 %v2268
        %2277 = vmatprep.subr.bf16.mxu0 0
        %2278 = vmatpush1.bf16.msra.mxu0 %v2269
        %2279 = vmatprep.subr.bf16.mxu0 0
        %2280 = vmatpush1.bf16.msra.mxu0 0
        %2281 = vmatprep.subr.bf16.mxu0 0
        %2282 = vmatpush1.bf16.msra.mxu0 0
        %2283 = vmatprep.subr.bf16.mxu0 0
        %2284 = vmatpush1.bf16.msra.mxu0 0
        %2285 = vmatprep.subr.bf16.mxu0 0
        %2286 = vmatpush1.bf16.msra.mxu0 0
        %2287 = vmatprep.subr.bf16.mxu0 0
        %2288 = vmatpush1.bf16.msra.mxu0 0
        %2289 = vmatprep.subr.bf16.mxu0 0
        %2290 = vmatpush1.bf16.msra.mxu0 0
        %2291 = vmatprep.subr.bf16.mxu0 0
        %2292 = vmatpush1.bf16.msra.mxu0 0
        %2293 = vmatprep.subr.bf16.mxu0 0
        %2294 = vmatpush1.bf16.msra.mxu0 0
        %2295 = vmatprep.subr.bf16.mxu0 0
        %2296 = vmatpush1.bf16.msra.mxu0 0
        %2297 = vmatprep.subr.bf16.mxu0 0
        %2298 = vmatpush1.bf16.msra.mxu0 0
        %2299 = vmatprep.subr.bf16.mxu0 0
        %2300 = vmatpush1.bf16.msra.mxu0 0
        %2301 = vmatprep.subr.bf16.mxu0 0
        %2302 = vmatpush1.bf16.msra.mxu0 0
        %2303 = vmatprep.subr.bf16.mxu0 0
        %2304 = vmatpush1.bf16.msra.mxu0 0
        %2305 = vmatprep.subr.bf16.mxu0 0
        %2306 = vmatpush1.bf16.msra.mxu0 0
        %2307 = vmatprep.mubr.bf16.mxu0 0
        %2308 = vmatmul.mubr.bf16.gmra.mrb[0].mxu0 %v2273
        %v2309 = vpop.f32.mrb[0].mxu0
        %v2310 = vadd.f32 %v2258, %v2309
        %v2311 = vpop.f32.mrb[0].mxu0
        %v2312 = vpop.f32.mrb[0].mxu0
        %v2313 = vadd.f32 %v2258, %v2312
        %v2314 = vpop.f32.mrb[0].mxu0
        %2315 = vdwg.mxu0
        %s2316 = scalar_lea.vmem %s4, 64
        %v2317 = vld [vmem:[%s2316] sm:$0xf]
        %v2318 = vld [vmem:[%s2316 + $0x4] sm:$0xf]
        %v2319 = vld [vmem:[%s2316 + $0x8] sm:$0xf]
        %v2320 = vld [vmem:[%s2316 + $0xc] sm:$0xf]
        %s2321 = scalar_lea.vmem %s5, 4
        %v2322 = vld [vmem:[%s2321] sm:$0x1]
        %v2324 = vlaneseq
        %v2325 = vshrl.u32 %v2324, 7
        %v2326 = vsub.s32 0, %v2325
        %v2327 = vrot.slane %v2322, %v2326
        %v2333 = vunpack.c.l.b16 %v2317
        %v2334 = vunpack.c.l.b16 %v2318
        %v2335 = vunpack.c.l.b16 %v2319
        %v2336 = vunpack.c.l.b16 %v2320
        %v2337 = vpack.c.b16 %v2334, %v2333
        %v2338 = vpack.c.b16 %v2336, %v2335
        %2341 = vmatprep.subr.bf16.mxu0 0
        %2342 = vmatpush1.bf16.msra.mxu0 %v2337
        %2343 = vmatprep.subr.bf16.mxu0 0
        %2344 = vmatpush1.bf16.msra.mxu0 %v2338
        %2345 = vmatprep.subr.bf16.mxu0 0
        %2346 = vmatpush1.bf16.msra.mxu0 0
        %2347 = vmatprep.subr.bf16.mxu0 0
        %2348 = vmatpush1.bf16.msra.mxu0 0
        %2349 = vmatprep.subr.bf16.mxu0 0
        %2350 = vmatpush1.bf16.msra.mxu0 0
        %2351 = vmatprep.subr.bf16.mxu0 0
        %2352 = vmatpush1.bf16.msra.mxu0 0
        %2353 = vmatprep.subr.bf16.mxu0 0
        %2354 = vmatpush1.bf16.msra.mxu0 0
        %2355 = vmatprep.subr.bf16.mxu0 0
        %2356 = vmatpush1.bf16.msra.mxu0 0
        %2357 = vmatprep.subr.bf16.mxu0 0
        %2358 = vmatpush1.bf16.msra.mxu0 0
        %2359 = vmatprep.subr.bf16.mxu0 0
        %2360 = vmatpush1.bf16.msra.mxu0 0
        %2361 = vmatprep.subr.bf16.mxu0 0
        %2362 = vmatpush1.bf16.msra.mxu0 0
        %2363 = vmatprep.subr.bf16.mxu0 0
        %2364 = vmatpush1.bf16.msra.mxu0 0
        %2365 = vmatprep.subr.bf16.mxu0 0
        %2366 = vmatpush1.bf16.msra.mxu0 0
        %2367 = vmatprep.subr.bf16.mxu0 0
        %2368 = vmatpush1.bf16.msra.mxu0 0
        %2369 = vmatprep.subr.bf16.mxu0 0
        %2370 = vmatpush1.bf16.msra.mxu0 0
        %2371 = vmatprep.subr.bf16.mxu0 0
        %2372 = vmatpush1.bf16.msra.mxu0 0
        %2373 = vmatprep.mubr.bf16.mxu0 0
        %2374 = vmatmul.mubr.bf16.gmra.mrb[0].mxu0 %v2273
        %v2375 = vpop.f32.mrb[0].mxu0
        %v2376 = vadd.f32 %v2327, %v2375
        %v2377 = vpop.f32.mrb[0].mxu0
        %v2378 = vpop.f32.mrb[0].mxu0
        %v2379 = vadd.f32 %v2327, %v2378
        %v2380 = vpop.f32.mrb[0].mxu0
        %2381 = vdwg.mxu0
        %s2382 = scalar_lea.vmem %s6, 64
        %v2383 = vld [vmem:[%s2382] sm:$0xf]
        %v2384 = vld [vmem:[%s2382 + $0x4] sm:$0xf]
        %v2385 = vld [vmem:[%s2382 + $0x8] sm:$0xf]
        %v2386 = vld [vmem:[%s2382 + $0xc] sm:$0xf]
        %s2387 = scalar_lea.vmem %s7, 4
        %v2388 = vld [vmem:[%s2387] sm:$0x1]
        %v2390 = vlaneseq
        %v2391 = vshrl.u32 %v2390, 7
        %v2392 = vsub.s32 0, %v2391
        %v2393 = vrot.slane %v2388, %v2392
        %v2399 = vunpack.c.l.b16 %v2383
        %v2400 = vunpack.c.l.b16 %v2384
        %v2401 = vunpack.c.l.b16 %v2385
        %v2402 = vunpack.c.l.b16 %v2386
        %v2403 = vpack.c.b16 %v2400, %v2399
        %v2404 = vpack.c.b16 %v2402, %v2401
        %2407 = vmatprep.subr.bf16.mxu0 0
        %2408 = vmatpush1.bf16.msra.mxu0 %v2403
        %2409 = vmatprep.subr.bf16.mxu0 0
        %2410 = vmatpush1.bf16.msra.mxu0 %v2404
        %2411 = vmatprep.subr.bf16.mxu0 0
        %2412 = vmatpush1.bf16.msra.mxu0 0
        %2413 = vmatprep.subr.bf16.mxu0 0
        %2414 = vmatpush1.bf16.msra.mxu0 0
        %2415 = vmatprep.subr.bf16.mxu0 0
        %2416 = vmatpush1.bf16.msra.mxu0 0
        %2417 = vmatprep.subr.bf16.mxu0 0
        %2418 = vmatpush1.bf16.msra.mxu0 0
        %2419 = vmatprep.subr.bf16.mxu0 0
        %2420 = vmatpush1.bf16.msra.mxu0 0
        %2421 = vmatprep.subr.bf16.mxu0 0
        %2422 = vmatpush1.bf16.msra.mxu0 0
        %2423 = vmatprep.subr.bf16.mxu0 0
        %2424 = vmatpush1.bf16.msra.mxu0 0
        %2425 = vmatprep.subr.bf16.mxu0 0
        %2426 = vmatpush1.bf16.msra.mxu0 0
        %2427 = vmatprep.subr.bf16.mxu0 0
        %2428 = vmatpush1.bf16.msra.mxu0 0
        %2429 = vmatprep.subr.bf16.mxu0 0
        %2430 = vmatpush1.bf16.msra.mxu0 0
        %2431 = vmatprep.subr.bf16.mxu0 0
        %2432 = vmatpush1.bf16.msra.mxu0 0
        %2433 = vmatprep.subr.bf16.mxu0 0
        %2434 = vmatpush1.bf16.msra.mxu0 0
        %2435 = vmatprep.subr.bf16.mxu0 0
        %2436 = vmatpush1.bf16.msra.mxu0 0
        %2437 = vmatprep.subr.bf16.mxu0 0
        %2438 = vmatpush1.bf16.msra.mxu0 0
        %2439 = vmatprep.mubr.bf16.mxu0 0
        %2440 = vmatmul.mubr.bf16.gmra.mrb[0].mxu0 %v2273
        %v2441 = vpop.f32.mrb[0].mxu0
        %v2442 = vadd.f32 %v2393, %v2441
        %v2443 = vpop.f32.mrb[0].mxu0
        %v2444 = vpop.f32.mrb[0].mxu0
        %v2445 = vadd.f32 %v2393, %v2444
        %v2446 = vpop.f32.mrb[0].mxu0
        %2447 = vdwg.mxu0
        %v2448 = vpack.c.bf16 %v2313, %v2310
        %v2449 = vpack.c.bf16 %v2379, %v2376
        %v2451 = vsel %vm670, %v2448, 0
        %v2454 = vsel %vm670, %v2449, 0
        %2456 = vmatprep.subr.bf16.mxu0 0
        %2457 = vmatpush1.bf16.xpose.msra.mxu0 %v2454
        %2458 = vmatprep.subr.bf16.mxu0 0
        %2459 = vmatpush1.bf16.xpose.msra.mxu0 0
        %2460 = vmatprep.subr.bf16.mxu0 0
        %2461 = vmatpush1.bf16.xpose.msra.mxu0 0
        %2462 = vmatprep.subr.bf16.mxu0 0
        %2463 = vmatpush1.bf16.xpose.msra.mxu0 0
        %2464 = vmatprep.subr.bf16.mxu0 0
        %2465 = vmatpush1.bf16.xpose.msra.mxu0 0
        %2466 = vmatprep.subr.bf16.mxu0 0
        %2467 = vmatpush1.bf16.xpose.msra.mxu0 0
        %2468 = vmatprep.subr.bf16.mxu0 0
        %2469 = vmatpush1.bf16.xpose.msra.mxu0 0
        %2470 = vmatprep.subr.bf16.mxu0 0
        %2471 = vmatpush1.bf16.xpose.msra.mxu0 0
        %2472 = vmatprep.subr.bf16.mxu0 0
        %2473 = vmatpush1.bf16.xpose.msra.mxu0 0
        %2474 = vmatprep.subr.bf16.mxu0 0
        %2475 = vmatpush1.bf16.xpose.msra.mxu0 0
        %2476 = vmatprep.subr.bf16.mxu0 0
        %2477 = vmatpush1.bf16.xpose.msra.mxu0 0
        %2478 = vmatprep.subr.bf16.mxu0 0
        %2479 = vmatpush1.bf16.xpose.msra.mxu0 0
        %2480 = vmatprep.subr.bf16.mxu0 0
        %2481 = vmatpush1.bf16.xpose.msra.mxu0 0
        %2482 = vmatprep.subr.bf16.mxu0 0
        %2483 = vmatpush1.bf16.xpose.msra.mxu0 0
        %2484 = vmatprep.subr.bf16.mxu0 0
        %2485 = vmatpush1.bf16.xpose.msra.mxu0 0
        %2486 = vmatprep.subr.bf16.mxu0 0
        %2487 = vmatpush1.bf16.xpose.msra.mxu0 0
        %2488 = vmatprep.mubr.bf16.mxu0 0
        %2489 = vmatmul.mubr.bf16.gmra.mrb[0].mxu0 %v2451
        %v2490 = vpop.f32.mrb[0].mxu0
        %v2491 = vadd.f32 0.0, %v2490
        %v2492 = vpop.f32.mrb[0].mxu0
        %v2493 = vpop.f32.mrb[0].mxu0
        %v2494 = vadd.f32 0.0, %v2493
        %v2495 = vpop.f32.mrb[0].mxu0
        %2496 = vdwg.mxu0
        %v2497 = vsel %vm718, %v2491, -inf
        %2498 = vmax.xlane.f32.xlu0 %v2497
        %v2499 = vpop.xlane.xlu0 %2498
        %v2500 = vsel %vm718, %v2494, -inf
        %2501 = vmax.xlane.f32.xlu0 %v2500
        %v2502 = vpop.xlane.xlu0 %2501
        %v2503 = vsub.f32 %v2491, %v2499
        %v2504 = vsub.f32 %v2494, %v2502
        %v2505 = vmul.f32 %v2503, 1.442695
        %v2506 = vpow.pop %v2505
        %v2507 = vmul.f32 %v2504, 1.442695
        %v2508 = vpow.pop %v2507
        %v2509 = vsel %vm718, %v2506, 0.0
        %2510 = vadd.xlane.f32.xlu0 %v2509
        %v2511 = vpop.xlane.xlu0 %2510
        %v2512 = vsel %vm718, %v2508, 0.0
        %2513 = vadd.xlane.f32.xlu0 %v2512
        %v2514 = vpop.xlane.xlu0 %2513
        %v2515 = vrcp.pop %v2511
        %v2516 = vmul.f32 %v2506, %v2515
        %v2517 = vrcp.pop %v2514
        %v2518 = vmul.f32 %v2508, %v2517
        %v2519 = vpack.c.bf16 %v2518, %v2516
        %v2520 = vpack.c.bf16 %v2445, %v2442
        %v2522 = vsel %vm718, %v2519, 0
        %2524 = vmatprep.subr.bf16.mxu0 0
        %2525 = vmatpush1.bf16.msra.mxu0 %v2520
        %2526 = vmatprep.subr.bf16.mxu0 0
        %2527 = vmatpush1.bf16.msra.mxu0 0
        %2528 = vmatprep.subr.bf16.mxu0 0
        %2529 = vmatpush1.bf16.msra.mxu0 0
        %2530 = vmatprep.subr.bf16.mxu0 0
        %2531 = vmatpush1.bf16.msra.mxu0 0
        %2532 = vmatprep.subr.bf16.mxu0 0
        %2533 = vmatpush1.bf16.msra.mxu0 0
        %2534 = vmatprep.subr.bf16.mxu0 0
        %2535 = vmatpush1.bf16.msra.mxu0 0
        %2536 = vmatprep.subr.bf16.mxu0 0
        %2537 = vmatpush1.bf16.msra.mxu0 0
        %2538 = vmatprep.subr.bf16.mxu0 0
        %2539 = vmatpush1.bf16.msra.mxu0 0
        %2540 = vmatprep.subr.bf16.mxu0 0
        %2541 = vmatpush1.bf16.msra.mxu0 0
        %2542 = vmatprep.subr.bf16.mxu0 0
        %2543 = vmatpush1.bf16.msra.mxu0 0
        %2544 = vmatprep.subr.bf16.mxu0 0
        %2545 = vmatpush1.bf16.msra.mxu0 0
        %2546 = vmatprep.subr.bf16.mxu0 0
        %2547 = vmatpush1.bf16.msra.mxu0 0
        %2548 = vmatprep.subr.bf16.mxu0 0
        %2549 = vmatpush1.bf16.msra.mxu0 0
        %2550 = vmatprep.subr.bf16.mxu0 0
        %2551 = vmatpush1.bf16.msra.mxu0 0
        %2552 = vmatprep.subr.bf16.mxu0 0
        %2553 = vmatpush1.bf16.msra.mxu0 0
        %2554 = vmatprep.subr.bf16.mxu0 0
        %2555 = vmatpush1.bf16.msra.mxu0 0
        %2556 = vmatprep.mubr.bf16.mxu0 0
        %2557 = vmatmul.mubr.bf16.gmra.mrb[0].mxu0 %v2522
        %v2558 = vpop.f32.mrb[0].mxu0
        %v2559 = vadd.f32 0.0, %v2558
        %v2560 = vpop.f32.mrb[0].mxu0
        %v2561 = vpop.f32.mrb[0].mxu0
        %v2562 = vadd.f32 0.0, %v2561
        %v2563 = vpop.f32.mrb[0].mxu0
        %2564 = vdwg.mxu0
        %v2565 = vpack.c.bf16 %v2562, %v2559
        %s2566 = scalar_lea.vmem %s8, 16
        %v2567 = vld [vmem:[%s2566] sm:$0xf]
        %s2568 = scalar_lea.vmem %s2, 80
        %v2569 = vld [vmem:[%s2568] sm:$0xf]
        %v2570 = vld [vmem:[%s2568 + $0x4] sm:$0xf]
        %v2571 = vld [vmem:[%s2568 + $0x8] sm:$0xf]
        %v2572 = vld [vmem:[%s2568 + $0xc] sm:$0xf]
        %s2573 = scalar_lea.vmem %s3, 5
        %v2574 = vld [vmem:[%s2573] sm:$0x1]
        %v2576 = vlaneseq
        %v2577 = vshrl.u32 %v2576, 7
        %v2578 = vsub.s32 0, %v2577
        %v2579 = vrot.slane %v2574, %v2578
        %v2585 = vunpack.c.l.b16 %v2569
        %v2586 = vunpack.c.l.b16 %v2570
        %v2587 = vunpack.c.l.b16 %v2571
        %v2588 = vunpack.c.l.b16 %v2572
        %v2589 = vpack.c.b16 %v2586, %v2585
        %v2590 = vpack.c.b16 %v2588, %v2587
        %2593 = vmatprep.subr.bf16.mxu0 0
        %2594 = vmatpush1.bf16.msra.mxu0 %v2589
        %2595 = vmatprep.subr.bf16.mxu0 0
        %2596 = vmatpush1.bf16.msra.mxu0 %v2590
        %2597 = vmatprep.subr.bf16.mxu0 0
        %2598 = vmatpush1.bf16.msra.mxu0 0
        %2599 = vmatprep.subr.bf16.mxu0 0
        %2600 = vmatpush1.bf16.msra.mxu0 0
        %2601 = vmatprep.subr.bf16.mxu0 0
        %2602 = vmatpush1.bf16.msra.mxu0 0
        %2603 = vmatprep.subr.bf16.mxu0 0
        %2604 = vmatpush1.bf16.msra.mxu0 0
        %2605 = vmatprep.subr.bf16.mxu0 0
        %2606 = vmatpush1.bf16.msra.mxu0 0
        %2607 = vmatprep.subr.bf16.mxu0 0
        %2608 = vmatpush1.bf16.msra.mxu0 0
        %2609 = vmatprep.subr.bf16.mxu0 0
        %2610 = vmatpush1.bf16.msra.mxu0 0
        %2611 = vmatprep.subr.bf16.mxu0 0
        %2612 = vmatpush1.bf16.msra.mxu0 0
        %2613 = vmatprep.subr.bf16.mxu0 0
        %2614 = vmatpush1.bf16.msra.mxu0 0
        %2615 = vmatprep.subr.bf16.mxu0 0
        %2616 = vmatpush1.bf16.msra.mxu0 0
        %2617 = vmatprep.subr.bf16.mxu0 0
        %2618 = vmatpush1.bf16.msra.mxu0 0
        %2619 = vmatprep.subr.bf16.mxu0 0
        %2620 = vmatpush1.bf16.msra.mxu0 0
        %2621 = vmatprep.subr.bf16.mxu0 0
        %2622 = vmatpush1.bf16.msra.mxu0 0
        %2623 = vmatprep.subr.bf16.mxu0 0
        %2624 = vmatpush1.bf16.msra.mxu0 0
        %2625 = vmatprep.mubr.bf16.mxu0 0
        %2626 = vmatmul.mubr.bf16.gmra.mrb[0].mxu0 %v2273
        %v2627 = vpop.f32.mrb[0].mxu0
        %v2628 = vadd.f32 %v2579, %v2627
        %v2629 = vpop.f32.mrb[0].mxu0
        %v2630 = vpop.f32.mrb[0].mxu0
        %v2631 = vadd.f32 %v2579, %v2630
        %v2632 = vpop.f32.mrb[0].mxu0
        %2633 = vdwg.mxu0
        %s2634 = scalar_lea.vmem %s4, 80
        %v2635 = vld [vmem:[%s2634] sm:$0xf]
        %v2636 = vld [vmem:[%s2634 + $0x4] sm:$0xf]
        %v2637 = vld [vmem:[%s2634 + $0x8] sm:$0xf]
        %v2638 = vld [vmem:[%s2634 + $0xc] sm:$0xf]
        %s2639 = scalar_lea.vmem %s5, 5
        %v2640 = vld [vmem:[%s2639] sm:$0x1]
        %v2642 = vlaneseq
        %v2643 = vshrl.u32 %v2642, 7
        %v2644 = vsub.s32 0, %v2643
        %v2645 = vrot.slane %v2640, %v2644
        %v2651 = vunpack.c.l.b16 %v2635
        %v2652 = vunpack.c.l.b16 %v2636
        %v2653 = vunpack.c.l.b16 %v2637
        %v2654 = vunpack.c.l.b16 %v2638
        %v2655 = vpack.c.b16 %v2652, %v2651
        %v2656 = vpack.c.b16 %v2654, %v2653
        %2659 = vmatprep.subr.bf16.mxu0 0
        %2660 = vmatpush1.bf16.msra.mxu0 %v2655
        %2661 = vmatprep.subr.bf16.mxu0 0
        %2662 = vmatpush1.bf16.msra.mxu0 %v2656
        %2663 = vmatprep.subr.bf16.mxu0 0
        %2664 = vmatpush1.bf16.msra.mxu0 0
        %2665 = vmatprep.subr.bf16.mxu0 0
        %2666 = vmatpush1.bf16.msra.mxu0 0
        %2667 = vmatprep.subr.bf16.mxu0 0
        %2668 = vmatpush1.bf16.msra.mxu0 0
        %2669 = vmatprep.subr.bf16.mxu0 0
        %2670 = vmatpush1.bf16.msra.mxu0 0
        %2671 = vmatprep.subr.bf16.mxu0 0
        %2672 = vmatpush1.bf16.msra.mxu0 0
        %2673 = vmatprep.subr.bf16.mxu0 0
        %2674 = vmatpush1.bf16.msra.mxu0 0
        %2675 = vmatprep.subr.bf16.mxu0 0
        %2676 = vmatpush1.bf16.msra.mxu0 0
        %2677 = vmatprep.subr.bf16.mxu0 0
        %2678 = vmatpush1.bf16.msra.mxu0 0
        %2679 = vmatprep.subr.bf16.mxu0 0
        %2680 = vmatpush1.bf16.msra.mxu0 0
        %2681 = vmatprep.subr.bf16.mxu0 0
        %2682 = vmatpush1.bf16.msra.mxu0 0
        %2683 = vmatprep.subr.bf16.mxu0 0
        %2684 = vmatpush1.bf16.msra.mxu0 0
        %2685 = vmatprep.subr.bf16.mxu0 0
        %2686 = vmatpush1.bf16.msra.mxu0 0
        %2687 = vmatprep.subr.bf16.mxu0 0
        %2688 = vmatpush1.bf16.msra.mxu0 0
        %2689 = vmatprep.subr.bf16.mxu0 0
        %2690 = vmatpush1.bf16.msra.mxu0 0
        %2691 = vmatprep.mubr.bf16.mxu0 0
        %2692 = vmatmul.mubr.bf16.gmra.mrb[0].mxu0 %v2273
        %v2693 = vpop.f32.mrb[0].mxu0
        %v2694 = vadd.f32 %v2645, %v2693
        %v2695 = vpop.f32.mrb[0].mxu0
        %v2696 = vpop.f32.mrb[0].mxu0
        %v2697 = vadd.f32 %v2645, %v2696
        %v2698 = vpop.f32.mrb[0].mxu0
        %2699 = vdwg.mxu0
        %s2700 = scalar_lea.vmem %s6, 80
        %v2701 = vld [vmem:[%s2700] sm:$0xf]
        %v2702 = vld [vmem:[%s2700 + $0x4] sm:$0xf]
        %v2703 = vld [vmem:[%s2700 + $0x8] sm:$0xf]
        %v2704 = vld [vmem:[%s2700 + $0xc] sm:$0xf]
        %s2705 = scalar_lea.vmem %s7, 5
        %v2706 = vld [vmem:[%s2705] sm:$0x1]
        %v2708 = vlaneseq
        %v2709 = vshrl.u32 %v2708, 7
        %v2710 = vsub.s32 0, %v2709
        %v2711 = vrot.slane %v2706, %v2710
        %v2717 = vunpack.c.l.b16 %v2701
        %v2718 = vunpack.c.l.b16 %v2702
        %v2719 = vunpack.c.l.b16 %v2703
        %v2720 = vunpack.c.l.b16 %v2704
        %v2721 = vpack.c.b16 %v2718, %v2717
        %v2722 = vpack.c.b16 %v2720, %v2719
        %2725 = vmatprep.subr.bf16.mxu0 0
        %2726 = vmatpush1.bf16.msra.mxu0 %v2721
        %2727 = vmatprep.subr.bf16.mxu0 0
        %2728 = vmatpush1.bf16.msra.mxu0 %v2722
        %2729 = vmatprep.subr.bf16.mxu0 0
        %2730 = vmatpush1.bf16.msra.mxu0 0
        %2731 = vmatprep.subr.bf16.mxu0 0
        %2732 = vmatpush1.bf16.msra.mxu0 0
        %2733 = vmatprep.subr.bf16.mxu0 0
        %2734 = vmatpush1.bf16.msra.mxu0 0
        %2735 = vmatprep.subr.bf16.mxu0 0
        %2736 = vmatpush1.bf16.msra.mxu0 0
        %2737 = vmatprep.subr.bf16.mxu0 0
        %2738 = vmatpush1.bf16.msra.mxu0 0
        %2739 = vmatprep.subr.bf16.mxu0 0
        %2740 = vmatpush1.bf16.msra.mxu0 0
        %2741 = vmatprep.subr.bf16.mxu0 0
        %2742 = vmatpush1.bf16.msra.mxu0 0
        %2743 = vmatprep.subr.bf16.mxu0 0
        %2744 = vmatpush1.bf16.msra.mxu0 0
        %2745 = vmatprep.subr.bf16.mxu0 0
        %2746 = vmatpush1.bf16.msra.mxu0 0
        %2747 = vmatprep.subr.bf16.mxu0 0
        %2748 = vmatpush1.bf16.msra.mxu0 0
        %2749 = vmatprep.subr.bf16.mxu0 0
        %2750 = vmatpush1.bf16.msra.mxu0 0
        %2751 = vmatprep.subr.bf16.mxu0 0
        %2752 = vmatpush1.bf16.msra.mxu0 0
        %2753 = vmatprep.subr.bf16.mxu0 0
        %2754 = vmatpush1.bf16.msra.mxu0 0
        %2755 = vmatprep.subr.bf16.mxu0 0
        %2756 = vmatpush1.bf16.msra.mxu0 0
        %2757 = vmatprep.mubr.bf16.mxu0 0
        %2758 = vmatmul.mubr.bf16.gmra.mrb[0].mxu0 %v2273
        %v2759 = vpop.f32.mrb[0].mxu0
        %v2760 = vadd.f32 %v2711, %v2759
        %v2761 = vpop.f32.mrb[0].mxu0
        %v2762 = vpop.f32.mrb[0].mxu0
        %v2763 = vadd.f32 %v2711, %v2762
        %v2764 = vpop.f32.mrb[0].mxu0
        %2765 = vdwg.mxu0
        %v2766 = vpack.c.bf16 %v2631, %v2628
        %v2767 = vpack.c.bf16 %v2697, %v2694
        %v2769 = vsel %vm670, %v2766, 0
        %v2772 = vsel %vm670, %v2767, 0
        %2774 = vmatprep.subr.bf16.mxu0 0
        %2775 = vmatpush1.bf16.xpose.msra.mxu0 %v2772
        %2776 = vmatprep.subr.bf16.mxu0 0
        %2777 = vmatpush1.bf16.xpose.msra.mxu0 0
        %2778 = vmatprep.subr.bf16.mxu0 0
        %2779 = vmatpush1.bf16.xpose.msra.mxu0 0
        %2780 = vmatprep.subr.bf16.mxu0 0
        %2781 = vmatpush1.bf16.xpose.msra.mxu0 0
        %2782 = vmatprep.subr.bf16.mxu0 0
        %2783 = vmatpush1.bf16.xpose.msra.mxu0 0
        %2784 = vmatprep.subr.bf16.mxu0 0
        %2785 = vmatpush1.bf16.xpose.msra.mxu0 0
        %2786 = vmatprep.subr.bf16.mxu0 0
        %2787 = vmatpush1.bf16.xpose.msra.mxu0 0
        %2788 = vmatprep.subr.bf16.mxu0 0
        %2789 = vmatpush1.bf16.xpose.msra.mxu0 0
        %2790 = vmatprep.subr.bf16.mxu0 0
        %2791 = vmatpush1.bf16.xpose.msra.mxu0 0
        %2792 = vmatprep.subr.bf16.mxu0 0
        %2793 = vmatpush1.bf16.xpose.msra.mxu0 0
        %2794 = vmatprep.subr.bf16.mxu0 0
        %2795 = vmatpush1.bf16.xpose.msra.mxu0 0
        %2796 = vmatprep.subr.bf16.mxu0 0
        %2797 = vmatpush1.bf16.xpose.msra.mxu0 0
        %2798 = vmatprep.subr.bf16.mxu0 0
        %2799 = vmatpush1.bf16.xpose.msra.mxu0 0
        %2800 = vmatprep.subr.bf16.mxu0 0
        %2801 = vmatpush1.bf16.xpose.msra.mxu0 0
        %2802 = vmatprep.subr.bf16.mxu0 0
        %2803 = vmatpush1.bf16.xpose.msra.mxu0 0
        %2804 = vmatprep.subr.bf16.mxu0 0
        %2805 = vmatpush1.bf16.xpose.msra.mxu0 0
        %2806 = vmatprep.mubr.bf16.mxu0 0
        %2807 = vmatmul.mubr.bf16.gmra.mrb[0].mxu0 %v2769
        %v2808 = vpop.f32.mrb[0].mxu0
        %v2809 = vadd.f32 0.0, %v2808
        %v2810 = vpop.f32.mrb[0].mxu0
        %v2811 = vpop.f32.mrb[0].mxu0
        %v2812 = vadd.f32 0.0, %v2811
        %v2813 = vpop.f32.mrb[0].mxu0
        %2814 = vdwg.mxu0
        %v2815 = vsel %vm718, %v2809, -inf
        %2816 = vmax.xlane.f32.xlu0 %v2815
        %v2817 = vpop.xlane.xlu0 %2816
        %v2818 = vsel %vm718, %v2812, -inf
        %2819 = vmax.xlane.f32.xlu0 %v2818
        %v2820 = vpop.xlane.xlu0 %2819
        %v2821 = vsub.f32 %v2809, %v2817
        %v2822 = vsub.f32 %v2812, %v2820
        %v2823 = vmul.f32 %v2821, 1.442695
        %v2824 = vpow.pop %v2823
        %v2825 = vmul.f32 %v2822, 1.442695
        %v2826 = vpow.pop %v2825
        %v2827 = vsel %vm718, %v2824, 0.0
        %2828 = vadd.xlane.f32.xlu0 %v2827
        %v2829 = vpop.xlane.xlu0 %2828
        %v2830 = vsel %vm718, %v2826, 0.0
        %2831 = vadd.xlane.f32.xlu0 %v2830
        %v2832 = vpop.xlane.xlu0 %2831
        %v2833 = vrcp.pop %v2829
        %v2834 = vmul.f32 %v2824, %v2833
        %v2835 = vrcp.pop %v2832
        %v2836 = vmul.f32 %v2826, %v2835
        %v2837 = vpack.c.bf16 %v2836, %v2834
        %v2838 = vpack.c.bf16 %v2763, %v2760
        %v2840 = vsel %vm718, %v2837, 0
        %2842 = vmatprep.subr.bf16.mxu0 0
        %2843 = vmatpush1.bf16.msra.mxu0 %v2838
        %2844 = vmatprep.subr.bf16.mxu0 0
        %2845 = vmatpush1.bf16.msra.mxu0 0
        %2846 = vmatprep.subr.bf16.mxu0 0
        %2847 = vmatpush1.bf16.msra.mxu0 0
        %2848 = vmatprep.subr.bf16.mxu0 0
        %2849 = vmatpush1.bf16.msra.mxu0 0
        %2850 = vmatprep.subr.bf16.mxu0 0
        %2851 = vmatpush1.bf16.msra.mxu0 0
        %2852 = vmatprep.subr.bf16.mxu0 0
        %2853 = vmatpush1.bf16.msra.mxu0 0
        %2854 = vmatprep.subr.bf16.mxu0 0
        %2855 = vmatpush1.bf16.msra.mxu0 0
        %2856 = vmatprep.subr.bf16.mxu0 0
        %2857 = vmatpush1.bf16.msra.mxu0 0
        %2858 = vmatprep.subr.bf16.mxu0 0
        %2859 = vmatpush1.bf16.msra.mxu0 0
        %2860 = vmatprep.subr.bf16.mxu0 0
        %2861 = vmatpush1.bf16.msra.mxu0 0
        %2862 = vmatprep.subr.bf16.mxu0 0
        %2863 = vmatpush1.bf16.msra.mxu0 0
        %2864 = vmatprep.subr.bf16.mxu0 0
        %2865 = vmatpush1.bf16.msra.mxu0 0
        %2866 = vmatprep.subr.bf16.mxu0 0
        %2867 = vmatpush1.bf16.msra.mxu0 0
        %2868 = vmatprep.subr.bf16.mxu0 0
        %2869 = vmatpush1.bf16.msra.mxu0 0
        %2870 = vmatprep.subr.bf16.mxu0 0
        %2871 = vmatpush1.bf16.msra.mxu0 0
        %2872 = vmatprep.subr.bf16.mxu0 0
        %2873 = vmatpush1.bf16.msra.mxu0 0
        %2874 = vmatprep.mubr.bf16.mxu0 0
        %2875 = vmatmul.mubr.bf16.gmra.mrb[0].mxu0 %v2840
        %v2876 = vpop.f32.mrb[0].mxu0
        %v2877 = vadd.f32 0.0, %v2876
        %v2878 = vpop.f32.mrb[0].mxu0
        %v2879 = vpop.f32.mrb[0].mxu0
        %v2880 = vadd.f32 0.0, %v2879
        %v2881 = vpop.f32.mrb[0].mxu0
        %2882 = vdwg.mxu0
        %v2883 = vpack.c.bf16 %v2880, %v2877
        %s2884 = scalar_lea.vmem %s8, 20
        %v2885 = vld [vmem:[%s2884] sm:$0xf]
        %v2887 = vsel %vm670, %v2883, 0
        %v2890 = vsel %vm1110, %v2885, 0
        %2892 = vmatprep.subr.bf16.mxu0 0
        %2893 = vmatpush1.bf16.msra.mxu0 %v2890
        %2894 = vmatprep.subr.bf16.mxu0 0
        %2895 = vmatpush1.bf16.msra.mxu0 0
        %2896 = vmatprep.subr.bf16.mxu0 0
        %2897 = vmatpush1.bf16.msra.mxu0 0
        %2898 = vmatprep.subr.bf16.mxu0 0
        %2899 = vmatpush1.bf16.msra.mxu0 0
        %2900 = vmatprep.subr.bf16.mxu0 0
        %2901 = vmatpush1.bf16.msra.mxu0 0
        %2902 = vmatprep.subr.bf16.mxu0 0
        %2903 = vmatpush1.bf16.msra.mxu0 0
        %2904 = vmatprep.subr.bf16.mxu0 0
        %2905 = vmatpush1.bf16.msra.mxu0 0
        %2906 = vmatprep.subr.bf16.mxu0 0
        %2907 = vmatpush1.bf16.msra.mxu0 0
        %2908 = vmatprep.subr.bf16.mxu0 0
        %2909 = vmatpush1.bf16.msra.mxu0 0
        %2910 = vmatprep.subr.bf16.mxu0 0
        %2911 = vmatpush1.bf16.msra.mxu0 0
        %2912 = vmatprep.subr.bf16.mxu0 0
        %2913 = vmatpush1.bf16.msra.mxu0 0
        %2914 = vmatprep.subr.bf16.mxu0 0
        %2915 = vmatpush1.bf16.msra.mxu0 0
        %2916 = vmatprep.subr.bf16.mxu0 0
        %2917 = vmatpush1.bf16.msra.mxu0 0
        %2918 = vmatprep.subr.bf16.mxu0 0
        %2919 = vmatpush1.bf16.msra.mxu0 0
        %2920 = vmatprep.subr.bf16.mxu0 0
        %2921 = vmatpush1.bf16.msra.mxu0 0
        %2922 = vmatprep.subr.bf16.mxu0 0
        %2923 = vmatpush1.bf16.msra.mxu0 0
        %2924 = vmatprep.mubr.bf16.mxu0 0
        %2925 = vmatmul.mubr.bf16.gmra.mrb[0].mxu0 %v2887
        %v2926 = vpop.f32.mrb[0].mxu0
        %v2927 = vadd.f32 0.0, %v2926
        %v2928 = vpop.f32.mrb[0].mxu0
        %v2929 = vpop.f32.mrb[0].mxu0
        %v2930 = vadd.f32 0.0, %v2929
        %v2931 = vpop.f32.mrb[0].mxu0
        %2932 = vdwg.mxu0
        %v2934 = vsel %vm670, %v2565, 0
        %v2937 = vsel %vm1110, %v2567, 0
        %2939 = vmatprep.subr.bf16.mxu0 0
        %2940 = vmatpush1.bf16.msra.mxu0 %v2937
        %2941 = vmatprep.subr.bf16.mxu0 0
        %2942 = vmatpush1.bf16.msra.mxu0 0
        %2943 = vmatprep.subr.bf16.mxu0 0
        %2944 = vmatpush1.bf16.msra.mxu0 0
        %2945 = vmatprep.subr.bf16.mxu0 0
        %2946 = vmatpush1.bf16.msra.mxu0 0
        %2947 = vmatprep.subr.bf16.mxu0 0
        %2948 = vmatpush1.bf16.msra.mxu0 0
        %2949 = vmatprep.subr.bf16.mxu0 0
        %2950 = vmatpush1.bf16.msra.mxu0 0
        %2951 = vmatprep.subr.bf16.mxu0 0
        %2952 = vmatpush1.bf16.msra.mxu0 0
        %2953 = vmatprep.subr.bf16.mxu0 0
        %2954 = vmatpush1.bf16.msra.mxu0 0
        %2955 = vmatprep.subr.bf16.mxu0 0
        %2956 = vmatpush1.bf16.msra.mxu0 0
        %2957 = vmatprep.subr.bf16.mxu0 0
        %2958 = vmatpush1.bf16.msra.mxu0 0
        %2959 = vmatprep.subr.bf16.mxu0 0
        %2960 = vmatpush1.bf16.msra.mxu0 0
        %2961 = vmatprep.subr.bf16.mxu0 0
        %2962 = vmatpush1.bf16.msra.mxu0 0
        %2963 = vmatprep.subr.bf16.mxu0 0
        %2964 = vmatpush1.bf16.msra.mxu0 0
        %2965 = vmatprep.subr.bf16.mxu0 0
        %2966 = vmatpush1.bf16.msra.mxu0 0
        %2967 = vmatprep.subr.bf16.mxu0 0
        %2968 = vmatpush1.bf16.msra.mxu0 0
        %2969 = vmatprep.subr.bf16.mxu0 0
        %2970 = vmatpush1.bf16.msra.mxu0 0
        %2971 = vmatprep.mubr.bf16.mxu0 0
        %2972 = vmatmul.mubr.bf16.gmra.mrb[0].mxu0 %v2934
        %v2973 = vpop.f32.mrb[0].mxu0
        %v2974 = vadd.f32 %v2927, %v2973
        %v2975 = vpop.f32.mrb[0].mxu0
        %v2976 = vpop.f32.mrb[0].mxu0
        %v2977 = vadd.f32 %v2930, %v2976
        %v2978 = vpop.f32.mrb[0].mxu0
        %2979 = vdwg.mxu0
        %s2980 = scalar_lea.vmem %s2, 96
        %v2981 = vld [vmem:[%s2980] sm:$0xf]
        %v2982 = vld [vmem:[%s2980 + $0x4] sm:$0xf]
        %v2983 = vld [vmem:[%s2980 + $0x8] sm:$0xf]
        %v2984 = vld [vmem:[%s2980 + $0xc] sm:$0xf]
        %s2985 = scalar_lea.vmem %s3, 6
        %v2986 = vld [vmem:[%s2985] sm:$0x1]
        %v2988 = vlaneseq
        %v2989 = vshrl.u32 %v2988, 7
        %v2990 = vsub.s32 0, %v2989
        %v2991 = vrot.slane %v2986, %v2990
        %v2997 = vunpack.c.l.b16 %v2981
        %v2998 = vunpack.c.l.b16 %v2982
        %v2999 = vunpack.c.l.b16 %v2983
        %v3000 = vunpack.c.l.b16 %v2984
        %v3001 = vpack.c.b16 %v2998, %v2997
        %v3002 = vpack.c.b16 %v3000, %v2999
        %3005 = vmatprep.subr.bf16.mxu0 0
        %3006 = vmatpush1.bf16.msra.mxu0 %v3001
        %3007 = vmatprep.subr.bf16.mxu0 0
        %3008 = vmatpush1.bf16.msra.mxu0 %v3002
        %3009 = vmatprep.subr.bf16.mxu0 0
        %3010 = vmatpush1.bf16.msra.mxu0 0
        %3011 = vmatprep.subr.bf16.mxu0 0
        %3012 = vmatpush1.bf16.msra.mxu0 0
        %3013 = vmatprep.subr.bf16.mxu0 0
        %3014 = vmatpush1.bf16.msra.mxu0 0
        %3015 = vmatprep.subr.bf16.mxu0 0
        %3016 = vmatpush1.bf16.msra.mxu0 0
        %3017 = vmatprep.subr.bf16.mxu0 0
        %3018 = vmatpush1.bf16.msra.mxu0 0
        %3019 = vmatprep.subr.bf16.mxu0 0
        %3020 = vmatpush1.bf16.msra.mxu0 0
        %3021 = vmatprep.subr.bf16.mxu0 0
        %3022 = vmatpush1.bf16.msra.mxu0 0
        %3023 = vmatprep.subr.bf16.mxu0 0
        %3024 = vmatpush1.bf16.msra.mxu0 0
        %3025 = vmatprep.subr.bf16.mxu0 0
        %3026 = vmatpush1.bf16.msra.mxu0 0
        %3027 = vmatprep.subr.bf16.mxu0 0
        %3028 = vmatpush1.bf16.msra.mxu0 0
        %3029 = vmatprep.subr.bf16.mxu0 0
        %3030 = vmatpush1.bf16.msra.mxu0 0
        %3031 = vmatprep.subr.bf16.mxu0 0
        %3032 = vmatpush1.bf16.msra.mxu0 0
        %3033 = vmatprep.subr.bf16.mxu0 0
        %3034 = vmatpush1.bf16.msra.mxu0 0
        %3035 = vmatprep.subr.bf16.mxu0 0
        %3036 = vmatpush1.bf16.msra.mxu0 0
        %3037 = vmatprep.mubr.bf16.mxu0 0
        %3038 = vmatmul.mubr.bf16.gmra.mrb[0].mxu0 %v2273
        %v3039 = vpop.f32.mrb[0].mxu0
        %v3040 = vadd.f32 %v2991, %v3039
        %v3041 = vpop.f32.mrb[0].mxu0
        %v3042 = vpop.f32.mrb[0].mxu0
        %v3043 = vadd.f32 %v2991, %v3042
        %v3044 = vpop.f32.mrb[0].mxu0
        %3045 = vdwg.mxu0
        %s3046 = scalar_lea.vmem %s4, 96
        %v3047 = vld [vmem:[%s3046] sm:$0xf]
        %v3048 = vld [vmem:[%s3046 + $0x4] sm:$0xf]
        %v3049 = vld [vmem:[%s3046 + $0x8] sm:$0xf]
        %v3050 = vld [vmem:[%s3046 + $0xc] sm:$0xf]
        %s3051 = scalar_lea.vmem %s5, 6
        %v3052 = vld [vmem:[%s3051] sm:$0x1]
        %v3054 = vlaneseq
        %v3055 = vshrl.u32 %v3054, 7
        %v3056 = vsub.s32 0, %v3055
        %v3057 = vrot.slane %v3052, %v3056
        %v3063 = vunpack.c.l.b16 %v3047
        %v3064 = vunpack.c.l.b16 %v3048
        %v3065 = vunpack.c.l.b16 %v3049
        %v3066 = vunpack.c.l.b16 %v3050
        %v3067 = vpack.c.b16 %v3064, %v3063
        %v3068 = vpack.c.b16 %v3066, %v3065
        %3071 = vmatprep.subr.bf16.mxu0 0
        %3072 = vmatpush1.bf16.msra.mxu0 %v3067
        %3073 = vmatprep.subr.bf16.mxu0 0
        %3074 = vmatpush1.bf16.msra.mxu0 %v3068
        %3075 = vmatprep.subr.bf16.mxu0 0
        %3076 = vmatpush1.bf16.msra.mxu0 0
        %3077 = vmatprep.subr.bf16.mxu0 0
        %3078 = vmatpush1.bf16.msra.mxu0 0
        %3079 = vmatprep.subr.bf16.mxu0 0
        %3080 = vmatpush1.bf16.msra.mxu0 0
        %3081 = vmatprep.subr.bf16.mxu0 0
        %3082 = vmatpush1.bf16.msra.mxu0 0
        %3083 = vmatprep.subr.bf16.mxu0 0
        %3084 = vmatpush1.bf16.msra.mxu0 0
        %3085 = vmatprep.subr.bf16.mxu0 0
        %3086 = vmatpush1.bf16.msra.mxu0 0
        %3087 = vmatprep.subr.bf16.mxu0 0
        %3088 = vmatpush1.bf16.msra.mxu0 0
        %3089 = vmatprep.subr.bf16.mxu0 0
        %3090 = vmatpush1.bf16.msra.mxu0 0
        %3091 = vmatprep.subr.bf16.mxu0 0
        %3092 = vmatpush1.bf16.msra.mxu0 0
        %3093 = vmatprep.subr.bf16.mxu0 0
        %3094 = vmatpush1.bf16.msra.mxu0 0
        %3095 = vmatprep.subr.bf16.mxu0 0
        %3096 = vmatpush1.bf16.msra.mxu0 0
        %3097 = vmatprep.subr.bf16.mxu0 0
        %3098 = vmatpush1.bf16.msra.mxu0 0
        %3099 = vmatprep.subr.bf16.mxu0 0
        %3100 = vmatpush1.bf16.msra.mxu0 0
        %3101 = vmatprep.subr.bf16.mxu0 0
        %3102 = vmatpush1.bf16.msra.mxu0 0
        %3103 = vmatprep.mubr.bf16.mxu0 0
        %3104 = vmatmul.mubr.bf16.gmra.mrb[0].mxu0 %v2273
        %v3105 = vpop.f32.mrb[0].mxu0
        %v3106 = vadd.f32 %v3057, %v3105
        %v3107 = vpop.f32.mrb[0].mxu0
        %v3108 = vpop.f32.mrb[0].mxu0
        %v3109 = vadd.f32 %v3057, %v3108
        %v3110 = vpop.f32.mrb[0].mxu0
        %3111 = vdwg.mxu0
        %s3112 = scalar_lea.vmem %s6, 96
        %v3113 = vld [vmem:[%s3112] sm:$0xf]
        %v3114 = vld [vmem:[%s3112 + $0x4] sm:$0xf]
        %v3115 = vld [vmem:[%s3112 + $0x8] sm:$0xf]
        %v3116 = vld [vmem:[%s3112 + $0xc] sm:$0xf]
        %s3117 = scalar_lea.vmem %s7, 6
        %v3118 = vld [vmem:[%s3117] sm:$0x1]
        %v3120 = vlaneseq
        %v3121 = vshrl.u32 %v3120, 7
        %v3122 = vsub.s32 0, %v3121
        %v3123 = vrot.slane %v3118, %v3122
        %v3129 = vunpack.c.l.b16 %v3113
        %v3130 = vunpack.c.l.b16 %v3114
        %v3131 = vunpack.c.l.b16 %v3115
        %v3132 = vunpack.c.l.b16 %v3116
        %v3133 = vpack.c.b16 %v3130, %v3129
        %v3134 = vpack.c.b16 %v3132, %v3131
        %3137 = vmatprep.subr.bf16.mxu0 0
        %3138 = vmatpush1.bf16.msra.mxu0 %v3133
        %3139 = vmatprep.subr.bf16.mxu0 0
        %3140 = vmatpush1.bf16.msra.mxu0 %v3134
        %3141 = vmatprep.subr.bf16.mxu0 0
        %3142 = vmatpush1.bf16.msra.mxu0 0
        %3143 = vmatprep.subr.bf16.mxu0 0
        %3144 = vmatpush1.bf16.msra.mxu0 0
        %3145 = vmatprep.subr.bf16.mxu0 0
        %3146 = vmatpush1.bf16.msra.mxu0 0
        %3147 = vmatprep.subr.bf16.mxu0 0
        %3148 = vmatpush1.bf16.msra.mxu0 0
        %3149 = vmatprep.subr.bf16.mxu0 0
        %3150 = vmatpush1.bf16.msra.mxu0 0
        %3151 = vmatprep.subr.bf16.mxu0 0
        %3152 = vmatpush1.bf16.msra.mxu0 0
        %3153 = vmatprep.subr.bf16.mxu0 0
        %3154 = vmatpush1.bf16.msra.mxu0 0
        %3155 = vmatprep.subr.bf16.mxu0 0
        %3156 = vmatpush1.bf16.msra.mxu0 0
        %3157 = vmatprep.subr.bf16.mxu0 0
        %3158 = vmatpush1.bf16.msra.mxu0 0
        %3159 = vmatprep.subr.bf16.mxu0 0
        %3160 = vmatpush1.bf16.msra.mxu0 0
        %3161 = vmatprep.subr.bf16.mxu0 0
        %3162 = vmatpush1.bf16.msra.mxu0 0
        %3163 = vmatprep.subr.bf16.mxu0 0
        %3164 = vmatpush1.bf16.msra.mxu0 0
        %3165 = vmatprep.subr.bf16.mxu0 0
        %3166 = vmatpush1.bf16.msra.mxu0 0
        %3167 = vmatprep.subr.bf16.mxu0 0
        %3168 = vmatpush1.bf16.msra.mxu0 0
        %3169 = vmatprep.mubr.bf16.mxu0 0
        %3170 = vmatmul.mubr.bf16.gmra.mrb[0].mxu0 %v2273
        %v3171 = vpop.f32.mrb[0].mxu0
        %v3172 = vadd.f32 %v3123, %v3171
        %v3173 = vpop.f32.mrb[0].mxu0
        %v3174 = vpop.f32.mrb[0].mxu0
        %v3175 = vadd.f32 %v3123, %v3174
        %v3176 = vpop.f32.mrb[0].mxu0
        %3177 = vdwg.mxu0
        %v3178 = vpack.c.bf16 %v3043, %v3040
        %v3179 = vpack.c.bf16 %v3109, %v3106
        %v3181 = vsel %vm670, %v3178, 0
        %v3184 = vsel %vm670, %v3179, 0
        %3186 = vmatprep.subr.bf16.mxu0 0
        %3187 = vmatpush1.bf16.xpose.msra.mxu0 %v3184
        %3188 = vmatprep.subr.bf16.mxu0 0
        %3189 = vmatpush1.bf16.xpose.msra.mxu0 0
        %3190 = vmatprep.subr.bf16.mxu0 0
        %3191 = vmatpush1.bf16.xpose.msra.mxu0 0
        %3192 = vmatprep.subr.bf16.mxu0 0
        %3193 = vmatpush1.bf16.xpose.msra.mxu0 0
        %3194 = vmatprep.subr.bf16.mxu0 0
        %3195 = vmatpush1.bf16.xpose.msra.mxu0 0
        %3196 = vmatprep.subr.bf16.mxu0 0
        %3197 = vmatpush1.bf16.xpose.msra.mxu0 0
        %3198 = vmatprep.subr.bf16.mxu0 0
        %3199 = vmatpush1.bf16.xpose.msra.mxu0 0
        %3200 = vmatprep.subr.bf16.mxu0 0
        %3201 = vmatpush1.bf16.xpose.msra.mxu0 0
        %3202 = vmatprep.subr.bf16.mxu0 0
        %3203 = vmatpush1.bf16.xpose.msra.mxu0 0
        %3204 = vmatprep.subr.bf16.mxu0 0
        %3205 = vmatpush1.bf16.xpose.msra.mxu0 0
        %3206 = vmatprep.subr.bf16.mxu0 0
        %3207 = vmatpush1.bf16.xpose.msra.mxu0 0
        %3208 = vmatprep.subr.bf16.mxu0 0
        %3209 = vmatpush1.bf16.xpose.msra.mxu0 0
        %3210 = vmatprep.subr.bf16.mxu0 0
        %3211 = vmatpush1.bf16.xpose.msra.mxu0 0
        %3212 = vmatprep.subr.bf16.mxu0 0
        %3213 = vmatpush1.bf16.xpose.msra.mxu0 0
        %3214 = vmatprep.subr.bf16.mxu0 0
        %3215 = vmatpush1.bf16.xpose.msra.mxu0 0
        %3216 = vmatprep.subr.bf16.mxu0 0
        %3217 = vmatpush1.bf16.xpose.msra.mxu0 0
        %3218 = vmatprep.mubr.bf16.mxu0 0
        %3219 = vmatmul.mubr.bf16.gmra.mrb[0].mxu0 %v3181
        %v3220 = vpop.f32.mrb[0].mxu0
        %v3221 = vadd.f32 0.0, %v3220
        %v3222 = vpop.f32.mrb[0].mxu0
        %v3223 = vpop.f32.mrb[0].mxu0
        %v3224 = vadd.f32 0.0, %v3223
        %v3225 = vpop.f32.mrb[0].mxu0
        %3226 = vdwg.mxu0
        %v3227 = vsel %vm718, %v3221, -inf
        %3228 = vmax.xlane.f32.xlu0 %v3227
        %v3229 = vpop.xlane.xlu0 %3228
        %v3230 = vsel %vm718, %v3224, -inf
        %3231 = vmax.xlane.f32.xlu0 %v3230
        %v3232 = vpop.xlane.xlu0 %3231
        %v3233 = vsub.f32 %v3221, %v3229
        %v3234 = vsub.f32 %v3224, %v3232
        %v3235 = vmul.f32 %v3233, 1.442695
        %v3236 = vpow.pop %v3235
        %v3237 = vmul.f32 %v3234, 1.442695
        %v3238 = vpow.pop %v3237
        %v3239 = vsel %vm718, %v3236, 0.0
        %3240 = vadd.xlane.f32.xlu0 %v3239
        %v3241 = vpop.xlane.xlu0 %3240
        %v3242 = vsel %vm718, %v3238, 0.0
        %3243 = vadd.xlane.f32.xlu0 %v3242
        %v3244 = vpop.xlane.xlu0 %3243
        %v3245 = vrcp.pop %v3241
        %v3246 = vmul.f32 %v3236, %v3245
        %v3247 = vrcp.pop %v3244
        %v3248 = vmul.f32 %v3238, %v3247
        %v3249 = vpack.c.bf16 %v3248, %v3246
        %v3250 = vpack.c.bf16 %v3175, %v3172
        %v3252 = vsel %vm718, %v3249, 0
        %3254 = vmatprep.subr.bf16.mxu0 0
        %3255 = vmatpush1.bf16.msra.mxu0 %v3250
        %3256 = vmatprep.subr.bf16.mxu0 0
        %3257 = vmatpush1.bf16.msra.mxu0 0
        %3258 = vmatprep.subr.bf16.mxu0 0
        %3259 = vmatpush1.bf16.msra.mxu0 0
        %3260 = vmatprep.subr.bf16.mxu0 0
        %3261 = vmatpush1.bf16.msra.mxu0 0
        %3262 = vmatprep.subr.bf16.mxu0 0
        %3263 = vmatpush1.bf16.msra.mxu0 0
        %3264 = vmatprep.subr.bf16.mxu0 0
        %3265 = vmatpush1.bf16.msra.mxu0 0
        %3266 = vmatprep.subr.bf16.mxu0 0
        %3267 = vmatpush1.bf16.msra.mxu0 0
        %3268 = vmatprep.subr.bf16.mxu0 0
        %3269 = vmatpush1.bf16.msra.mxu0 0
        %3270 = vmatprep.subr.bf16.mxu0 0
        %3271 = vmatpush1.bf16.msra.mxu0 0
        %3272 = vmatprep.subr.bf16.mxu0 0
        %3273 = vmatpush1.bf16.msra.mxu0 0
        %3274 = vmatprep.subr.bf16.mxu0 0
        %3275 = vmatpush1.bf16.msra.mxu0 0
        %3276 = vmatprep.subr.bf16.mxu0 0
        %3277 = vmatpush1.bf16.msra.mxu0 0
        %3278 = vmatprep.subr.bf16.mxu0 0
        %3279 = vmatpush1.bf16.msra.mxu0 0
        %3280 = vmatprep.subr.bf16.mxu0 0
        %3281 = vmatpush1.bf16.msra.mxu0 0
        %3282 = vmatprep.subr.bf16.mxu0 0
        %3283 = vmatpush1.bf16.msra.mxu0 0
        %3284 = vmatprep.subr.bf16.mxu0 0
        %3285 = vmatpush1.bf16.msra.mxu0 0
        %3286 = vmatprep.mubr.bf16.mxu0 0
        %3287 = vmatmul.mubr.bf16.gmra.mrb[0].mxu0 %v3252
        %v3288 = vpop.f32.mrb[0].mxu0
        %v3289 = vadd.f32 0.0, %v3288
        %v3290 = vpop.f32.mrb[0].mxu0
        %v3291 = vpop.f32.mrb[0].mxu0
        %v3292 = vadd.f32 0.0, %v3291
        %v3293 = vpop.f32.mrb[0].mxu0
        %3294 = vdwg.mxu0
        %v3295 = vpack.c.bf16 %v3292, %v3289
        %s3296 = scalar_lea.vmem %s8, 24
        %v3297 = vld [vmem:[%s3296] sm:$0xf]
        %v3299 = vsel %vm670, %v3295, 0
        %v3302 = vsel %vm1110, %v3297, 0
        %3304 = vmatprep.subr.bf16.mxu0 0
        %3305 = vmatpush1.bf16.msra.mxu0 %v3302
        %3306 = vmatprep.subr.bf16.mxu0 0
        %3307 = vmatpush1.bf16.msra.mxu0 0
        %3308 = vmatprep.subr.bf16.mxu0 0
        %3309 = vmatpush1.bf16.msra.mxu0 0
        %3310 = vmatprep.subr.bf16.mxu0 0
        %3311 = vmatpush1.bf16.msra.mxu0 0
        %3312 = vmatprep.subr.bf16.mxu0 0
        %3313 = vmatpush1.bf16.msra.mxu0 0
        %3314 = vmatprep.subr.bf16.mxu0 0
        %3315 = vmatpush1.bf16.msra.mxu0 0
        %3316 = vmatprep.subr.bf16.mxu0 0
        %3317 = vmatpush1.bf16.msra.mxu0 0
        %3318 = vmatprep.subr.bf16.mxu0 0
        %3319 = vmatpush1.bf16.msra.mxu0 0
        %3320 = vmatprep.subr.bf16.mxu0 0
        %3321 = vmatpush1.bf16.msra.mxu0 0
        %3322 = vmatprep.subr.bf16.mxu0 0
        %3323 = vmatpush1.bf16.msra.mxu0 0
        %3324 = vmatprep.subr.bf16.mxu0 0
        %3325 = vmatpush1.bf16.msra.mxu0 0
        %3326 = vmatprep.subr.bf16.mxu0 0
        %3327 = vmatpush1.bf16.msra.mxu0 0
        %3328 = vmatprep.subr.bf16.mxu0 0
        %3329 = vmatpush1.bf16.msra.mxu0 0
        %3330 = vmatprep.subr.bf16.mxu0 0
        %3331 = vmatpush1.bf16.msra.mxu0 0
        %3332 = vmatprep.subr.bf16.mxu0 0
        %3333 = vmatpush1.bf16.msra.mxu0 0
        %3334 = vmatprep.subr.bf16.mxu0 0
        %3335 = vmatpush1.bf16.msra.mxu0 0
        %3336 = vmatprep.mubr.bf16.mxu0 0
        %3337 = vmatmul.mubr.bf16.gmra.mrb[0].mxu0 %v3299
        %v3338 = vpop.f32.mrb[0].mxu0
        %v3339 = vadd.f32 0.0, %v3338
        %v3340 = vpop.f32.mrb[0].mxu0
        %v3341 = vpop.f32.mrb[0].mxu0
        %v3342 = vadd.f32 0.0, %v3341
        %v3343 = vpop.f32.mrb[0].mxu0
        %3344 = vdwg.mxu0
        %v3345 = vadd.f32 %v2974, %v3339
        %v3346 = vadd.f32 %v2977, %v3342
        %s3347 = scalar_lea.vmem %s2, 112
        %v3348 = vld [vmem:[%s3347] sm:$0xf]
        %v3349 = vld [vmem:[%s3347 + $0x4] sm:$0xf]
        %v3350 = vld [vmem:[%s3347 + $0x8] sm:$0xf]
        %v3351 = vld [vmem:[%s3347 + $0xc] sm:$0xf]
        %s3352 = scalar_lea.vmem %s3, 7
        %v3353 = vld [vmem:[%s3352] sm:$0x1]
        %v3355 = vlaneseq
        %v3356 = vshrl.u32 %v3355, 7
        %v3357 = vsub.s32 0, %v3356
        %v3358 = vrot.slane %v3353, %v3357
        %v3364 = vunpack.c.l.b16 %v3348
        %v3365 = vunpack.c.l.b16 %v3349
        %v3366 = vunpack.c.l.b16 %v3350
        %v3367 = vunpack.c.l.b16 %v3351
        %v3368 = vpack.c.b16 %v3365, %v3364
        %v3369 = vpack.c.b16 %v3367, %v3366
        %3372 = vmatprep.subr.bf16.mxu0 0
        %3373 = vmatpush1.bf16.msra.mxu0 %v3368
        %3374 = vmatprep.subr.bf16.mxu0 0
        %3375 = vmatpush1.bf16.msra.mxu0 %v3369
        %3376 = vmatprep.subr.bf16.mxu0 0
        %3377 = vmatpush1.bf16.msra.mxu0 0
        %3378 = vmatprep.subr.bf16.mxu0 0
        %3379 = vmatpush1.bf16.msra.mxu0 0
        %3380 = vmatprep.subr.bf16.mxu0 0
        %3381 = vmatpush1.bf16.msra.mxu0 0
        %3382 = vmatprep.subr.bf16.mxu0 0
        %3383 = vmatpush1.bf16.msra.mxu0 0
        %3384 = vmatprep.subr.bf16.mxu0 0
        %3385 = vmatpush1.bf16.msra.mxu0 0
        %3386 = vmatprep.subr.bf16.mxu0 0
        %3387 = vmatpush1.bf16.msra.mxu0 0
        %3388 = vmatprep.subr.bf16.mxu0 0
        %3389 = vmatpush1.bf16.msra.mxu0 0
        %3390 = vmatprep.subr.bf16.mxu0 0
        %3391 = vmatpush1.bf16.msra.mxu0 0
        %3392 = vmatprep.subr.bf16.mxu0 0
        %3393 = vmatpush1.bf16.msra.mxu0 0
        %3394 = vmatprep.subr.bf16.mxu0 0
        %3395 = vmatpush1.bf16.msra.mxu0 0
        %3396 = vmatprep.subr.bf16.mxu0 0
        %3397 = vmatpush1.bf16.msra.mxu0 0
        %3398 = vmatprep.subr.bf16.mxu0 0
        %3399 = vmatpush1.bf16.msra.mxu0 0
        %3400 = vmatprep.subr.bf16.mxu0 0
        %3401 = vmatpush1.bf16.msra.mxu0 0
        %3402 = vmatprep.subr.bf16.mxu0 0
        %3403 = vmatpush1.bf16.msra.mxu0 0
        %3404 = vmatprep.mubr.bf16.mxu0 0
        %3405 = vmatmul.mubr.bf16.gmra.mrb[0].mxu0 %v2273
        %v3406 = vpop.f32.mrb[0].mxu0
        %v3407 = vadd.f32 %v3358, %v3406
        %v3408 = vpop.f32.mrb[0].mxu0
        %v3409 = vpop.f32.mrb[0].mxu0
        %v3410 = vadd.f32 %v3358, %v3409
        %v3411 = vpop.f32.mrb[0].mxu0
        %3412 = vdwg.mxu0
        %s3413 = scalar_lea.vmem %s4, 112
        %v3414 = vld [vmem:[%s3413] sm:$0xf]
        %v3415 = vld [vmem:[%s3413 + $0x4] sm:$0xf]
        %v3416 = vld [vmem:[%s3413 + $0x8] sm:$0xf]
        %v3417 = vld [vmem:[%s3413 + $0xc] sm:$0xf]
        %s3418 = scalar_lea.vmem %s5, 7
        %v3419 = vld [vmem:[%s3418] sm:$0x1]
        %v3421 = vlaneseq
        %v3422 = vshrl.u32 %v3421, 7
        %v3423 = vsub.s32 0, %v3422
        %v3424 = vrot.slane %v3419, %v3423
        %v3430 = vunpack.c.l.b16 %v3414
        %v3431 = vunpack.c.l.b16 %v3415
        %v3432 = vunpack.c.l.b16 %v3416
        %v3433 = vunpack.c.l.b16 %v3417
        %v3434 = vpack.c.b16 %v3431, %v3430
        %v3435 = vpack.c.b16 %v3433, %v3432
        %3438 = vmatprep.subr.bf16.mxu0 0
        %3439 = vmatpush1.bf16.msra.mxu0 %v3434
        %3440 = vmatprep.subr.bf16.mxu0 0
        %3441 = vmatpush1.bf16.msra.mxu0 %v3435
        %3442 = vmatprep.subr.bf16.mxu0 0
        %3443 = vmatpush1.bf16.msra.mxu0 0
        %3444 = vmatprep.subr.bf16.mxu0 0
        %3445 = vmatpush1.bf16.msra.mxu0 0
        %3446 = vmatprep.subr.bf16.mxu0 0
        %3447 = vmatpush1.bf16.msra.mxu0 0
        %3448 = vmatprep.subr.bf16.mxu0 0
        %3449 = vmatpush1.bf16.msra.mxu0 0
        %3450 = vmatprep.subr.bf16.mxu0 0
        %3451 = vmatpush1.bf16.msra.mxu0 0
        %3452 = vmatprep.subr.bf16.mxu0 0
        %3453 = vmatpush1.bf16.msra.mxu0 0
        %3454 = vmatprep.subr.bf16.mxu0 0
        %3455 = vmatpush1.bf16.msra.mxu0 0
        %3456 = vmatprep.subr.bf16.mxu0 0
        %3457 = vmatpush1.bf16.msra.mxu0 0
        %3458 = vmatprep.subr.bf16.mxu0 0
        %3459 = vmatpush1.bf16.msra.mxu0 0
        %3460 = vmatprep.subr.bf16.mxu0 0
        %3461 = vmatpush1.bf16.msra.mxu0 0
        %3462 = vmatprep.subr.bf16.mxu0 0
        %3463 = vmatpush1.bf16.msra.mxu0 0
        %3464 = vmatprep.subr.bf16.mxu0 0
        %3465 = vmatpush1.bf16.msra.mxu0 0
        %3466 = vmatprep.subr.bf16.mxu0 0
        %3467 = vmatpush1.bf16.msra.mxu0 0
        %3468 = vmatprep.subr.bf16.mxu0 0
        %3469 = vmatpush1.bf16.msra.mxu0 0
        %3470 = vmatprep.mubr.bf16.mxu0 0
        %3471 = vmatmul.mubr.bf16.gmra.mrb[0].mxu0 %v2273
        %v3472 = vpop.f32.mrb[0].mxu0
        %v3473 = vadd.f32 %v3424, %v3472
        %v3474 = vpop.f32.mrb[0].mxu0
        %v3475 = vpop.f32.mrb[0].mxu0
        %v3476 = vadd.f32 %v3424, %v3475
        %v3477 = vpop.f32.mrb[0].mxu0
        %3478 = vdwg.mxu0
        %s3479 = scalar_lea.vmem %s6, 112
        %v3480 = vld [vmem:[%s3479] sm:$0xf]
        %v3481 = vld [vmem:[%s3479 + $0x4] sm:$0xf]
        %v3482 = vld [vmem:[%s3479 + $0x8] sm:$0xf]
        %v3483 = vld [vmem:[%s3479 + $0xc] sm:$0xf]
        %s3484 = scalar_lea.vmem %s7, 7
        %v3485 = vld [vmem:[%s3484] sm:$0x1]
        %v3487 = vlaneseq
        %v3488 = vshrl.u32 %v3487, 7
        %v3489 = vsub.s32 0, %v3488
        %v3490 = vrot.slane %v3485, %v3489
        %v3496 = vunpack.c.l.b16 %v3480
        %v3497 = vunpack.c.l.b16 %v3481
        %v3498 = vunpack.c.l.b16 %v3482
        %v3499 = vunpack.c.l.b16 %v3483
        %v3500 = vpack.c.b16 %v3497, %v3496
        %v3501 = vpack.c.b16 %v3499, %v3498
        %3504 = vmatprep.subr.bf16.mxu0 0
        %3505 = vmatpush1.bf16.msra.mxu0 %v3500
        %3506 = vmatprep.subr.bf16.mxu0 0
        %3507 = vmatpush1.bf16.msra.mxu0 %v3501
        %3508 = vmatprep.subr.bf16.mxu0 0
        %3509 = vmatpush1.bf16.msra.mxu0 0
        %3510 = vmatprep.subr.bf16.mxu0 0
        %3511 = vmatpush1.bf16.msra.mxu0 0
        %3512 = vmatprep.subr.bf16.mxu0 0
        %3513 = vmatpush1.bf16.msra.mxu0 0
        %3514 = vmatprep.subr.bf16.mxu0 0
        %3515 = vmatpush1.bf16.msra.mxu0 0
        %3516 = vmatprep.subr.bf16.mxu0 0
        %3517 = vmatpush1.bf16.msra.mxu0 0
        %3518 = vmatprep.subr.bf16.mxu0 0
        %3519 = vmatpush1.bf16.msra.mxu0 0
        %3520 = vmatprep.subr.bf16.mxu0 0
        %3521 = vmatpush1.bf16.msra.mxu0 0
        %3522 = vmatprep.subr.bf16.mxu0 0
        %3523 = vmatpush1.bf16.msra.mxu0 0
        %3524 = vmatprep.subr.bf16.mxu0 0
        %3525 = vmatpush1.bf16.msra.mxu0 0
        %3526 = vmatprep.subr.bf16.mxu0 0
        %3527 = vmatpush1.bf16.msra.mxu0 0
        %3528 = vmatprep.subr.bf16.mxu0 0
        %3529 = vmatpush1.bf16.msra.mxu0 0
        %3530 = vmatprep.subr.bf16.mxu0 0
        %3531 = vmatpush1.bf16.msra.mxu0 0
        %3532 = vmatprep.subr.bf16.mxu0 0
        %3533 = vmatpush1.bf16.msra.mxu0 0
        %3534 = vmatprep.subr.bf16.mxu0 0
        %3535 = vmatpush1.bf16.msra.mxu0 0
        %3536 = vmatprep.mubr.bf16.mxu0 0
        %3537 = vmatmul.mubr.bf16.gmra.mrb[0].mxu0 %v2273
        %v3538 = vpop.f32.mrb[0].mxu0
        %v3539 = vadd.f32 %v3490, %v3538
        %v3540 = vpop.f32.mrb[0].mxu0
        %v3541 = vpop.f32.mrb[0].mxu0
        %v3542 = vadd.f32 %v3490, %v3541
        %v3543 = vpop.f32.mrb[0].mxu0
        %3544 = vdwg.mxu0
        %v3545 = vpack.c.bf16 %v3410, %v3407
        %v3546 = vpack.c.bf16 %v3476, %v3473
        %v3548 = vsel %vm670, %v3545, 0
        %v3551 = vsel %vm670, %v3546, 0
        %3553 = vmatprep.subr.bf16.mxu0 0
        %3554 = vmatpush1.bf16.xpose.msra.mxu0 %v3551
        %3555 = vmatprep.subr.bf16.mxu0 0
        %3556 = vmatpush1.bf16.xpose.msra.mxu0 0
        %3557 = vmatprep.subr.bf16.mxu0 0
        %3558 = vmatpush1.bf16.xpose.msra.mxu0 0
        %3559 = vmatprep.subr.bf16.mxu0 0
        %3560 = vmatpush1.bf16.xpose.msra.mxu0 0
        %3561 = vmatprep.subr.bf16.mxu0 0
        %3562 = vmatpush1.bf16.xpose.msra.mxu0 0
        %3563 = vmatprep.subr.bf16.mxu0 0
        %3564 = vmatpush1.bf16.xpose.msra.mxu0 0
        %3565 = vmatprep.subr.bf16.mxu0 0
        %3566 = vmatpush1.bf16.xpose.msra.mxu0 0
        %3567 = vmatprep.subr.bf16.mxu0 0
        %3568 = vmatpush1.bf16.xpose.msra.mxu0 0
        %3569 = vmatprep.subr.bf16.mxu0 0
        %3570 = vmatpush1.bf16.xpose.msra.mxu0 0
        %3571 = vmatprep.subr.bf16.mxu0 0
        %3572 = vmatpush1.bf16.xpose.msra.mxu0 0
        %3573 = vmatprep.subr.bf16.mxu0 0
        %3574 = vmatpush1.bf16.xpose.msra.mxu0 0
        %3575 = vmatprep.subr.bf16.mxu0 0
        %3576 = vmatpush1.bf16.xpose.msra.mxu0 0
        %3577 = vmatprep.subr.bf16.mxu0 0
        %3578 = vmatpush1.bf16.xpose.msra.mxu0 0
        %3579 = vmatprep.subr.bf16.mxu0 0
        %3580 = vmatpush1.bf16.xpose.msra.mxu0 0
        %3581 = vmatprep.subr.bf16.mxu0 0
        %3582 = vmatpush1.bf16.xpose.msra.mxu0 0
        %3583 = vmatprep.subr.bf16.mxu0 0
        %3584 = vmatpush1.bf16.xpose.msra.mxu0 0
        %3585 = vmatprep.mubr.bf16.mxu0 0
        %3586 = vmatmul.mubr.bf16.gmra.mrb[0].mxu0 %v3548
        %v3587 = vpop.f32.mrb[0].mxu0
        %v3588 = vadd.f32 0.0, %v3587
        %v3589 = vpop.f32.mrb[0].mxu0
        %v3590 = vpop.f32.mrb[0].mxu0
        %v3591 = vadd.f32 0.0, %v3590
        %v3592 = vpop.f32.mrb[0].mxu0
        %3593 = vdwg.mxu0
        %v3594 = vsel %vm718, %v3588, -inf
        %3595 = vmax.xlane.f32.xlu0 %v3594
        %v3596 = vpop.xlane.xlu0 %3595
        %v3597 = vsel %vm718, %v3591, -inf
        %3598 = vmax.xlane.f32.xlu0 %v3597
        %v3599 = vpop.xlane.xlu0 %3598
        %v3600 = vsub.f32 %v3588, %v3596
        %v3601 = vsub.f32 %v3591, %v3599
        %v3602 = vmul.f32 %v3600, 1.442695
        %v3603 = vpow.pop %v3602
        %v3604 = vmul.f32 %v3601, 1.442695
        %v3605 = vpow.pop %v3604
        %v3606 = vsel %vm718, %v3603, 0.0
        %3607 = vadd.xlane.f32.xlu0 %v3606
        %v3608 = vpop.xlane.xlu0 %3607
        %v3609 = vsel %vm718, %v3605, 0.0
        %3610 = vadd.xlane.f32.xlu0 %v3609
        %v3611 = vpop.xlane.xlu0 %3610
        %v3612 = vrcp.pop %v3608
        %v3613 = vmul.f32 %v3603, %v3612
        %v3614 = vrcp.pop %v3611
        %v3615 = vmul.f32 %v3605, %v3614
        %v3616 = vpack.c.bf16 %v3615, %v3613
        %v3617 = vpack.c.bf16 %v3542, %v3539
        %v3619 = vsel %vm718, %v3616, 0
        %3621 = vmatprep.subr.bf16.mxu0 0
        %3622 = vmatpush1.bf16.msra.mxu0 %v3617
        %3623 = vmatprep.subr.bf16.mxu0 0
        %3624 = vmatpush1.bf16.msra.mxu0 0
        %3625 = vmatprep.subr.bf16.mxu0 0
        %3626 = vmatpush1.bf16.msra.mxu0 0
        %3627 = vmatprep.subr.bf16.mxu0 0
        %3628 = vmatpush1.bf16.msra.mxu0 0
        %3629 = vmatprep.subr.bf16.mxu0 0
        %3630 = vmatpush1.bf16.msra.mxu0 0
        %3631 = vmatprep.subr.bf16.mxu0 0
        %3632 = vmatpush1.bf16.msra.mxu0 0
        %3633 = vmatprep.subr.bf16.mxu0 0
        %3634 = vmatpush1.bf16.msra.mxu0 0
        %3635 = vmatprep.subr.bf16.mxu0 0
        %3636 = vmatpush1.bf16.msra.mxu0 0
        %3637 = vmatprep.subr.bf16.mxu0 0
        %3638 = vmatpush1.bf16.msra.mxu0 0
        %3639 = vmatprep.subr.bf16.mxu0 0
        %3640 = vmatpush1.bf16.msra.mxu0 0
        %3641 = vmatprep.subr.bf16.mxu0 0
        %3642 = vmatpush1.bf16.msra.mxu0 0
        %3643 = vmatprep.subr.bf16.mxu0 0
        %3644 = vmatpush1.bf16.msra.mxu0 0
        %3645 = vmatprep.subr.bf16.mxu0 0
        %3646 = vmatpush1.bf16.msra.mxu0 0
        %3647 = vmatprep.subr.bf16.mxu0 0
        %3648 = vmatpush1.bf16.msra.mxu0 0
        %3649 = vmatprep.subr.bf16.mxu0 0
        %3650 = vmatpush1.bf16.msra.mxu0 0
        %3651 = vmatprep.subr.bf16.mxu0 0
        %3652 = vmatpush1.bf16.msra.mxu0 0
        %3653 = vmatprep.mubr.bf16.mxu0 0
        %3654 = vmatmul.mubr.bf16.gmra.mrb[0].mxu0 %v3619
        %v3655 = vpop.f32.mrb[0].mxu0
        %v3656 = vadd.f32 0.0, %v3655
        %v3657 = vpop.f32.mrb[0].mxu0
        %v3658 = vpop.f32.mrb[0].mxu0
        %v3659 = vadd.f32 0.0, %v3658
        %v3660 = vpop.f32.mrb[0].mxu0
        %3661 = vdwg.mxu0
        %v3662 = vpack.c.bf16 %v3659, %v3656
        %s3663 = scalar_lea.vmem %s8, 28
        %v3664 = vld [vmem:[%s3663] sm:$0xf]
        %v3666 = vsel %vm670, %v3662, 0
        %v3669 = vsel %vm1110, %v3664, 0
        %3671 = vmatprep.subr.bf16.mxu0 0
        %3672 = vmatpush1.bf16.msra.mxu0 %v3669
        %3673 = vmatprep.subr.bf16.mxu0 0
        %3674 = vmatpush1.bf16.msra.mxu0 0
        %3675 = vmatprep.subr.bf16.mxu0 0
        %3676 = vmatpush1.bf16.msra.mxu0 0
        %3677 = vmatprep.subr.bf16.mxu0 0
        %3678 = vmatpush1.bf16.msra.mxu0 0
        %3679 = vmatprep.subr.bf16.mxu0 0
        %3680 = vmatpush1.bf16.msra.mxu0 0
        %3681 = vmatprep.subr.bf16.mxu0 0
        %3682 = vmatpush1.bf16.msra.mxu0 0
        %3683 = vmatprep.subr.bf16.mxu0 0
        %3684 = vmatpush1.bf16.msra.mxu0 0
        %3685 = vmatprep.subr.bf16.mxu0 0
        %3686 = vmatpush1.bf16.msra.mxu0 0
        %3687 = vmatprep.subr.bf16.mxu0 0
        %3688 = vmatpush1.bf16.msra.mxu0 0
        %3689 = vmatprep.subr.bf16.mxu0 0
        %3690 = vmatpush1.bf16.msra.mxu0 0
        %3691 = vmatprep.subr.bf16.mxu0 0
        %3692 = vmatpush1.bf16.msra.mxu0 0
        %3693 = vmatprep.subr.bf16.mxu0 0
        %3694 = vmatpush1.bf16.msra.mxu0 0
        %3695 = vmatprep.subr.bf16.mxu0 0
        %3696 = vmatpush1.bf16.msra.mxu0 0
        %3697 = vmatprep.subr.bf16.mxu0 0
        %3698 = vmatpush1.bf16.msra.mxu0 0
        %3699 = vmatprep.subr.bf16.mxu0 0
        %3700 = vmatpush1.bf16.msra.mxu0 0
        %3701 = vmatprep.subr.bf16.mxu0 0
        %3702 = vmatpush1.bf16.msra.mxu0 0
        %3703 = vmatprep.mubr.bf16.mxu0 0
        %3704 = vmatmul.mubr.bf16.gmra.mrb[0].mxu0 %v3666
        %v3705 = vpop.f32.mrb[0].mxu0
        %v3706 = vadd.f32 0.0, %v3705
        %v3707 = vpop.f32.mrb[0].mxu0
        %v3708 = vpop.f32.mrb[0].mxu0
        %v3709 = vadd.f32 0.0, %v3708
        %v3710 = vpop.f32.mrb[0].mxu0
        %3711 = vdwg.mxu0
        %v3712 = vadd.f32 %v3345, %v3706
        %v3713 = vadd.f32 %v3346, %v3709
        %s3714 = scalar_lea.vmem %s9, 1
        %v3715 = vld [vmem:[%s3714] sm:$0x1]
        %v3717 = vlaneseq
        %v3718 = vshrl.u32 %v3717, 7
        %v3719 = vsub.s32 0, %v3718
        %v3720 = vrot.slane %v3715, %v3719
        %v3722 = vadd.f32 %v3712, %v3720
        %v3723 = vadd.f32 %v3713, %v3720
        %v3724 = vadd.f32 %v2238, %v3722
        %v3725 = vadd.f32 %v2243, %v3723
        %3726 = vmatprep.subr.mxu0 0.0
        %3727 = vmatpush1.msra.mxu0 %v3724
        %3728 = vmatprep.subr.mxu0 0.0
        %3729 = vmatpush1.msra.mxu0 %v3725
        %3730 = vmatprep.subr.mxu0 0.0
        %3731 = vmatpush1.msra.mxu0 0.0
        %3732 = vmatprep.subr.mxu0 0.0
        %3733 = vmatpush1.msra.mxu0 0.0
        %3734 = vmatprep.subr.mxu0 0.0
        %3735 = vmatpush1.msra.mxu0 0.0
        %3736 = vmatprep.subr.mxu0 0.0
        %3737 = vmatpush1.msra.mxu0 0.0
        %3738 = vmatprep.subr.mxu0 0.0
        %3739 = vmatpush1.msra.mxu0 0.0
        %3740 = vmatprep.subr.mxu0 0.0
        %3741 = vmatpush1.msra.mxu0 0.0
        %3742 = vmatprep.subr.mxu0 0.0
        %3743 = vmatpush1.msra.mxu0 0.0
        %3744 = vmatprep.subr.mxu0 0.0
        %3745 = vmatpush1.msra.mxu0 0.0
        %3746 = vmatprep.subr.mxu0 0.0
        %3747 = vmatpush1.msra.mxu0 0.0
        %3748 = vmatprep.subr.mxu0 0.0
        %3749 = vmatpush1.msra.mxu0 0.0
        %3750 = vmatprep.subr.mxu0 0.0
        %3751 = vmatpush1.msra.mxu0 0.0
        %3752 = vmatprep.subr.mxu0 0.0
        %3753 = vmatpush1.msra.mxu0 0.0
        %3754 = vmatprep.subr.mxu0 0.0
        %3755 = vmatpush1.msra.mxu0 0.0
        %3756 = vmatprep.subr.mxu0 0.0
        %3757 = vmatpush1.msra.mxu0 0.0
        %3758 = vmatprep.subr.mxu0 0.0
        %3759 = vmatpush1.msra.mxu0 0.0
        %3760 = vmatprep.subr.mxu0 0.0
        %3761 = vmatpush1.msra.mxu0 0.0
        %3762 = vmatprep.subr.mxu0 0.0
        %3763 = vmatpush1.msra.mxu0 0.0
        %3764 = vmatprep.subr.mxu0 0.0
        %3765 = vmatpush1.msra.mxu0 0.0
        %3766 = vmatprep.subr.mxu0 0.0
        %3767 = vmatpush1.msra.mxu0 0.0
        %3768 = vmatprep.subr.mxu0 0.0
        %3769 = vmatpush1.msra.mxu0 0.0
        %3770 = vmatprep.subr.mxu0 0.0
        %3771 = vmatpush1.msra.mxu0 0.0
        %3772 = vmatprep.subr.mxu0 0.0
        %3773 = vmatpush1.msra.mxu0 0.0
        %3774 = vmatprep.subr.mxu0 0.0
        %3775 = vmatpush1.msra.mxu0 0.0
        %3776 = vmatprep.subr.mxu0 0.0
        %3777 = vmatpush1.msra.mxu0 0.0
        %3778 = vmatprep.subr.mxu0 0.0
        %3779 = vmatpush1.msra.mxu0 0.0
        %3780 = vmatprep.subr.mxu0 0.0
        %3781 = vmatpush1.msra.mxu0 0.0
        %3782 = vmatprep.subr.mxu0 0.0
        %3783 = vmatpush1.msra.mxu0 0.0
        %3784 = vmatprep.subr.mxu0 0.0
        %3785 = vmatpush1.msra.mxu0 0.0
        %3786 = vmatprep.subr.mxu0 0.0
        %3787 = vmatpush1.msra.mxu0 0.0
        %3788 = vmatprep.subr.mxu0 0.0
        %3789 = vmatpush1.msra.mxu0 0.0
        %3790 = vmatprep.mubr.f32.mxu0 0.0
        %3791 = vmatmul.mubr.f32.gmra.mrb[0].mxu0 %v1948
        %v3792 = vpop.f32.mrb[0].mxu0
        %v3793 = vadd.f32 0.0, %v3792
        %v3794 = vpop.f32.mrb[0].mxu0
        %3795 = vmatprep.mubr.f32.mxu0 0.0
        %3796 = vmatmul.mubr.f32.gmra.mrb[0].mxu0 %v1951
        %v3797 = vpop.f32.mrb[0].mxu0
        %v3798 = vadd.f32 0.0, %v3797
        %v3799 = vpop.f32.mrb[0].mxu0
        %3800 = vdwg.mxu0
        %v3801 = vpack.c.bf16 %v3798, %v3793
        %s3802 = scalar_lea.vmem %s10, 16
        %v3803 = vld [vmem:[%s3802] sm:$0xf]
        %v3804 = vld [vmem:[%s3802 + $0x4] sm:$0xf]
        %v3805 = vld [vmem:[%s3802 + $0x8] sm:$0xf]
        %v3806 = vld [vmem:[%s3802 + $0xc] sm:$0xf]
        %v3811 = vunpack.c.l.b16 %v3803
        %v3812 = vunpack.c.l.b16 %v3804
        %v3813 = vunpack.c.l.b16 %v3805
        %v3814 = vunpack.c.l.b16 %v3806
        %v3815 = vpack.c.b16 %v3812, %v3811
        %v3816 = vpack.c.b16 %v3814, %v3813
        %v3820 = vsel %vm495, %v3801, 0
        %3822 = vmatprep.subr.bf16.mxu0 0
        %3823 = vmatpush1.bf16.msra.mxu0 %v3815
        %3824 = vmatprep.subr.bf16.mxu0 0
        %3825 = vmatpush1.bf16.msra.mxu0 %v3816
        %3826 = vmatprep.subr.bf16.mxu0 0
        %3827 = vmatpush1.bf16.msra.mxu0 0
        %3828 = vmatprep.subr.bf16.mxu0 0
        %3829 = vmatpush1.bf16.msra.mxu0 0
        %3830 = vmatprep.subr.bf16.mxu0 0
        %3831 = vmatpush1.bf16.msra.mxu0 0
        %3832 = vmatprep.subr.bf16.mxu0 0
        %3833 = vmatpush1.bf16.msra.mxu0 0
        %3834 = vmatprep.subr.bf16.mxu0 0
        %3835 = vmatpush1.bf16.msra.mxu0 0
        %3836 = vmatprep.subr.bf16.mxu0 0
        %3837 = vmatpush1.bf16.msra.mxu0 0
        %3838 = vmatprep.subr.bf16.mxu0 0
        %3839 = vmatpush1.bf16.msra.mxu0 0
        %3840 = vmatprep.subr.bf16.mxu0 0
        %3841 = vmatpush1.bf16.msra.mxu0 0
        %3842 = vmatprep.subr.bf16.mxu0 0
        %3843 = vmatpush1.bf16.msra.mxu0 0
        %3844 = vmatprep.subr.bf16.mxu0 0
        %3845 = vmatpush1.bf16.msra.mxu0 0
        %3846 = vmatprep.subr.bf16.mxu0 0
        %3847 = vmatpush1.bf16.msra.mxu0 0
        %3848 = vmatprep.subr.bf16.mxu0 0
        %3849 = vmatpush1.bf16.msra.mxu0 0
        %3850 = vmatprep.subr.bf16.mxu0 0
        %3851 = vmatpush1.bf16.msra.mxu0 0
        %3852 = vmatprep.subr.bf16.mxu0 0
        %3853 = vmatpush1.bf16.msra.mxu0 0
        %3854 = vmatprep.mubr.bf16.mxu0 0
        %3855 = vmatmul.mubr.bf16.gmra.mrb[0].mxu0 %v3820
        %v3856 = vpop.f32.mrb[0].mxu0
        %v3857 = vadd.f32 0.0, %v3856
        %v3858 = vpop.f32.mrb[0].mxu0
        %v3859 = vpop.f32.mrb[0].mxu0
        %v3860 = vadd.f32 0.0, %v3859
        %v3861 = vpop.f32.mrb[0].mxu0
        %3862 = vdwg.mxu0
        %v3863 = vmax.f32 %v3857, 0.0
        %v3864 = vmax.f32 %v3860, 0.0
        %v3865 = vpack.c.bf16 %v3864, %v3863
        %s3866 = scalar_lea.vmem %s11, 32
        %v3867 = vld [vmem:[%s3866] sm:$0xf]
        %v3868 = vld [vmem:[%s3866 + $0x4] sm:$0xf]
        %v3869 = vld [vmem:[%s3866 + $0x8] sm:$0xf]
        %v3870 = vld [vmem:[%s3866 + $0xc] sm:$0xf]
        %v3871 = vld [vmem:[%s3866 + $0x10] sm:$0xf]
        %v3872 = vld [vmem:[%s3866 + $0x14] sm:$0xf]
        %v3873 = vld [vmem:[%s3866 + $0x18] sm:$0xf]
        %v3874 = vld [vmem:[%s3866 + $0x1c] sm:$0xf]
        %v3883 = vunpack.c.l.b16 %v3867
        %v3884 = vunpack.c.l.b16 %v3868
        %v3885 = vunpack.c.l.b16 %v3869
        %v3886 = vunpack.c.l.b16 %v3870
        %v3887 = vunpack.c.l.b16 %v3871
        %v3888 = vunpack.c.l.b16 %v3872
        %v3889 = vunpack.c.l.b16 %v3873
        %v3890 = vunpack.c.l.b16 %v3874
        %v3891 = vpack.c.b16 %v3884, %v3883
        %v3892 = vpack.c.b16 %v3886, %v3885
        %v3893 = vpack.c.b16 %v3888, %v3887
        %v3894 = vpack.c.b16 %v3890, %v3889
        %v3900 = vsel %vm2124, %v3865, 0
        %3902 = vmatprep.subr.bf16.mxu0 0
        %3903 = vmatpush1.bf16.msra.mxu0 %v3891
        %3904 = vmatprep.subr.bf16.mxu0 0
        %3905 = vmatpush1.bf16.msra.mxu0 %v3892
        %3906 = vmatprep.subr.bf16.mxu0 0
        %3907 = vmatpush1.bf16.msra.mxu0 %v3893
        %3908 = vmatprep.subr.bf16.mxu0 0
        %3909 = vmatpush1.bf16.msra.mxu0 %v3894
        %3910 = vmatprep.subr.bf16.mxu0 0
        %3911 = vmatpush1.bf16.msra.mxu0 0
        %3912 = vmatprep.subr.bf16.mxu0 0
        %3913 = vmatpush1.bf16.msra.mxu0 0
        %3914 = vmatprep.subr.bf16.mxu0 0
        %3915 = vmatpush1.bf16.msra.mxu0 0
        %3916 = vmatprep.subr.bf16.mxu0 0
        %3917 = vmatpush1.bf16.msra.mxu0 0
        %3918 = vmatprep.subr.bf16.mxu0 0
        %3919 = vmatpush1.bf16.msra.mxu0 0
        %3920 = vmatprep.subr.bf16.mxu0 0
        %3921 = vmatpush1.bf16.msra.mxu0 0
        %3922 = vmatprep.subr.bf16.mxu0 0
        %3923 = vmatpush1.bf16.msra.mxu0 0
        %3924 = vmatprep.subr.bf16.mxu0 0
        %3925 = vmatpush1.bf16.msra.mxu0 0
        %3926 = vmatprep.subr.bf16.mxu0 0
        %3927 = vmatpush1.bf16.msra.mxu0 0
        %3928 = vmatprep.subr.bf16.mxu0 0
        %3929 = vmatpush1.bf16.msra.mxu0 0
        %3930 = vmatprep.subr.bf16.mxu0 0
        %3931 = vmatpush1.bf16.msra.mxu0 0
        %3932 = vmatprep.subr.bf16.mxu0 0
        %3933 = vmatpush1.bf16.msra.mxu0 0
        %3934 = vmatprep.mubr.bf16.mxu0 0
        %3935 = vmatmul.mubr.bf16.gmra.mrb[0].mxu0 %v3900
        %v3936 = vpop.f32.mrb[0].mxu0
        %v3937 = vadd.f32 0.0, %v3936
        %v3938 = vpop.f32.mrb[0].mxu0
        %v3939 = vpop.f32.mrb[0].mxu0
        %v3940 = vadd.f32 0.0, %v3939
        %v3941 = vpop.f32.mrb[0].mxu0
        %3942 = vdwg.mxu0
        %v3943 = vadd.f32 %v3793, %v3937
        %v3944 = vadd.f32 %v3798, %v3940
        %3945 = vmatprep.subr.mxu0 0.0
        %3946 = vmatpush1.msra.mxu0 %v3943
        %3947 = vmatprep.subr.mxu0 0.0
        %3948 = vmatpush1.msra.mxu0 %v3944
        %3949 = vmatprep.subr.mxu0 0.0
        %3950 = vmatpush1.msra.mxu0 0.0
        %3951 = vmatprep.subr.mxu0 0.0
        %3952 = vmatpush1.msra.mxu0 0.0
        %3953 = vmatprep.subr.mxu0 0.0
        %3954 = vmatpush1.msra.mxu0 0.0
        %3955 = vmatprep.subr.mxu0 0.0
        %3956 = vmatpush1.msra.mxu0 0.0
        %3957 = vmatprep.subr.mxu0 0.0
        %3958 = vmatpush1.msra.mxu0 0.0
        %3959 = vmatprep.subr.mxu0 0.0
        %3960 = vmatpush1.msra.mxu0 0.0
        %3961 = vmatprep.subr.mxu0 0.0
        %3962 = vmatpush1.msra.mxu0 0.0
        %3963 = vmatprep.subr.mxu0 0.0
        %3964 = vmatpush1.msra.mxu0 0.0
        %3965 = vmatprep.subr.mxu0 0.0
        %3966 = vmatpush1.msra.mxu0 0.0
        %3967 = vmatprep.subr.mxu0 0.0
        %3968 = vmatpush1.msra.mxu0 0.0
        %3969 = vmatprep.subr.mxu0 0.0
        %3970 = vmatpush1.msra.mxu0 0.0
        %3971 = vmatprep.subr.mxu0 0.0
        %3972 = vmatpush1.msra.mxu0 0.0
        %3973 = vmatprep.subr.mxu0 0.0
        %3974 = vmatpush1.msra.mxu0 0.0
        %3975 = vmatprep.subr.mxu0 0.0
        %3976 = vmatpush1.msra.mxu0 0.0
        %3977 = vmatprep.subr.mxu0 0.0
        %3978 = vmatpush1.msra.mxu0 0.0
        %3979 = vmatprep.subr.mxu0 0.0
        %3980 = vmatpush1.msra.mxu0 0.0
        %3981 = vmatprep.subr.mxu0 0.0
        %3982 = vmatpush1.msra.mxu0 0.0
        %3983 = vmatprep.subr.mxu0 0.0
        %3984 = vmatpush1.msra.mxu0 0.0
        %3985 = vmatprep.subr.mxu0 0.0
        %3986 = vmatpush1.msra.mxu0 0.0
        %3987 = vmatprep.subr.mxu0 0.0
        %3988 = vmatpush1.msra.mxu0 0.0
        %3989 = vmatprep.subr.mxu0 0.0
        %3990 = vmatpush1.msra.mxu0 0.0
        %3991 = vmatprep.subr.mxu0 0.0
        %3992 = vmatpush1.msra.mxu0 0.0
        %3993 = vmatprep.subr.mxu0 0.0
        %3994 = vmatpush1.msra.mxu0 0.0
        %3995 = vmatprep.subr.mxu0 0.0
        %3996 = vmatpush1.msra.mxu0 0.0
        %3997 = vmatprep.subr.mxu0 0.0
        %3998 = vmatpush1.msra.mxu0 0.0
        %3999 = vmatprep.subr.mxu0 0.0
        %4000 = vmatpush1.msra.mxu0 0.0
        %4001 = vmatprep.subr.mxu0 0.0
        %4002 = vmatpush1.msra.mxu0 0.0
        %4003 = vmatprep.subr.mxu0 0.0
        %4004 = vmatpush1.msra.mxu0 0.0
        %4005 = vmatprep.subr.mxu0 0.0
        %4006 = vmatpush1.msra.mxu0 0.0
        %4007 = vmatprep.subr.mxu0 0.0
        %4008 = vmatpush1.msra.mxu0 0.0
        %4009 = vmatprep.mubr.f32.mxu0 0.0
        %4010 = vmatmul.mubr.f32.gmra.mrb[0].mxu0 %v1948
        %v4011 = vpop.f32.mrb[0].mxu0
        %v4012 = vadd.f32 0.0, %v4011
        %v4013 = vpop.f32.mrb[0].mxu0
        %4014 = vmatprep.mubr.f32.mxu0 0.0
        %4015 = vmatmul.mubr.f32.gmra.mrb[0].mxu0 %v1951
        %v4016 = vpop.f32.mrb[0].mxu0
        %v4017 = vadd.f32 0.0, %v4016
        %v4018 = vpop.f32.mrb[0].mxu0
        %4019 = vdwg.mxu0
        %v4020 = vsel %vm495, %v4012, 0.0
        %4021 = vadd.xlane.f32.xlu0 %v4020
        %v4022 = vpop.xlane.xlu0 %4021
        %v4023 = vsel %vm495, %v4017, 0.0
        %4024 = vadd.xlane.f32.xlu0 %v4023
        %v4025 = vpop.xlane.xlu0 %4024
        %v4026 = vrcp.pop 32.0
        %v4027 = vmul.f32 %v4022, %v4026
        %v4028 = vmul.f32 %v4025, %v4026
        %v4029 = vsub.f32 %v4012, %v4027
        %v4030 = vsub.f32 %v4017, %v4028
        %v4031 = vmul.f32 %v4029, %v4029
        %v4032 = vmul.f32 %v4030, %v4030
        %v4033 = vsel %vm495, %v4031, 0.0
        %4034 = vadd.xlane.f32.xlu0 %v4033
        %v4035 = vpop.xlane.xlu0 %4034
        %v4036 = vsel %vm495, %v4032, 0.0
        %4037 = vadd.xlane.f32.xlu0 %v4036
        %v4038 = vpop.xlane.xlu0 %4037
        %v4039 = vmul.f32 %v4035, %v4026
        %v4040 = vmul.f32 %v4038, %v4026
        %v4041 = vadd.f32 %v4039, 1e-05
        %v4042 = vadd.f32 %v4040, 1e-05
        %v4043 = vrsqrt.pop %v4041
        %v4044 = vrsqrt.pop %v4042
        %v4045 = vmul.f32 %v4029, %v4043
        %v4046 = vmul.f32 %v4030, %v4044
        %v4047 = vld [vmem:[%s12] sm:$0x1]
        %v4049 = vlaneseq
        %v4050 = vshrl.u32 %v4049, 7
        %v4051 = vsub.s32 0, %v4050
        %v4052 = vrot.slane %v4047, %v4051
        %v4054 = vmul.f32 %v4045, %v4052
        %v4055 = vmul.f32 %v4046, %v4052
        %v4056 = vld [vmem:[%s13] sm:$0x1]
        %v4058 = vlaneseq
        %v4059 = vshrl.u32 %v4058, 7
        %v4060 = vsub.s32 0, %v4059
        %v4061 = vrot.slane %v4056, %v4060
        %v4063 = vadd.f32 %v4054, %v4061
        %v4064 = vadd.f32 %v4055, %v4061
        %v4065 = vsel %vm495, %v4063, 0.0
        %v4066 = vsel %vm495, %v4064, 0.0
        %v4067 = vadd.f32 %v4065, %v4066
        %v4068 = vrot.slane %v4067, 4
        %v4069 = vadd.f32 %v4067, %v4068
        %v4070 = vrot.slane %v4069, 2
        %v4071 = vadd.f32 %v4069, %v4070
        %v4072 = vrot.slane %v4071, 1
        %v4073 = vadd.f32 %v4071, %v4072
        %v4074 = vrcp.pop 16.0
        %v4075 = vmul.f32 %v4073, %v4074
        %v4076 = vsub.f32 %v4063, %v4075
        %v4077 = vsub.f32 %v4064, %v4075
        %4078 = vst.msk [vmem:[%s460] sm:$0xff] %vm495, %v4076
        %4079 = vst.msk [vmem:[%s460 + $0x8] sm:$0xff] %vm495, %v4077
        %s4080 = sand.u32 %s335, 1
        %s4081 = scalar_lea.sflag [#allocation3], %s4080
        %s4082 = sand.u32 %s335, 1
        %s4083 = smul.addr %s4082, 16
        %s4084 = scalar_lea.vmem [#allocation2], %s4083
        // Predicated region
        $region77: #{tpu_custom_call.1} parent=75 // pred_check
          %p4085 = pneg %p345
        $region78: #{tpu_custom_call.1} parent=75 // pred_check_branch
          %4087 = sbr.rel (%p4085) target = $region80
        $region79: #{tpu_custom_call.1} parent=75 // pred_region
          %s4089 = ssub.s32 256, 256
          %4090 = vsyncadd %s4081, %s4089
          %s4091 = smul.addr %s28, 2
          %s4092 = smul.addr %s4091, 128
          %s4093 = scalar_lea.hbm %s14, %s4092
          %s4094 = sshll.u32 %s4084, 4
          %s4095 = int_to_ptr.vmem [resolvable:$true] %s4094
          %4100 = dma.vmem_to_hbm [thread:$0]  %s4095, 256, %s4093, %s4081, 128, 128, 8
        $region80: #{tpu_custom_call.1} parent=75 // pred_fallthru
          _
      $region76: #{tpu_custom_call.1} parent=5 // pred_fallthru
        _
      %p4101 = scmp.le.s32.totalorder 2, %s23
      // Predicated region
      $region81: #{tpu_custom_call.1} parent=5 // pred_check
        %p4102 = pneg %p4101
      $region82: #{tpu_custom_call.1} parent=5 // pred_check_branch
        %4104 = sbr.rel (%p4102) target = $region84
      $region83: #{tpu_custom_call.1} parent=5 // pred_region
        %s4105 = ssub.s32 %s23, 2
        // Predicated region
        $region85: #{tpu_custom_call.1} parent=83 // pred_check
          %p4106 = pneg %p351
        $region86: #{tpu_custom_call.1} parent=83 // pred_check_branch
          %4108 = sbr.rel (%p4106) target = $region88
        $region87: #{tpu_custom_call.1} parent=83 // pred_region
          %s4109 = sand.u32 %s336, 1
          %s4110 = scalar_lea.sflag [#allocation3], %s4109
          %s4111 = sand.u32 %s336, 1
          %s4112 = smul.addr %s4111, 16
          %s4113 = scalar_lea.vmem [#allocation2], %s4112
          %4114 = dma.done %s4110, 256
        $region88: #{tpu_custom_call.1} parent=83 // pred_fallthru
          _
      $region84: #{tpu_custom_call.1} parent=5 // pred_fallthru
        _
    $region6: #{tpu_custom_call.1} parent=1 // loop_footer
      %s27 = sadd.s32 1, %s23
    $region7: #{tpu_custom_call.1} parent=1 // loop_footer_branch
      %22 = sbr.rel target = $region3
    $region8: #{tpu_custom_call.1} parent=1 // loop_exit
      _
    %4115 = vsyncpa [#allocation3], 1
    %s4116 = scalar_lea.sflag [#allocation3], 1
    %4117 = vsyncpa %s4116, 1

</llo_original>
